<compile_context>
chip_gen: v7x
topology: tpu7x:2x2x1
jax: 0.10.0
libtpu: 0.0.40
codegen_flags: <defaults>
</compile_context>

<pallas_src>
import functools

import jax
import jax.numpy as jnp
from jax.experimental import pallas as pl
from jax.experimental.pallas import tpu as pltpu


def _channel_tiles(c, cap):
    """Candidate channel tile sizes (largest first) satisfying TPU layout rules:
    a tile is either a 128-lane multiple that divides `c`, or the full dim."""
    if c % 128:
        return (c,)
    return tuple(t for t in range(min(c, cap), 0, -128) if c % t == 0)


def _vmem_capacity_bytes():
    try:
        cap = int(pltpu.get_tpu_info().vmem_capacity_bytes)
        if cap > 0:
            return cap
    except Exception:
        pass
    return 64 << 20  # conservative default (v7x per-TC VMEM)


# ---------------------------------------------------------------------------
# Fused atrous-conv kernel: K-folded shifted windows -> one MXU matmul / k-step
# ---------------------------------------------------------------------------
def _atrous_conv_kernel(x_ref, w_ref, o_ref, sum_ref, sq_ref, acc_ref, *patch,
                        kh_kw, dil, ho, wo, tci):
    # grid = (batch n, C_out tile j, C_in tile k); k is the reduction axis.
    KH, KW = kh_kw
    k = pl.program_id(2)

    @pl.when(k == 0)
    def _():
        acc_ref[...] = jnp.zeros_like(acc_ref)

    if KH == 1 and KW == 1:
        # 1x1 conv: the padded plane IS the window; no patch copies needed.
        a = x_ref[0].reshape(ho * wo, tci)
    else:
        patch_ref = patch[0]
        for kw in range(KW):
            # ONE W-shifted plane per kw column, shared by its KH taps (the H
            # offset is a leading-dim slice, so it adds no further relayout).
            xw = x_ref[0, :, kw * dil:kw * dil + wo, :]            # (Hp, Wo, tci)
            for kh in range(KH):
                t = kh * KW + kw
                patch_ref[:, t * tci:(t + 1) * tci] = (
                    xw[kh * dil:kh * dil + ho].reshape(ho * wo, tci))
        a = patch_ref[...]

    # Single MXU contraction with K = KH*KW*tci; one accumulator update per
    # k-step instead of one per tap (no register-resident chained partial sum).
    acc_ref[...] += jnp.dot(a, w_ref[0], preferred_element_type=jnp.float32)

    @pl.when(k == pl.num_programs(2) - 1)
    def _():
        acc = acc_ref[...]
        o_ref[0] = acc.reshape(ho, wo, -1).astype(o_ref.dtype)
        # Fused BatchNorm batch-statistic partials (exact f32 from the acc).
        sum_ref[0] = jnp.sum(acc, axis=0, keepdims=True)
        sq_ref[0] = jnp.sum(acc * acc, axis=0, keepdims=True)


def _atrous_conv_nhwc(x_nhwc, w_taps, *, dil, kh_kw, out_hw):
    """x_nhwc: (N, Hp, Wp, Cin) spatially padded input; w_taps: (KH*KW, Cin, Cout).
    Returns (y, sum, sumsq):
      y     : (N, Ho, Wo, Cout) in x_nhwc.dtype (stride-1 dilated conv),
      sum   : (N, 1, Cout) f32 per-sample spatial sums (fused BN statistics),
      sumsq : (N, 1, Cout) f32 per-sample spatial sums of squares."""
    N, Hp, Wp, Cin = x_nhwc.shape
    KHKW, _, Cout = w_taps.shape
    KH, KW = kh_kw
    Ho, Wo = out_hw
    in_item = jnp.dtype(x_nhwc.dtype).itemsize
    out_item = in_item  # y stored in compute dtype; stats come out exact f32

    cap = _vmem_capacity_bytes()
    budget = min(cap // 4, 32 << 20)   # generation-aware (v5e/v6e: 32 MiB, v7x: 16 MiB)

    def vmem_need(tci, tco):
        need = (2 * Hp * Wp * tci * in_item          # input block (double-buffered)
                + 2 * KHKW * tci * tco * in_item     # weight block (double-buffered)
                + 2 * Ho * Wo * tco * out_item       # y output block (double-buffered)
                + 8 * tco * 4                        # sum / sumsq blocks (tiny)
                + Ho * Wo * tco * 4)                 # f32 accumulator scratch
        if KHKW > 1:
            need += Ho * Wo * KHKW * tci * in_item   # K-folded patch scratch
            need += Hp * Wo * tci * in_item          # one shifted-plane temporary
        return need

    # Prefer tci == Cin (n_ci == 1: no reduction loop, no weight restream).
    ci_opts = _channel_tiles(Cin, 2048)
    co_opts = _channel_tiles(Cout, 512)
    ci = co = 0
    while vmem_need(ci_opts[ci], co_opts[co]) > budget:
        if ci + 1 < len(ci_opts):
            ci += 1
        elif co + 1 < len(co_opts):
            co += 1
        else:
            break  # TODO(synk): tile Ho into haloed row blocks for very large feature maps
    tci, tco = ci_opts[ci], co_opts[co]
    n_ci, n_co = Cin // tci, Cout // tco

    # Weights pre-arranged as (n_ci, KH*KW*tci, Cout); row order (tap, cin-in-tile)
    # matches the patch column order, so no in-kernel weight reshape is needed.
    w_fold = (w_taps.reshape(KHKW, n_ci, tci, Cout)
              .transpose(1, 0, 2, 3)
              .reshape(n_ci, KHKW * tci, Cout))

    kernel = functools.partial(_atrous_conv_kernel, kh_kw=(KH, KW), dil=dil,
                               ho=Ho, wo=Wo, tci=tci)

    scratch = [pltpu.VMEM((Ho * Wo, tco), jnp.float32)]
    if KHKW > 1:
        scratch.append(pltpu.VMEM((Ho * Wo, KHKW * tci), x_nhwc.dtype))

    cost = pl.CostEstimate(
        flops=2 * N * Ho * Wo * Cout * Cin * KHKW,
        transcendentals=0,
        bytes_accessed=int(x_nhwc.size) * in_item * n_co
        + int(w_fold.size) * in_item * N
        + N * Ho * Wo * Cout * out_item
        + 2 * N * Cout * 4)

    vmem_limit = int(min(2 * vmem_need(tci, tco) + (8 << 20), cap - (8 << 20)))

    return pl.pallas_call(
        kernel,
        out_shape=(
            jax.ShapeDtypeStruct((N, Ho, Wo, Cout), x_nhwc.dtype),
            jax.ShapeDtypeStruct((N, 1, Cout), jnp.float32),
            jax.ShapeDtypeStruct((N, 1, Cout), jnp.float32),
        ),
        grid_spec=pltpu.PrefetchScalarGridSpec(
            num_scalar_prefetch=0,
            grid=(N, n_co, n_ci),
            in_specs=[
                pl.BlockSpec((1, Hp, Wp, tci), lambda n, j, k: (n, 0, 0, k)),
                pl.BlockSpec((1, KHKW * tci, tco), lambda n, j, k: (k, 0, j)),
            ],
            out_specs=[
                pl.BlockSpec((1, Ho, Wo, tco), lambda n, j, k: (n, 0, 0, j)),
                pl.BlockSpec((1, 1, tco), lambda n, j, k: (n, 0, j)),
                pl.BlockSpec((1, 1, tco), lambda n, j, k: (n, 0, j)),
            ],
            scratch_shapes=scratch,
        ),
        compiler_params=pltpu.CompilerParams(
            dimension_semantics=("parallel", "parallel", "arbitrary"),
            vmem_limit_bytes=vmem_limit),
        cost_estimate=cost,
    )(x_nhwc, w_fold)


# ---------------------------------------------------------------------------
# Fused BatchNorm-apply + ReLU + NHWC->NCHW transpose (lane-dense output)
# ---------------------------------------------------------------------------
def _bn_relu_nchw_kernel(x_ref, s_ref, t_ref, o_ref):
    y = x_ref[0].astype(jnp.float32) * s_ref[...] + t_ref[...]      # (tsp, C)
    # Fused NHWC->NCHW: transpose the tile on the XLU and store lane-dense
    # along the spatial axis of the NCHW output.
    o_ref[0] = jnp.maximum(y, 0.0).T.astype(o_ref.dtype)            # (C, tsp)


def _bn_relu_to_nchw(y3, scale, shift, out_dtype):
    """y3: (N, S, C); scale/shift: (1, C) f32.
    Returns relu(y3 * scale + shift) transposed to (N, C, S) in out_dtype."""
    N, S, C = y3.shape
    # Spatial tile: a 128-multiple dividing S (lane-dense transposed store) when
    # possible, sized so in/out blocks stay well inside the VMEM budget.
    cap_rows = max(128, min(1024, (8 << 20) // max(1, 12 * C)))
    tsp = S
    if S % 128 == 0:
        for t in range(min(S, cap_rows) // 128 * 128, 0, -128):
            if S % t == 0:
                tsp = t
                break
    return pl.pallas_call(
        _bn_relu_nchw_kernel,
        out_shape=jax.ShapeDtypeStruct((N, C, S), out_dtype),
        grid_spec=pltpu.PrefetchScalarGridSpec(
            num_scalar_prefetch=0,
            grid=(N, S // tsp),
            in_specs=[
                pl.BlockSpec((1, tsp, C), lambda n, i: (n, i, 0)),
                pl.BlockSpec((1, C), lambda n, i: (0, 0)),
                pl.BlockSpec((1, C), lambda n, i: (0, 0)),
            ],
            out_specs=pl.BlockSpec((1, C, tsp), lambda n, i: (n, 0, i)),
        ),
        compiler_params=pltpu.CompilerParams(
            dimension_semantics=("parallel", "parallel")),
    )(y3, scale, shift)


# ---------------------------------------------------------------------------
# ASPP forward:  atrous Conv2d (bias=False) -> BatchNorm2d (batch stats) -> ReLU
# ---------------------------------------------------------------------------
def aspp_forward(x, w, gamma, beta, *, padding, dilation,
                 eps=1e-5, compute_dtype=jnp.bfloat16):
    """x: (N, Cin, H, W) NCHW; w: (Cout, Cin, KH, KW) OIHW (no bias).
    BatchNorm uses per-batch statistics (fresh nn.BatchNorm2d in train mode)."""
    N, Cin, H, W = x.shape
    Cout, Cin2, KH, KW = w.shape
    assert Cin == Cin2
    p, d = padding, dilation
    Hp, Wp = H + 2 * p, W + 2 * p
    Ho = Hp - d * (KH - 1)
    Wo = Wp - d * (KW - 1)

    # NHWC so channels ride the 128-lane axis; one boundary transpose plus the
    # (inherent) spatial conv padding, nothing else copied in HBM.
    x_nhwc = jnp.transpose(x, (0, 2, 3, 1)).astype(compute_dtype)
    if p:
        x_nhwc = jnp.pad(x_nhwc, ((0, 0), (p, p), (p, p), (0, 0)))
    w_taps = jnp.transpose(w, (2, 3, 1, 0)).reshape(KH * KW, Cin, Cout)
    w_taps = w_taps.astype(compute_dtype)

    y, psum, psq = _atrous_conv_nhwc(x_nhwc, w_taps, dil=d, kh_kw=(KH, KW),
                                     out_hw=(Ho, Wo))
    # y: (N, Ho, Wo, Cout) compute_dtype; psum/psq: (N, 1, Cout) exact-f32 spatial
    # partials produced inside the conv epilogue (no extra HBM pass over y).

    M = N * Ho * Wo
    mean = jnp.sum(psum, axis=(0, 1)) / M
    var = jnp.maximum(jnp.sum(psq, axis=(0, 1)) / M - jnp.square(mean), 0.0)
    scale = gamma.astype(jnp.float32) * jax.lax.rsqrt(var + eps)
    shift = beta.astype(jnp.float32) - mean * scale

    out3 = _bn_relu_to_nchw(y.reshape(N, Ho * Wo, Cout),
                            scale[None, :], shift[None, :], x.dtype)
    return out3.reshape(N, Cout, Ho, Wo)


# ---------------------------------------------------------------------------
# Pure-XLA reference for verification
# ---------------------------------------------------------------------------
def _reference_aspp(x, w, gamma, beta, *, padding, dilation, eps=1e-5):
    y = jax.lax.conv_general_dilated(
        x, w, window_strides=(1, 1),
        padding=[(padding, padding), (padding, padding)],
        rhs_dilation=(dilation, dilation),
        dimension_numbers=("NCHW", "OIHW", "NCHW"))
    mean = jnp.mean(y, axis=(0, 2, 3), keepdims=True)
    var = jnp.var(y, axis=(0, 2, 3), keepdims=True)
    yhat = (y - mean) * jax.lax.rsqrt(var + eps)
    return jnp.maximum(yhat * gamma[None, :, None, None] + beta[None, :, None, None], 0.0)


# ---------------------------------------------------------------------------
if __name__ == "__main__":
    root = jax.random.PRNGKey(0)
    batch, inplanes, planes, H, W = 2, 128, 256, 16, 16

    kx, kp1, kp2 = jax.random.split(root, 3)
    x = jax.random.uniform(kx, (batch, inplanes, H, W), jnp.float32)

    def make_params(key, ksize):
        kw_, kg, kb = jax.random.split(key, 3)
        w = 0.05 * jax.random.normal(kw_, (planes, inplanes, ksize, ksize), jnp.float32)
        gamma = 1.0 + 0.1 * jax.random.normal(kg, (planes,), jnp.float32)
        beta = 0.1 * jax.random.normal(kb, (planes,), jnp.float32)
        return w, gamma, beta

    # 3x3 atrous branch (padding == dilation keeps spatial size) and 1x1 branch.
    for ksize, pad, dil, key in ((3, 2, 2, kp1), (1, 0, 1, kp2)):
        w, gamma, beta = make_params(key, ksize)
        fwd = jax.jit(functools.partial(aspp_forward, padding=pad, dilation=dil))
        out = jax.block_until_ready(fwd(x, w, gamma, beta))

        assert out.shape == (batch, planes, H, W), out.shape
        assert bool(jnp.all(jnp.isfinite(out)))

        ref = _reference_aspp(x, w, gamma, beta, padding=pad, dilation=dil)
        err = float(jnp.max(jnp.abs(out - ref)))
        assert err < 0.2, f"kernel/reference mismatch (k={ksize}): max abs err {err}"

    print("KERNEL_OK")
</pallas_src>

<mosaic_0001>
module attributes {stable_mosaic.version = 11 : i64} {
  func.func @_atrous_conv_kernel(%arg0: i32, %arg1: i32, %arg2: i32, %arg3: memref<1x20x20x128xbf16, #tpu.memory_space<vmem>>, %arg4: memref<1x1152x256xbf16, #tpu.memory_space<vmem>>, %arg5: memref<1x16x16x256xbf16, #tpu.memory_space<vmem>>, %arg6: memref<1x1x256xf32, #tpu.memory_space<vmem>>, %arg7: memref<1x1x256xf32, #tpu.memory_space<vmem>>, %arg8: memref<256x256xf32, #tpu.memory_space<vmem>>, %arg9: memref<256x1152xbf16, #tpu.memory_space<vmem>>) attributes {dimension_semantics = [#tpu.dimension_semantics<parallel>, #tpu.dimension_semantics<parallel>, #tpu.dimension_semantics<arbitrary>], iteration_bounds = array<i64: 2, 1, 1>, scalar_prefetch = 0 : i64, scratch_operands = 2 : i64, tpu.core_type = #tpu.core_type<tc>, window_params = [{transform_indices = @transform_0, window_bounds = array<i64: 1, 20, 20, 128>}, {transform_indices = @transform_1, window_bounds = array<i64: 1, 1152, 256>}, {transform_indices = @transform_2, window_bounds = array<i64: 1, 16, 16, 256>}, {transform_indices = @transform_3, window_bounds = array<i64: 1, 1, 256>}, {transform_indices = @transform_4, window_bounds = array<i64: 1, 1, 256>}]} {
    %c0_i32 = arith.constant 0 : i32
    %0 = arith.cmpi eq, %arg2, %c0_i32 : i32
    %1 = arith.extui %0 : i1 to i32
    %c0_i32_0 = arith.constant 0 : i32
    %2 = arith.cmpi ne, %1, %c0_i32_0 : i32
    scf.if %2 {
      %cst_31 = arith.constant 0.000000e+00 : f32
      %46 = vector.broadcast %cst_31 : f32 to vector<256x256xf32>
      %c0_32 = arith.constant 0 : index
      %c0_33 = arith.constant 0 : index
      %47 = vector.load %arg8[%c0_32, %c0_33] : memref<256x256xf32, #tpu.memory_space<vmem>>, vector<256x256xf32>
      tpu.vector_store %arg8[%c0_32, %c0_33], %46 {strides = array<i32>} : memref<256x256xf32, #tpu.memory_space<vmem>>, vector<256x256xf32>,
    } else {
    }
    %c0 = arith.constant 0 : index
    %c0_1 = arith.constant 0 : index
    %c0_2 = arith.constant 0 : index
    %c0_3 = arith.constant 0 : index
    %3 = vector.load %arg3[%c0, %c0_1, %c0_2, %c0_3] : memref<1x20x20x128xbf16, #tpu.memory_space<vmem>>, vector<1x20x16x128xbf16>
    %4 = vector.shape_cast %3 : vector<1x20x16x128xbf16> to vector<20x16x128xbf16>
    %5 = vector.extract_strided_slice %4 {offsets = [0, 0, 0], sizes = [16, 16, 128], strides = [1, 1, 1]} : vector<20x16x128xbf16> to vector<16x16x128xbf16>
    %6 = vector.shape_cast %5 : vector<16x16x128xbf16> to vector<256x128xbf16>
    %c0_4 = arith.constant 0 : index
    %c0_5 = arith.constant 0 : index
    %7 = vector.load %arg9[%c0_4, %c0_5] : memref<256x1152xbf16, #tpu.memory_space<vmem>>, vector<256x128xbf16>
    tpu.vector_store %arg9[%c0_4, %c0_5], %6 {strides = array<i32>} : memref<256x1152xbf16, #tpu.memory_space<vmem>>, vector<256x128xbf16>,
    %8 = vector.extract_strided_slice %4 {offsets = [2, 0, 0], sizes = [16, 16, 128], strides = [1, 1, 1]} : vector<20x16x128xbf16> to vector<16x16x128xbf16>
    %9 = vector.shape_cast %8 : vector<16x16x128xbf16> to vector<256x128xbf16>
    %c0_6 = arith.constant 0 : index
    %c384 = arith.constant 384 : index
    %10 = vector.load %arg9[%c0_6, %c384] : memref<256x1152xbf16, #tpu.memory_space<vmem>>, vector<256x128xbf16>
    tpu.vector_store %arg9[%c0_6, %c384], %9 {strides = array<i32>} : memref<256x1152xbf16, #tpu.memory_space<vmem>>, vector<256x128xbf16>,
    %11 = vector.extract_strided_slice %4 {offsets = [4, 0, 0], sizes = [16, 16, 128], strides = [1, 1, 1]} : vector<20x16x128xbf16> to vector<16x16x128xbf16>
    %12 = vector.shape_cast %11 : vector<16x16x128xbf16> to vector<256x128xbf16>
    %c0_7 = arith.constant 0 : index
    %c768 = arith.constant 768 : index
    %13 = vector.load %arg9[%c0_7, %c768] : memref<256x1152xbf16, #tpu.memory_space<vmem>>, vector<256x128xbf16>
    tpu.vector_store %arg9[%c0_7, %c768], %12 {strides = array<i32>} : memref<256x1152xbf16, #tpu.memory_space<vmem>>, vector<256x128xbf16>,
    %c0_8 = arith.constant 0 : index
    %c0_9 = arith.constant 0 : index
    %c2 = arith.constant 2 : index
    %c0_10 = arith.constant 0 : index
    %14 = vector.load %arg3[%c0_8, %c0_9, %c2, %c0_10] : memref<1x20x20x128xbf16, #tpu.memory_space<vmem>>, vector<1x20x16x128xbf16>
    %15 = vector.shape_cast %14 : vector<1x20x16x128xbf16> to vector<20x16x128xbf16>
    %16 = vector.extract_strided_slice %15 {offsets = [0, 0, 0], sizes = [16, 16, 128], strides = [1, 1, 1]} : vector<20x16x128xbf16> to vector<16x16x128xbf16>
    %17 = vector.shape_cast %16 : vector<16x16x128xbf16> to vector<256x128xbf16>
    %c0_11 = arith.constant 0 : index
    %c128 = arith.constant 128 : index
    %18 = vector.load %arg9[%c0_11, %c128] : memref<256x1152xbf16, #tpu.memory_space<vmem>>, vector<256x128xbf16>
    tpu.vector_store %arg9[%c0_11, %c128], %17 {strides = array<i32>} : memref<256x1152xbf16, #tpu.memory_space<vmem>>, vector<256x128xbf16>,
    %19 = vector.extract_strided_slice %15 {offsets = [2, 0, 0], sizes = [16, 16, 128], strides = [1, 1, 1]} : vector<20x16x128xbf16> to vector<16x16x128xbf16>
    %20 = vector.shape_cast %19 : vector<16x16x128xbf16> to vector<256x128xbf16>
    %c0_12 = arith.constant 0 : index
    %c512 = arith.constant 512 : index
    %21 = vector.load %arg9[%c0_12, %c512] : memref<256x1152xbf16, #tpu.memory_space<vmem>>, vector<256x128xbf16>
    tpu.vector_store %arg9[%c0_12, %c512], %20 {strides = array<i32>} : memref<256x1152xbf16, #tpu.memory_space<vmem>>, vector<256x128xbf16>,
    %22 = vector.extract_strided_slice %15 {offsets = [4, 0, 0], sizes = [16, 16, 128], strides = [1, 1, 1]} : vector<20x16x128xbf16> to vector<16x16x128xbf16>
    %23 = vector.shape_cast %22 : vector<16x16x128xbf16> to vector<256x128xbf16>
    %c0_13 = arith.constant 0 : index
    %c896 = arith.constant 896 : index
    %24 = vector.load %arg9[%c0_13, %c896] : memref<256x1152xbf16, #tpu.memory_space<vmem>>, vector<256x128xbf16>
    tpu.vector_store %arg9[%c0_13, %c896], %23 {strides = array<i32>} : memref<256x1152xbf16, #tpu.memory_space<vmem>>, vector<256x128xbf16>,
    %c0_14 = arith.constant 0 : index
    %c0_15 = arith.constant 0 : index
    %c4 = arith.constant 4 : index
    %c0_16 = arith.constant 0 : index
    %25 = vector.load %arg3[%c0_14, %c0_15, %c4, %c0_16] : memref<1x20x20x128xbf16, #tpu.memory_space<vmem>>, vector<1x20x16x128xbf16>
    %26 = vector.shape_cast %25 : vector<1x20x16x128xbf16> to vector<20x16x128xbf16>
    %27 = vector.extract_strided_slice %26 {offsets = [0, 0, 0], sizes = [16, 16, 128], strides = [1, 1, 1]} : vector<20x16x128xbf16> to vector<16x16x128xbf16>
    %28 = vector.shape_cast %27 : vector<16x16x128xbf16> to vector<256x128xbf16>
    %c0_17 = arith.constant 0 : index
    %c256 = arith.constant 256 : index
    %29 = vector.load %arg9[%c0_17, %c256] : memref<256x1152xbf16, #tpu.memory_space<vmem>>, vector<256x128xbf16>
    tpu.vector_store %arg9[%c0_17, %c256], %28 {strides = array<i32>} : memref<256x1152xbf16, #tpu.memory_space<vmem>>, vector<256x128xbf16>,
    %30 = vector.extract_strided_slice %26 {offsets = [2, 0, 0], sizes = [16, 16, 128], strides = [1, 1, 1]} : vector<20x16x128xbf16> to vector<16x16x128xbf16>
    %31 = vector.shape_cast %30 : vector<16x16x128xbf16> to vector<256x128xbf16>
    %c0_18 = arith.constant 0 : index
    %c640 = arith.constant 640 : index
    %32 = vector.load %arg9[%c0_18, %c640] : memref<256x1152xbf16, #tpu.memory_space<vmem>>, vector<256x128xbf16>
    tpu.vector_store %arg9[%c0_18, %c640], %31 {strides = array<i32>} : memref<256x1152xbf16, #tpu.memory_space<vmem>>, vector<256x128xbf16>,
    %33 = vector.extract_strided_slice %26 {offsets = [4, 0, 0], sizes = [16, 16, 128], strides = [1, 1, 1]} : vector<20x16x128xbf16> to vector<16x16x128xbf16>
    %34 = vector.shape_cast %33 : vector<16x16x128xbf16> to vector<256x128xbf16>
    %c0_19 = arith.constant 0 : index
    %c1024 = arith.constant 1024 : index
    %35 = vector.load %arg9[%c0_19, %c1024] : memref<256x1152xbf16, #tpu.memory_space<vmem>>, vector<256x128xbf16>
    tpu.vector_store %arg9[%c0_19, %c1024], %34 {strides = array<i32>} : memref<256x1152xbf16, #tpu.memory_space<vmem>>, vector<256x128xbf16>,
    %c0_20 = arith.constant 0 : index
    %c0_21 = arith.constant 0 : index
    %36 = vector.load %arg9[%c0_20, %c0_21] : memref<256x1152xbf16, #tpu.memory_space<vmem>>, vector<256x1152xbf16>
    %c0_22 = arith.constant 0 : index
    %c0_23 = arith.constant 0 : index
    %37 = vector.load %arg8[%c0_22, %c0_23] : memref<256x256xf32, #tpu.memory_space<vmem>>, vector<256x256xf32>
    %c0_24 = arith.constant 0 : index
    %c0_25 = arith.constant 0 : index
    %c0_26 = arith.constant 0 : index
    %38 = vector.load %arg4[%c0_24, %c0_25, %c0_26] : memref<1x1152x256xbf16, #tpu.memory_space<vmem>>, vector<1x1152x256xbf16>
    %39 = vector.shape_cast %38 : vector<1x1152x256xbf16> to vector<1152x256xbf16>
    %cst = arith.constant dense<0.000000e+00> : vector<256x256xf32>
    %40 = tpu.matmul %36, %39, %cst {dimension_numbers = #tpu.dot_dimension_numbers<[1], [0], [0], [1], [0, 0, 1, 1], [], []>} : vector<256x1152xbf16>, vector<1152x256xbf16>, vector<256x256xf32> -> vector<256x256xf32>
    %41 = arith.addf %37, %40 : vector<256x256xf32>
    %c0_27 = arith.constant 0 : index
    %c0_28 = arith.constant 0 : index
    %42 = vector.load %arg8[%c0_27, %c0_28] : memref<256x256xf32, #tpu.memory_space<vmem>>, vector<256x256xf32>
    tpu.vector_store %arg8[%c0_27, %c0_28], %41 {strides = array<i32>} : memref<256x256xf32, #tpu.memory_space<vmem>>, vector<256x256xf32>,
    %c0_i32_29 = arith.constant 0 : i32
    %43 = arith.cmpi eq, %arg2, %c0_i32_29 : i32
    %44 = arith.extui %43 : i1 to i32
    %c0_i32_30 = arith.constant 0 : i32
    %45 = arith.cmpi ne, %44, %c0_i32_30 : i32
    scf.if %45 {
      %c0_31 = arith.constant 0 : index
      %c0_32 = arith.constant 0 : index
      %46 = vector.load %arg8[%c0_31, %c0_32] : memref<256x256xf32, #tpu.memory_space<vmem>>, vector<256x256xf32>
      %47 = vector.shape_cast %46 : vector<256x256xf32> to vector<16x16x256xf32>
      %48 = arith.truncf %47 : vector<16x16x256xf32> to vector<16x16x256xbf16>
      %c0_33 = arith.constant 0 : index
      %c0_34 = arith.constant 0 : index
      %c0_35 = arith.constant 0 : index
      %c0_36 = arith.constant 0 : index
      %49 = vector.load %arg5[%c0_33, %c0_34, %c0_35, %c0_36] : memref<1x16x16x256xbf16, #tpu.memory_space<vmem>>, vector<1x16x16x256xbf16>
      %50 = vector.shape_cast %49 : vector<1x16x16x256xbf16> to vector<16x16x256xbf16>
      %51 = vector.shape_cast %48 : vector<16x16x256xbf16> to vector<1x16x16x256xbf16>
      tpu.vector_store %arg5[%c0_33, %c0_34, %c0_35, %c0_36], %51 {strides = array<i32>} : memref<1x16x16x256xbf16, #tpu.memory_space<vmem>>, vector<1x16x16x256xbf16>,
      %cst_37 = arith.constant dense<0.000000e+00> : vector<256xf32>
      %52 = vector.multi_reduction <add>, %46, %cst_37 [0] : vector<256x256xf32> to vector<256xf32>
      %53 = vector.shape_cast %52 : vector<256xf32> to vector<1x256xf32>
      %c0_38 = arith.constant 0 : index
      %c0_39 = arith.constant 0 : index
      %c0_40 = arith.constant 0 : index
      %54 = vector.load %arg6[%c0_38, %c0_39, %c0_40] : memref<1x1x256xf32, #tpu.memory_space<vmem>>, vector<1x1x256xf32>
      %55 = vector.shape_cast %54 : vector<1x1x256xf32> to vector<1x256xf32>
      %56 = vector.shape_cast %53 : vector<1x256xf32> to vector<1x1x256xf32>
      tpu.vector_store %arg6[%c0_38, %c0_39, %c0_40], %56 {strides = array<i32>} : memref<1x1x256xf32, #tpu.memory_space<vmem>>, vector<1x1x256xf32>,
      %57 = arith.mulf %46, %46 : vector<256x256xf32>
      %cst_41 = arith.constant dense<0.000000e+00> : vector<256xf32>
      %58 = vector.multi_reduction <add>, %57, %cst_41 [0] : vector<256x256xf32> to vector<256xf32>
      %59 = vector.shape_cast %58 : vector<256xf32> to vector<1x256xf32>
      %c0_42 = arith.constant 0 : index
      %c0_43 = arith.constant 0 : index
      %c0_44 = arith.constant 0 : index
      %60 = vector.load %arg7[%c0_42, %c0_43, %c0_44] : memref<1x1x256xf32, #tpu.memory_space<vmem>>, vector<1x1x256xf32>
      %61 = vector.shape_cast %60 : vector<1x1x256xf32> to vector<1x256xf32>
      %62 = vector.shape_cast %59 : vector<1x256xf32> to vector<1x1x256xf32>
      tpu.vector_store %arg7[%c0_42, %c0_43, %c0_44], %62 {strides = array<i32>} : memref<1x1x256xf32, #tpu.memory_space<vmem>>, vector<1x1x256xf32>,
    } else {
    }
    return
  }
  func.func @transform_0(%arg0: i32, %arg1: i32, %arg2: i32) -> (i32, i32, i32, i32) {
    %c0_i32 = arith.constant 0 : i32
    %c0_i32_0 = arith.constant 0 : i32
    %c0_i32_1 = arith.constant 0 : i32
    return %arg0, %c0_i32, %c0_i32_0, %arg2 : i32, i32, i32, i32
  }
  func.func @transform_1(%arg0: i32, %arg1: i32, %arg2: i32) -> (i32, i32, i32) {
    %c0_i32 = arith.constant 0 : i32
    %c0_i32_0 = arith.constant 0 : i32
    return %arg2, %c0_i32, %arg1 : i32, i32, i32
  }
  func.func @transform_2(%arg0: i32, %arg1: i32, %arg2: i32) -> (i32, i32, i32, i32) {
    %c0_i32 = arith.constant 0 : i32
    %c0_i32_0 = arith.constant 0 : i32
    %c0_i32_1 = arith.constant 0 : i32
    return %arg0, %c0_i32, %c0_i32_0, %arg1 : i32, i32, i32, i32
  }
  func.func @transform_3(%arg0: i32, %arg1: i32, %arg2: i32) -> (i32, i32, i32) {
    %c0_i32 = arith.constant 0 : i32
    %c0_i32_0 = arith.constant 0 : i32
    return %arg0, %c0_i32, %arg1 : i32, i32, i32
  }
  func.func @transform_4(%arg0: i32, %arg1: i32, %arg2: i32) -> (i32, i32, i32) {
    %c0_i32 = arith.constant 0 : i32
    %c0_i32_0 = arith.constant 0 : i32
    return %arg0, %c0_i32, %arg1 : i32, i32, i32
  }
}

module attributes {stable_mosaic.version = 11 : i64} {
  func.func @_bn_relu_nchw_kernel(%arg0: i32, %arg1: i32, %arg2: memref<1x256x256xbf16, #tpu.memory_space<vmem>>, %arg3: memref<1x256xf32, #tpu.memory_space<vmem>>, %arg4: memref<1x256xf32, #tpu.memory_space<vmem>>, %arg5: memref<1x256x256xf32, #tpu.memory_space<vmem>>) attributes {dimension_semantics = [#tpu.dimension_semantics<parallel>, #tpu.dimension_semantics<parallel>], iteration_bounds = array<i64: 2, 1>, scalar_prefetch = 0 : i64, scratch_operands = 0 : i64, tpu.core_type = #tpu.core_type<tc>, window_params = [{transform_indices = @transform_0, window_bounds = array<i64: 1, 256, 256>}, {pipeline_mode = #tpu.pipeline_mode<synchronous>, transform_indices = @transform_1, window_bounds = array<i64: 1, 256>}, {pipeline_mode = #tpu.pipeline_mode<synchronous>, transform_indices = @transform_2, window_bounds = array<i64: 1, 256>}, {transform_indices = @transform_3, window_bounds = array<i64: 1, 256, 256>}]} {
    %c0 = arith.constant 0 : index
    %c0_0 = arith.constant 0 : index
    %c0_1 = arith.constant 0 : index
    %0 = vector.load %arg2[%c0, %c0_0, %c0_1] : memref<1x256x256xbf16, #tpu.memory_space<vmem>>, vector<1x256x256xbf16>
    %1 = vector.shape_cast %0 : vector<1x256x256xbf16> to vector<256x256xbf16>
    %2 = arith.extf %1 : vector<256x256xbf16> to vector<256x256xf32>
    %c0_2 = arith.constant 0 : index
    %c0_3 = arith.constant 0 : index
    %3 = vector.load %arg3[%c0_2, %c0_3] : memref<1x256xf32, #tpu.memory_space<vmem>>, vector<1x256xf32>
    %4 = vector.broadcast %3 : vector<1x256xf32> to vector<256x256xf32>
    %5 = arith.mulf %2, %4 : vector<256x256xf32>
    %c0_4 = arith.constant 0 : index
    %c0_5 = arith.constant 0 : index
    %6 = vector.load %arg4[%c0_4, %c0_5] : memref<1x256xf32, #tpu.memory_space<vmem>>, vector<1x256xf32>
    %7 = vector.broadcast %6 : vector<1x256xf32> to vector<256x256xf32>
    %8 = arith.addf %5, %7 : vector<256x256xf32>
    %cst = arith.constant 0.000000e+00 : f32
    %9 = vector.broadcast %cst : f32 to vector<256x256xf32>
    %10 = arith.maximumf %8, %9 : vector<256x256xf32>
    %11 = tpu.transpose %10, [1, 0] : vector<256x256xf32> -> vector<256x256xf32>
    %c0_6 = arith.constant 0 : index
    %c0_7 = arith.constant 0 : index
    %c0_8 = arith.constant 0 : index
    %12 = vector.load %arg5[%c0_6, %c0_7, %c0_8] : memref<1x256x256xf32, #tpu.memory_space<vmem>>, vector<1x256x256xf32>
    %13 = vector.shape_cast %12 : vector<1x256x256xf32> to vector<256x256xf32>
    %14 = vector.shape_cast %11 : vector<256x256xf32> to vector<1x256x256xf32>
    tpu.vector_store %arg5[%c0_6, %c0_7, %c0_8], %14 {strides = array<i32>} : memref<1x256x256xf32, #tpu.memory_space<vmem>>, vector<1x256x256xf32>,
    return
  }
  func.func @transform_0(%arg0: i32, %arg1: i32) -> (i32, i32, i32) {
    %c0_i32 = arith.constant 0 : i32
    %c0_i32_0 = arith.constant 0 : i32
    return %arg0, %arg1, %c0_i32 : i32, i32, i32
  }
  func.func @transform_1(%arg0: i32, %arg1: i32) -> (i32, i32) {
    %c0_i32 = arith.constant 0 : i32
    %c0_i32_0 = arith.constant 0 : i32
    %c0_i32_1 = arith.constant 0 : i32
    return %c0_i32, %c0_i32_0 : i32, i32
  }
  func.func @transform_2(%arg0: i32, %arg1: i32) -> (i32, i32) {
    %c0_i32 = arith.constant 0 : i32
    %c0_i32_0 = arith.constant 0 : i32
    %c0_i32_1 = arith.constant 0 : i32
    return %c0_i32, %c0_i32_0 : i32, i32
  }
  func.func @transform_3(%arg0: i32, %arg1: i32) -> (i32, i32, i32) {
    %c0_i32 = arith.constant 0 : i32
    %c0_i32_0 = arith.constant 0 : i32
    return %arg0, %c0_i32, %arg1 : i32, i32, i32
  }
}

</mosaic_0001>

<llo_original>
// kernel: aspp_forward.3
$region0: #{aspp_forward.3}
  #allocation0 [shape = 'u32[]', space=smem, size = 0x4, offset = 0x4, fixed_abs, tag = 'smem constant byte address 0x4 - core index']
  #allocation1 [shape = 'u32[144,128]{1,0:T(1,128)}', space=vmem, size = 0x12000, scoped, tag = 'internal scratch']
  %s0 = inlined_call_operand.vmem [shape: bf16[2,256,256], index: 0, kind: input, shape index: {}]
  %s1 = inlined_call_operand.vmem [shape: f32[1,256], index: 1, kind: input, shape index: {}]
  %s2 = inlined_call_operand.vmem [shape: f32[1,256], index: 2, kind: input, shape index: {}]
  %s3 = inlined_call_operand.vmem [shape: f32[2,256,256], index: 3, kind: output, shape index: {}]
  %s4 = sld [smem:[#allocation0]]
  $region45: #{aspp_forward.3} parent=0
    _
  %s6 = ssub.s32 1, %s4
  %s7 = scalar_select 0, %s6, %s4
  loop: start=0, step=1, limit=4
  $region2: #{aspp_forward.3} parent=0 // loop_pre_header
    _
  $region3: #{aspp_forward.3} parent=0 // loop_header
    %s9 = sphi 0, %s13
    %p10 = scmp.ge.s32.totalorder %s9, 4
    %s16 = sphi 0, %s28
    %s17 = sphi 0, %s24
    %s18 = sphi 0, %s16
    %s19 = sphi 0, %s17
    %s20 = sphi 0, %s18
    %s21 = sphi 0, %s19
    %s33 = sphi 0, %s35
    %s36 = sphi 0, %s33
    %s37 = sphi 0, %s36
    %s53 = sphi 0, %s37
    %s57 = sphi 0, %s57
    %s59 = sphi 0, %s57
    %s60 = sphi 0, %s59
    %s74 = sphi 0, %s60
    %s78 = sphi 0, %s78
    %s80 = sphi 0, %s78
    %s81 = sphi 0, %s80
    %s95 = sphi 0, %s81
    %s103 = sphi 0, %s105
    %s106 = sphi 0, %s103
    %s107 = sphi 0, %s106
    %s123 = sphi 0, %s107
  $region4: #{aspp_forward.3} parent=0 // loop_header_branch
    %12 = sbr.rel (%p10) target = $region8
  $region5: #{aspp_forward.3} parent=0 // loop_body
    %s14 = ssub.s32 %s9, 1
    %s15 = ssub.s32 %s9, 2
    %s22 = sadd.s32 1, %s17
    %p23 = scmp.ge.s32.totalorder %s22, 1
    %s24 = scalar_select %p23, 0, %s22
    %s25 = sadd.s32 1, %s16
    %s26 = scalar_select %p23, %s25, %s16
    %p27 = scmp.ge.s32.totalorder %s26, 2
    %s28 = scalar_select %p27, 0, %s26
    %s29 = ssub.s32 %s16, %s28
    %s30 = ssub.s32 %s17, %s24
    %s31 = sor.u32 %s29, %s30
    %p32 = scmp.eq.s32.totalorder %s31, 0
    %s34 = sadd.s32 %s33, 1
    %s35 = scalar_select %p32, %s33, %s34
    %p38 = pneg %p32
    %p39 = scmp.eq.s32.totalorder %s9, 1
    %p40 = por %p38, %p39
    %p41 = scmp.ne.s32.totalorder %s33, %s36
    %p42 = scmp.eq.s32.totalorder %s9, 0
    %p43 = por %p41, %p42
    %p44 = scmp.ne.s32.totalorder %s33, %s36
    %p45 = scmp.eq.s32.totalorder %s14, 1
    %p46 = por %p44, %p45
    %p47 = scmp.ne.s32.totalorder %s36, %s37
    %p48 = scmp.eq.s32.totalorder %s14, 0
    %p49 = por %p47, %p48
    %p50 = scmp.ne.s32.totalorder %s36, %s37
    %p51 = scmp.eq.s32.totalorder %s15, 1
    %p52 = por %p50, %p51
    %p54 = scmp.ne.s32.totalorder %s37, %s53
    %p55 = scmp.eq.s32.totalorder %s15, 0
    %p56 = por %p54, %p55
    %s58 = sadd.s32 %s57, 1
    %p61 = scmp.eq.s32.totalorder %s9, 1
    %p62 = scmp.ne.s32.totalorder %s57, %s59
    %p63 = scmp.eq.s32.totalorder %s9, 0
    %p64 = por %p62, %p63
    %p65 = scmp.ne.s32.totalorder %s57, %s59
    %p66 = scmp.eq.s32.totalorder %s14, 1
    %p67 = por %p65, %p66
    %p68 = scmp.ne.s32.totalorder %s59, %s60
    %p69 = scmp.eq.s32.totalorder %s14, 0
    %p70 = por %p68, %p69
    %p71 = scmp.ne.s32.totalorder %s59, %s60
    %p72 = scmp.eq.s32.totalorder %s15, 1
    %p73 = por %p71, %p72
    %p75 = scmp.ne.s32.totalorder %s60, %s74
    %p76 = scmp.eq.s32.totalorder %s15, 0
    %p77 = por %p75, %p76
    %s79 = sadd.s32 %s78, 1
    %p82 = scmp.eq.s32.totalorder %s9, 1
    %p83 = scmp.ne.s32.totalorder %s78, %s80
    %p84 = scmp.eq.s32.totalorder %s9, 0
    %p85 = por %p83, %p84
    %p86 = scmp.ne.s32.totalorder %s78, %s80
    %p87 = scmp.eq.s32.totalorder %s14, 1
    %p88 = por %p86, %p87
    %p89 = scmp.ne.s32.totalorder %s80, %s81
    %p90 = scmp.eq.s32.totalorder %s14, 0
    %p91 = por %p89, %p90
    %p92 = scmp.ne.s32.totalorder %s80, %s81
    %p93 = scmp.eq.s32.totalorder %s15, 1
    %p94 = por %p92, %p93
    %p96 = scmp.ne.s32.totalorder %s81, %s95
    %p97 = scmp.eq.s32.totalorder %s15, 0
    %p98 = por %p96, %p97
    %s99 = ssub.s32 %s16, %s28
    %s100 = ssub.s32 %s17, %s24
    %s101 = sor.u32 %s99, %s100
    %p102 = scmp.eq.s32.totalorder %s101, 0
    %s104 = sadd.s32 %s103, 1
    %s105 = scalar_select %p102, %s103, %s104
    %p108 = pneg %p102
    %p109 = scmp.eq.s32.totalorder %s9, 1
    %p110 = por %p108, %p109
    %p111 = scmp.ne.s32.totalorder %s103, %s106
    %p112 = scmp.eq.s32.totalorder %s9, 0
    %p113 = por %p111, %p112
    %p114 = scmp.ne.s32.totalorder %s103, %s106
    %p115 = scmp.eq.s32.totalorder %s14, 1
    %p116 = por %p114, %p115
    %p117 = scmp.ne.s32.totalorder %s106, %s107
    %p118 = scmp.eq.s32.totalorder %s14, 0
    %p119 = por %p117, %p118
    %p120 = scmp.ne.s32.totalorder %s106, %s107
    %p121 = scmp.eq.s32.totalorder %s15, 1
    %p122 = por %p120, %p121
    %p124 = scmp.ne.s32.totalorder %s107, %s123
    %p125 = scmp.eq.s32.totalorder %s15, 0
    %p126 = por %p124, %p125
    %p127 = scmp.le.s32.totalorder 1, %s9
    %p128 = scmp.lt.s32.totalorder %s9, 3
    %p129 = pnand %p127, %p128
    %p130 = pneg %p129
    // Predicated region
    $region9: #{aspp_forward.3} parent=5 // pred_check
      _
    $region10: #{aspp_forward.3} parent=5 // pred_check_branch
      %132 = sbr.rel (%p129) target = $region12
    $region11: #{aspp_forward.3} parent=5 // pred_region
      %s133 = ssub.s32 %s9, 1
      // Predicated region
      $region13: #{aspp_forward.3} parent=11 // pred_check
        %p134 = pneg %p70
      $region14: #{aspp_forward.3} parent=11 // pred_check_branch
        %136 = sbr.rel (%p134) target = $region16
      $region15: #{aspp_forward.3} parent=11 // pred_region
        _
      $region16: #{aspp_forward.3} parent=11 // pred_fallthru
        _
      // Predicated region
      $region17: #{aspp_forward.3} parent=11 // pred_check
        %p137 = pneg %p91
      $region18: #{aspp_forward.3} parent=11 // pred_check_branch
        %139 = sbr.rel (%p137) target = $region20
      $region19: #{aspp_forward.3} parent=11 // pred_region
        _
      $region20: #{aspp_forward.3} parent=11 // pred_fallthru
        _
    $region12: #{aspp_forward.3} parent=5 // pred_fallthru
      _
    %p140 = scmp.lt.s32.totalorder %s9, 2
    // Predicated region
    $region21: #{aspp_forward.3} parent=5 // pred_check
      %p141 = pneg %p140
    $region22: #{aspp_forward.3} parent=5 // pred_check_branch
      %143 = sbr.rel (%p141) target = $region24
    $region23: #{aspp_forward.3} parent=5 // pred_region
      // Predicated region
      $region25: #{aspp_forward.3} parent=23 // pred_check
        %p144 = pneg %p43
      $region26: #{aspp_forward.3} parent=23 // pred_check_branch
        %146 = sbr.rel (%p144) target = $region28
      $region27: #{aspp_forward.3} parent=23 // pred_region
        %s147 = smul.u32 32, %s17
        %p148 = scmp.lt.s32.totalorder %s16, 1
        %s149 = scalar_select %p148, %s16, 1
        %p150 = scmp.lt.s32.totalorder %s147, 31
        %s151 = scalar_select %p150, %s147, 31
        %s152 = smul.addr %s151, 2
        %s153 = smul.addr %s149, 64
        %s154 = sadd.s32 %s152, %s153
        %s155 = smul.addr %s154, 4
        %s156 = scalar_lea.vmem %s0, %s155
        %s157 = smul.u32 32, %s17
      $region28: #{aspp_forward.3} parent=23 // pred_fallthru
        _
    $region24: #{aspp_forward.3} parent=5 // pred_fallthru
      _
    %p158 = scmp.le.s32.totalorder 1, %s9
    %p159 = scmp.lt.s32.totalorder %s9, 3
    %p160 = pnand %p158, %p159
    %p161 = pneg %p160
    // Predicated region
    $region29: #{aspp_forward.3} parent=5 // pred_check
      _
    $region30: #{aspp_forward.3} parent=5 // pred_check_branch
      %163 = sbr.rel (%p160) target = $region32
    $region31: #{aspp_forward.3} parent=5 // pred_region
      %s164 = ssub.s32 %s9, 1
      %s165 = smul.u32 32, %s19
      %p166 = scmp.lt.s32.totalorder %s18, 1
      %s167 = scalar_select %p166, %s18, 1
      %p168 = scmp.lt.s32.totalorder %s165, 31
      %s169 = scalar_select %p168, %s165, 31
      %s170 = smul.addr %s169, 2
      %s171 = smul.addr %s167, 64
      %s172 = sadd.s32 %s170, %s171
      %s173 = smul.addr %s172, 4
      %s174 = scalar_lea.vmem %s0, %s173
      %p175 = pneg %p49
      %p176 = pneg %p46
      %p177 = pneg %p70
      %p178 = pneg %p67
      %p179 = pneg %p91
      %p180 = pneg %p88
      %p181 = pneg %p119
      %p182 = pneg %p116
      %s183 = smul.u32 2, %s19
      %p184 = scmp.lt.s32.totalorder %s18, 1
      %s185 = scalar_select %p184, %s18, 1
      %p186 = scmp.lt.s32.totalorder %s183, 1
      %s187 = scalar_select %p186, %s183, 1
      %s188 = smul.addr %s185, 64
      %s189 = sadd.s32 %s187, %s188
      %s190 = smul.addr %s189, 8
      %s191 = scalar_lea.vmem %s3, %s190
      %s192 = smul.u32 32, %s19
      %p193 = scmp.lt.s32.totalorder %s18, 1
      %s194 = scalar_select %p193, %s18, 1
      %p195 = scmp.lt.s32.totalorder %s192, 31
      %s196 = scalar_select %p195, %s192, 31
      %s197 = smul.addr %s196, 2
      %s198 = smul.addr %s194, 64
      %s199 = sadd.s32 %s197, %s198
      %s200 = smul.addr %s199, 4
      %s201 = scalar_lea.vmem %s0, %s200
      %s202 = smul.u32 32, %s19
      %s203 = smul.u32 2, %s19
      %p204 = scmp.lt.s32.totalorder %s18, 1
      %s205 = scalar_select %p204, %s18, 1
      %p206 = scmp.lt.s32.totalorder %s203, 1
      %s207 = scalar_select %p206, %s203, 1
      %s208 = smul.addr %s205, 64
      %s209 = sadd.s32 %s207, %s208
      %s210 = smul.addr %s209, 8
      %s211 = scalar_lea.vmem %s3, %s210
      %s212 = smul.u32 2, %s19
      %v213 = vld [vmem:[%s201] sm:$0xff]
      %v214 = vld [vmem:[%s201 + $0x8] sm:$0xff]
      %v215 = vld [vmem:[%s201 + $0x10] sm:$0xff]
      %v216 = vld [vmem:[%s201 + $0x18] sm:$0xff]
      %v217 = vld [vmem:[%s201 + $0x20] sm:$0xff]
      %v218 = vld [vmem:[%s201 + $0x28] sm:$0xff]
      %v219 = vld [vmem:[%s201 + $0x30] sm:$0xff]
      %v220 = vld [vmem:[%s201 + $0x38] sm:$0xff]
      %v221 = vld [vmem:[%s201 + $0x40] sm:$0xff]
      %v222 = vld [vmem:[%s201 + $0x48] sm:$0xff]
      %v223 = vld [vmem:[%s201 + $0x50] sm:$0xff]
      %v224 = vld [vmem:[%s201 + $0x58] sm:$0xff]
      %v225 = vld [vmem:[%s201 + $0x60] sm:$0xff]
      %v226 = vld [vmem:[%s201 + $0x68] sm:$0xff]
      %v227 = vld [vmem:[%s201 + $0x70] sm:$0xff]
      %v228 = vld [vmem:[%s201 + $0x78] sm:$0xff]
      %v229 = vld [vmem:[%s201 + $0x80] sm:$0xff]
      %v230 = vld [vmem:[%s201 + $0x88] sm:$0xff]
      %v231 = vld [vmem:[%s201 + $0x90] sm:$0xff]
      %v232 = vld [vmem:[%s201 + $0x98] sm:$0xff]
      %v233 = vld [vmem:[%s201 + $0xa0] sm:$0xff]
      %v234 = vld [vmem:[%s201 + $0xa8] sm:$0xff]
      %v235 = vld [vmem:[%s201 + $0xb0] sm:$0xff]
      %v236 = vld [vmem:[%s201 + $0xb8] sm:$0xff]
      %v237 = vld [vmem:[%s201 + $0xc0] sm:$0xff]
      %v238 = vld [vmem:[%s201 + $0xc8] sm:$0xff]
      %v239 = vld [vmem:[%s201 + $0xd0] sm:$0xff]
      %v240 = vld [vmem:[%s201 + $0xd8] sm:$0xff]
      %v241 = vld [vmem:[%s201 + $0xe0] sm:$0xff]
      %v242 = vld [vmem:[%s201 + $0xe8] sm:$0xff]
      %v243 = vld [vmem:[%s201 + $0xf0] sm:$0xff]
      %v244 = vld [vmem:[%s201 + $0xf8] sm:$0xff]
      %v245 = vunpack.c.l.bf16 %v213
      %v246 = vunpack.c.h.bf16 %v213
      %v247 = vunpack.c.l.bf16 %v214
      %v248 = vunpack.c.h.bf16 %v214
      %v249 = vunpack.c.l.bf16 %v215
      %v250 = vunpack.c.h.bf16 %v215
      %v251 = vunpack.c.l.bf16 %v216
      %v252 = vunpack.c.h.bf16 %v216
      %v253 = vunpack.c.l.bf16 %v217
      %v254 = vunpack.c.h.bf16 %v217
      %v255 = vunpack.c.l.bf16 %v218
      %v256 = vunpack.c.h.bf16 %v218
      %v257 = vunpack.c.l.bf16 %v219
      %v258 = vunpack.c.h.bf16 %v219
      %v259 = vunpack.c.l.bf16 %v220
      %v260 = vunpack.c.h.bf16 %v220
      %v261 = vunpack.c.l.bf16 %v221
      %v262 = vunpack.c.h.bf16 %v221
      %v263 = vunpack.c.l.bf16 %v222
      %v264 = vunpack.c.h.bf16 %v222
      %v265 = vunpack.c.l.bf16 %v223
      %v266 = vunpack.c.h.bf16 %v223
      %v267 = vunpack.c.l.bf16 %v224
      %v268 = vunpack.c.h.bf16 %v224
      %v269 = vunpack.c.l.bf16 %v225
      %v270 = vunpack.c.h.bf16 %v225
      %v271 = vunpack.c.l.bf16 %v226
      %v272 = vunpack.c.h.bf16 %v226
      %v273 = vunpack.c.l.bf16 %v227
      %v274 = vunpack.c.h.bf16 %v227
      %v275 = vunpack.c.l.bf16 %v228
      %v276 = vunpack.c.h.bf16 %v228
      %v277 = vunpack.c.l.bf16 %v229
      %v278 = vunpack.c.h.bf16 %v229
      %v279 = vunpack.c.l.bf16 %v230
      %v280 = vunpack.c.h.bf16 %v230
      %v281 = vunpack.c.l.bf16 %v231
      %v282 = vunpack.c.h.bf16 %v231
      %v283 = vunpack.c.l.bf16 %v232
      %v284 = vunpack.c.h.bf16 %v232
      %v285 = vunpack.c.l.bf16 %v233
      %v286 = vunpack.c.h.bf16 %v233
      %v287 = vunpack.c.l.bf16 %v234
      %v288 = vunpack.c.h.bf16 %v234
      %v289 = vunpack.c.l.bf16 %v235
      %v290 = vunpack.c.h.bf16 %v235
      %v291 = vunpack.c.l.bf16 %v236
      %v292 = vunpack.c.h.bf16 %v236
      %v293 = vunpack.c.l.bf16 %v237
      %v294 = vunpack.c.h.bf16 %v237
      %v295 = vunpack.c.l.bf16 %v238
      %v296 = vunpack.c.h.bf16 %v238
      %v297 = vunpack.c.l.bf16 %v239
      %v298 = vunpack.c.h.bf16 %v239
      %v299 = vunpack.c.l.bf16 %v240
      %v300 = vunpack.c.h.bf16 %v240
      %v301 = vunpack.c.l.bf16 %v241
      %v302 = vunpack.c.h.bf16 %v241
      %v303 = vunpack.c.l.bf16 %v242
      %v304 = vunpack.c.h.bf16 %v242
      %v305 = vunpack.c.l.bf16 %v243
      %v306 = vunpack.c.h.bf16 %v243
      %v307 = vunpack.c.l.bf16 %v244
      %v308 = vunpack.c.h.bf16 %v244
      %v309 = vld [vmem:[%s1] sm:$0x3]
      %v311 = vlaneseq
      %v312 = vshrl.u32 %v311, 7
      %v313 = vsub.s32 0, %v312
      %v314 = vrot.slane %v309, %v313
      %v315 = vlaneseq
      %v316 = vshrl.u32 %v315, 7
      %v317 = vsub.s32 1, %v316
      %v318 = vrot.slane %v309, %v317
      %v321 = vmul.f32 %v245, %v314
      %v322 = vmul.f32 %v246, %v318
      %v323 = vmul.f32 %v247, %v314
      %v324 = vmul.f32 %v248, %v318
      %v325 = vmul.f32 %v249, %v314
      %v326 = vmul.f32 %v250, %v318
      %v327 = vmul.f32 %v251, %v314
      %v328 = vmul.f32 %v252, %v318
      %v329 = vmul.f32 %v253, %v314
      %v330 = vmul.f32 %v254, %v318
      %v331 = vmul.f32 %v255, %v314
      %v332 = vmul.f32 %v256, %v318
      %v333 = vmul.f32 %v257, %v314
      %v334 = vmul.f32 %v258, %v318
      %v335 = vmul.f32 %v259, %v314
      %v336 = vmul.f32 %v260, %v318
      %v337 = vmul.f32 %v261, %v314
      %v338 = vmul.f32 %v262, %v318
      %v339 = vmul.f32 %v263, %v314
      %v340 = vmul.f32 %v264, %v318
      %v341 = vmul.f32 %v265, %v314
      %v342 = vmul.f32 %v266, %v318
      %v343 = vmul.f32 %v267, %v314
      %v344 = vmul.f32 %v268, %v318
      %v345 = vmul.f32 %v269, %v314
      %v346 = vmul.f32 %v270, %v318
      %v347 = vmul.f32 %v271, %v314
      %v348 = vmul.f32 %v272, %v318
      %v349 = vmul.f32 %v273, %v314
      %v350 = vmul.f32 %v274, %v318
      %v351 = vmul.f32 %v275, %v314
      %v352 = vmul.f32 %v276, %v318
      %v353 = vmul.f32 %v277, %v314
      %v354 = vmul.f32 %v278, %v318
      %v355 = vmul.f32 %v279, %v314
      %v356 = vmul.f32 %v280, %v318
      %v357 = vmul.f32 %v281, %v314
      %v358 = vmul.f32 %v282, %v318
      %v359 = vmul.f32 %v283, %v314
      %v360 = vmul.f32 %v284, %v318
      %v361 = vmul.f32 %v285, %v314
      %v362 = vmul.f32 %v286, %v318
      %v363 = vmul.f32 %v287, %v314
      %v364 = vmul.f32 %v288, %v318
      %v365 = vmul.f32 %v289, %v314
      %v366 = vmul.f32 %v290, %v318
      %v367 = vmul.f32 %v291, %v314
      %v368 = vmul.f32 %v292, %v318
      %v369 = vmul.f32 %v293, %v314
      %v370 = vmul.f32 %v294, %v318
      %v371 = vmul.f32 %v295, %v314
      %v372 = vmul.f32 %v296, %v318
      %v373 = vmul.f32 %v297, %v314
      %v374 = vmul.f32 %v298, %v318
      %v375 = vmul.f32 %v299, %v314
      %v376 = vmul.f32 %v300, %v318
      %v377 = vmul.f32 %v301, %v314
      %v378 = vmul.f32 %v302, %v318
      %v379 = vmul.f32 %v303, %v314
      %v380 = vmul.f32 %v304, %v318
      %v381 = vmul.f32 %v305, %v314
      %v382 = vmul.f32 %v306, %v318
      %v383 = vmul.f32 %v307, %v314
      %v384 = vmul.f32 %v308, %v318
      %v385 = vld [vmem:[%s2] sm:$0x3]
      %v387 = vlaneseq
      %v388 = vshrl.u32 %v387, 7
      %v389 = vsub.s32 0, %v388
      %v390 = vrot.slane %v385, %v389
      %v391 = vlaneseq
      %v392 = vshrl.u32 %v391, 7
      %v393 = vsub.s32 1, %v392
      %v394 = vrot.slane %v385, %v393
      %v397 = vadd.f32 %v321, %v390
      %v398 = vadd.f32 %v322, %v394
      %v399 = vadd.f32 %v323, %v390
      %v400 = vadd.f32 %v324, %v394
      %v401 = vadd.f32 %v325, %v390
      %v402 = vadd.f32 %v326, %v394
      %v403 = vadd.f32 %v327, %v390
      %v404 = vadd.f32 %v328, %v394
      %v405 = vadd.f32 %v329, %v390
      %v406 = vadd.f32 %v330, %v394
      %v407 = vadd.f32 %v331, %v390
      %v408 = vadd.f32 %v332, %v394
      %v409 = vadd.f32 %v333, %v390
      %v410 = vadd.f32 %v334, %v394
      %v411 = vadd.f32 %v335, %v390
      %v412 = vadd.f32 %v336, %v394
      %v413 = vadd.f32 %v337, %v390
      %v414 = vadd.f32 %v338, %v394
      %v415 = vadd.f32 %v339, %v390
      %v416 = vadd.f32 %v340, %v394
      %v417 = vadd.f32 %v341, %v390
      %v418 = vadd.f32 %v342, %v394
      %v419 = vadd.f32 %v343, %v390
      %v420 = vadd.f32 %v344, %v394
      %v421 = vadd.f32 %v345, %v390
      %v422 = vadd.f32 %v346, %v394
      %v423 = vadd.f32 %v347, %v390
      %v424 = vadd.f32 %v348, %v394
      %v425 = vadd.f32 %v349, %v390
      %v426 = vadd.f32 %v350, %v394
      %v427 = vadd.f32 %v351, %v390
      %v428 = vadd.f32 %v352, %v394
      %v429 = vadd.f32 %v353, %v390
      %v430 = vadd.f32 %v354, %v394
      %v431 = vadd.f32 %v355, %v390
      %v432 = vadd.f32 %v356, %v394
      %v433 = vadd.f32 %v357, %v390
      %v434 = vadd.f32 %v358, %v394
      %v435 = vadd.f32 %v359, %v390
      %v436 = vadd.f32 %v360, %v394
      %v437 = vadd.f32 %v361, %v390
      %v438 = vadd.f32 %v362, %v394
      %v439 = vadd.f32 %v363, %v390
      %v440 = vadd.f32 %v364, %v394
      %v441 = vadd.f32 %v365, %v390
      %v442 = vadd.f32 %v366, %v394
      %v443 = vadd.f32 %v367, %v390
      %v444 = vadd.f32 %v368, %v394
      %v445 = vadd.f32 %v369, %v390
      %v446 = vadd.f32 %v370, %v394
      %v447 = vadd.f32 %v371, %v390
      %v448 = vadd.f32 %v372, %v394
      %v449 = vadd.f32 %v373, %v390
      %v450 = vadd.f32 %v374, %v394
      %v451 = vadd.f32 %v375, %v390
      %v452 = vadd.f32 %v376, %v394
      %v453 = vadd.f32 %v377, %v390
      %v454 = vadd.f32 %v378, %v394
      %v455 = vadd.f32 %v379, %v390
      %v456 = vadd.f32 %v380, %v394
      %v457 = vadd.f32 %v381, %v390
      %v458 = vadd.f32 %v382, %v394
      %v459 = vadd.f32 %v383, %v390
      %v460 = vadd.f32 %v384, %v394
      %v461 = vmax.f32 %v397, 0.0
      %v462 = vmax.f32 %v398, 0.0
      %v463 = vmax.f32 %v399, 0.0
      %v464 = vmax.f32 %v400, 0.0
      %v465 = vmax.f32 %v401, 0.0
      %v466 = vmax.f32 %v402, 0.0
      %v467 = vmax.f32 %v403, 0.0
      %v468 = vmax.f32 %v404, 0.0
      %v469 = vmax.f32 %v405, 0.0
      %v470 = vmax.f32 %v406, 0.0
      %v471 = vmax.f32 %v407, 0.0
      %v472 = vmax.f32 %v408, 0.0
      %v473 = vmax.f32 %v409, 0.0
      %v474 = vmax.f32 %v410, 0.0
      %v475 = vmax.f32 %v411, 0.0
      %v476 = vmax.f32 %v412, 0.0
      %v477 = vmax.f32 %v413, 0.0
      %v478 = vmax.f32 %v414, 0.0
      %v479 = vmax.f32 %v415, 0.0
      %v480 = vmax.f32 %v416, 0.0
      %v481 = vmax.f32 %v417, 0.0
      %v482 = vmax.f32 %v418, 0.0
      %v483 = vmax.f32 %v419, 0.0
      %v484 = vmax.f32 %v420, 0.0
      %v485 = vmax.f32 %v421, 0.0
      %v486 = vmax.f32 %v422, 0.0
      %v487 = vmax.f32 %v423, 0.0
      %v488 = vmax.f32 %v424, 0.0
      %v489 = vmax.f32 %v425, 0.0
      %v490 = vmax.f32 %v426, 0.0
      %v491 = vmax.f32 %v427, 0.0
      %v492 = vmax.f32 %v428, 0.0
      %v493 = vmax.f32 %v429, 0.0
      %v494 = vmax.f32 %v430, 0.0
      %v495 = vmax.f32 %v431, 0.0
      %v496 = vmax.f32 %v432, 0.0
      %v497 = vmax.f32 %v433, 0.0
      %v498 = vmax.f32 %v434, 0.0
      %v499 = vmax.f32 %v435, 0.0
      %v500 = vmax.f32 %v436, 0.0
      %v501 = vmax.f32 %v437, 0.0
      %v502 = vmax.f32 %v438, 0.0
      %v503 = vmax.f32 %v439, 0.0
      %v504 = vmax.f32 %v440, 0.0
      %v505 = vmax.f32 %v441, 0.0
      %v506 = vmax.f32 %v442, 0.0
      %v507 = vmax.f32 %v443, 0.0
      %v508 = vmax.f32 %v444, 0.0
      %v509 = vmax.f32 %v445, 0.0
      %v510 = vmax.f32 %v446, 0.0
      %v511 = vmax.f32 %v447, 0.0
      %v512 = vmax.f32 %v448, 0.0
      %v513 = vmax.f32 %v449, 0.0
      %v514 = vmax.f32 %v450, 0.0
      %v515 = vmax.f32 %v451, 0.0
      %v516 = vmax.f32 %v452, 0.0
      %v517 = vmax.f32 %v453, 0.0
      %v518 = vmax.f32 %v454, 0.0
      %v519 = vmax.f32 %v455, 0.0
      %v520 = vmax.f32 %v456, 0.0
      %v521 = vmax.f32 %v457, 0.0
      %v522 = vmax.f32 %v458, 0.0
      %v523 = vmax.f32 %v459, 0.0
      %v524 = vmax.f32 %v460, 0.0
      %525 = vxpose.xlu0.b32.start [1/16] %v461, 128
      %526 = vxpose.xlu0.b32.cont [2/16] %v463, 128
      %527 = vxpose.xlu0.b32.cont [3/16] %v465, 128
      %528 = vxpose.xlu0.b32.cont [4/16] %v467, 128
      %529 = vxpose.xlu0.b32.cont [5/16] %v469, 128
      %530 = vxpose.xlu0.b32.cont [6/16] %v471, 128
      %531 = vxpose.xlu0.b32.cont [7/16] %v473, 128
      %532 = vxpose.xlu0.b32.cont [8/16] %v475, 128
      %533 = vxpose.xlu0.b32.cont [9/16] %v477, 128
      %534 = vxpose.xlu0.b32.cont [10/16] %v479, 128
      %535 = vxpose.xlu0.b32.cont [11/16] %v481, 128
      %536 = vxpose.xlu0.b32.cont [12/16] %v483, 128
      %537 = vxpose.xlu0.b32.cont [13/16] %v485, 128
      %538 = vxpose.xlu0.b32.cont [14/16] %v487, 128
      %539 = vxpose.xlu0.b32.cont [15/16] %v489, 128
      %540 = vxpose.xlu0.b32.end [16/16] %v491, 128
      %v541 = vpop.trf.xlu0
      %v542 = vpop.trf.xlu0
      %v543 = vpop.trf.xlu0
      %v544 = vpop.trf.xlu0
      %v545 = vpop.trf.xlu0
      %v546 = vpop.trf.xlu0
      %v547 = vpop.trf.xlu0
      %v548 = vpop.trf.xlu0
      %v549 = vpop.trf.xlu0
      %v550 = vpop.trf.xlu0
      %v551 = vpop.trf.xlu0
      %v552 = vpop.trf.xlu0
      %v553 = vpop.trf.xlu0
      %v554 = vpop.trf.xlu0
      %v555 = vpop.trf.xlu0
      %v556 = vpop.trf.xlu0
      %557 = vxpose.xlu0.b32.start [1/16] %v462, 128
      %558 = vxpose.xlu0.b32.cont [2/16] %v464, 128
      %559 = vxpose.xlu0.b32.cont [3/16] %v466, 128
      %560 = vxpose.xlu0.b32.cont [4/16] %v468, 128
      %561 = vxpose.xlu0.b32.cont [5/16] %v470, 128
      %562 = vxpose.xlu0.b32.cont [6/16] %v472, 128
      %563 = vxpose.xlu0.b32.cont [7/16] %v474, 128
      %564 = vxpose.xlu0.b32.cont [8/16] %v476, 128
      %565 = vxpose.xlu0.b32.cont [9/16] %v478, 128
      %566 = vxpose.xlu0.b32.cont [10/16] %v480, 128
      %567 = vxpose.xlu0.b32.cont [11/16] %v482, 128
      %568 = vxpose.xlu0.b32.cont [12/16] %v484, 128
      %569 = vxpose.xlu0.b32.cont [13/16] %v486, 128
      %570 = vxpose.xlu0.b32.cont [14/16] %v488, 128
      %571 = vxpose.xlu0.b32.cont [15/16] %v490, 128
      %572 = vxpose.xlu0.b32.end [16/16] %v492, 128
      %v573 = vpop.trf.xlu0
      %v574 = vpop.trf.xlu0
      %v575 = vpop.trf.xlu0
      %v576 = vpop.trf.xlu0
      %v577 = vpop.trf.xlu0
      %v578 = vpop.trf.xlu0
      %v579 = vpop.trf.xlu0
      %v580 = vpop.trf.xlu0
      %v581 = vpop.trf.xlu0
      %v582 = vpop.trf.xlu0
      %v583 = vpop.trf.xlu0
      %v584 = vpop.trf.xlu0
      %v585 = vpop.trf.xlu0
      %v586 = vpop.trf.xlu0
      %v587 = vpop.trf.xlu0
      %v588 = vpop.trf.xlu0
      %589 = vxpose.xlu0.b32.start [1/16] %v493, 128
      %590 = vxpose.xlu0.b32.cont [2/16] %v495, 128
      %591 = vxpose.xlu0.b32.cont [3/16] %v497, 128
      %592 = vxpose.xlu0.b32.cont [4/16] %v499, 128
      %593 = vxpose.xlu0.b32.cont [5/16] %v501, 128
      %594 = vxpose.xlu0.b32.cont [6/16] %v503, 128
      %595 = vxpose.xlu0.b32.cont [7/16] %v505, 128
      %596 = vxpose.xlu0.b32.cont [8/16] %v507, 128
      %597 = vxpose.xlu0.b32.cont [9/16] %v509, 128
      %598 = vxpose.xlu0.b32.cont [10/16] %v511, 128
      %599 = vxpose.xlu0.b32.cont [11/16] %v513, 128
      %600 = vxpose.xlu0.b32.cont [12/16] %v515, 128
      %601 = vxpose.xlu0.b32.cont [13/16] %v517, 128
      %602 = vxpose.xlu0.b32.cont [14/16] %v519, 128
      %603 = vxpose.xlu0.b32.cont [15/16] %v521, 128
      %604 = vxpose.xlu0.b32.end [16/16] %v523, 128
      %v605 = vpop.trf.xlu0
      %v606 = vpop.trf.xlu0
      %v607 = vpop.trf.xlu0
      %v608 = vpop.trf.xlu0
      %v609 = vpop.trf.xlu0
      %v610 = vpop.trf.xlu0
      %v611 = vpop.trf.xlu0
      %v612 = vpop.trf.xlu0
      %v613 = vpop.trf.xlu0
      %v614 = vpop.trf.xlu0
      %v615 = vpop.trf.xlu0
      %v616 = vpop.trf.xlu0
      %v617 = vpop.trf.xlu0
      %v618 = vpop.trf.xlu0
      %v619 = vpop.trf.xlu0
      %v620 = vpop.trf.xlu0
      %621 = vxpose.xlu0.b32.start [1/16] %v494, 128
      %622 = vxpose.xlu0.b32.cont [2/16] %v496, 128
      %623 = vxpose.xlu0.b32.cont [3/16] %v498, 128
      %624 = vxpose.xlu0.b32.cont [4/16] %v500, 128
      %625 = vxpose.xlu0.b32.cont [5/16] %v502, 128
      %626 = vxpose.xlu0.b32.cont [6/16] %v504, 128
      %627 = vxpose.xlu0.b32.cont [7/16] %v506, 128
      %628 = vxpose.xlu0.b32.cont [8/16] %v508, 128
      %629 = vxpose.xlu0.b32.cont [9/16] %v510, 128
      %630 = vxpose.xlu0.b32.cont [10/16] %v512, 128
      %631 = vxpose.xlu0.b32.cont [11/16] %v514, 128
      %632 = vxpose.xlu0.b32.cont [12/16] %v516, 128
      %633 = vxpose.xlu0.b32.cont [13/16] %v518, 128
      %634 = vxpose.xlu0.b32.cont [14/16] %v520, 128
      %635 = vxpose.xlu0.b32.cont [15/16] %v522, 128
      %636 = vxpose.xlu0.b32.end [16/16] %v524, 128
      %v637 = vpop.trf.xlu0
      %v638 = vpop.trf.xlu0
      %v639 = vpop.trf.xlu0
      %v640 = vpop.trf.xlu0
      %v641 = vpop.trf.xlu0
      %v642 = vpop.trf.xlu0
      %v643 = vpop.trf.xlu0
      %v644 = vpop.trf.xlu0
      %v645 = vpop.trf.xlu0
      %v646 = vpop.trf.xlu0
      %v647 = vpop.trf.xlu0
      %v648 = vpop.trf.xlu0
      %v649 = vpop.trf.xlu0
      %v650 = vpop.trf.xlu0
      %v651 = vpop.trf.xlu0
      %v652 = vpop.trf.xlu0
      %653 = vst [vmem:[%s211] sm:$0xff] %v541
      %654 = vst [vmem:[%s211 + $0x8] sm:$0xff] %v605
      %655 = vst [vmem:[%s211 + $0x10] sm:$0xff] %v542
      %656 = vst [vmem:[%s211 + $0x18] sm:$0xff] %v606
      %657 = vst [vmem:[%s211 + $0x20] sm:$0xff] %v543
      %658 = vst [vmem:[%s211 + $0x28] sm:$0xff] %v607
      %659 = vst [vmem:[%s211 + $0x30] sm:$0xff] %v544
      %660 = vst [vmem:[%s211 + $0x38] sm:$0xff] %v608
      %661 = vst [vmem:[%s211 + $0x40] sm:$0xff] %v545
      %662 = vst [vmem:[%s211 + $0x48] sm:$0xff] %v609
      %663 = vst [vmem:[%s211 + $0x50] sm:$0xff] %v546
      %664 = vst [vmem:[%s211 + $0x58] sm:$0xff] %v610
      %665 = vst [vmem:[%s211 + $0x60] sm:$0xff] %v547
      %666 = vst [vmem:[%s211 + $0x68] sm:$0xff] %v611
      %667 = vst [vmem:[%s211 + $0x70] sm:$0xff] %v548
      %668 = vst [vmem:[%s211 + $0x78] sm:$0xff] %v612
      %669 = vst [vmem:[%s211 + $0x80] sm:$0xff] %v549
      %670 = vst [vmem:[%s211 + $0x88] sm:$0xff] %v613
      %671 = vst [vmem:[%s211 + $0x90] sm:$0xff] %v550
      %672 = vst [vmem:[%s211 + $0x98] sm:$0xff] %v614
      %673 = vst [vmem:[%s211 + $0xa0] sm:$0xff] %v551
      %674 = vst [vmem:[%s211 + $0xa8] sm:$0xff] %v615
      %675 = vst [vmem:[%s211 + $0xb0] sm:$0xff] %v552
      %676 = vst [vmem:[%s211 + $0xb8] sm:$0xff] %v616
      %677 = vst [vmem:[%s211 + $0xc0] sm:$0xff] %v553
      %678 = vst [vmem:[%s211 + $0xc8] sm:$0xff] %v617
      %679 = vst [vmem:[%s211 + $0xd0] sm:$0xff] %v554
      %680 = vst [vmem:[%s211 + $0xd8] sm:$0xff] %v618
      %681 = vst [vmem:[%s211 + $0xe0] sm:$0xff] %v555
      %682 = vst [vmem:[%s211 + $0xe8] sm:$0xff] %v619
      %683 = vst [vmem:[%s211 + $0xf0] sm:$0xff] %v556
      %684 = vst [vmem:[%s211 + $0xf8] sm:$0xff] %v620
      %685 = vst [vmem:[%s211 + $0x100] sm:$0xff] %v573
      %686 = vst [vmem:[%s211 + $0x108] sm:$0xff] %v637
      %687 = vst [vmem:[%s211 + $0x110] sm:$0xff] %v574
      %688 = vst [vmem:[%s211 + $0x118] sm:$0xff] %v638
      %689 = vst [vmem:[%s211 + $0x120] sm:$0xff] %v575
      %690 = vst [vmem:[%s211 + $0x128] sm:$0xff] %v639
      %691 = vst [vmem:[%s211 + $0x130] sm:$0xff] %v576
      %692 = vst [vmem:[%s211 + $0x138] sm:$0xff] %v640
      %693 = vst [vmem:[%s211 + $0x140] sm:$0xff] %v577
      %694 = vst [vmem:[%s211 + $0x148] sm:$0xff] %v641
      %695 = vst [vmem:[%s211 + $0x150] sm:$0xff] %v578
      %696 = vst [vmem:[%s211 + $0x158] sm:$0xff] %v642
      %697 = vst [vmem:[%s211 + $0x160] sm:$0xff] %v579
      %698 = vst [vmem:[%s211 + $0x168] sm:$0xff] %v643
      %699 = vst [vmem:[%s211 + $0x170] sm:$0xff] %v580
      %700 = vst [vmem:[%s211 + $0x178] sm:$0xff] %v644
      %701 = vst [vmem:[%s211 + $0x180] sm:$0xff] %v581
      %702 = vst [vmem:[%s211 + $0x188] sm:$0xff] %v645
      %703 = vst [vmem:[%s211 + $0x190] sm:$0xff] %v582
      %704 = vst [vmem:[%s211 + $0x198] sm:$0xff] %v646
      %705 = vst [vmem:[%s211 + $0x1a0] sm:$0xff] %v583
      %706 = vst [vmem:[%s211 + $0x1a8] sm:$0xff] %v647
      %707 = vst [vmem:[%s211 + $0x1b0] sm:$0xff] %v584
      %708 = vst [vmem:[%s211 + $0x1b8] sm:$0xff] %v648
      %709 = vst [vmem:[%s211 + $0x1c0] sm:$0xff] %v585
      %710 = vst [vmem:[%s211 + $0x1c8] sm:$0xff] %v649
      %711 = vst [vmem:[%s211 + $0x1d0] sm:$0xff] %v586
      %712 = vst [vmem:[%s211 + $0x1d8] sm:$0xff] %v650
      %713 = vst [vmem:[%s211 + $0x1e0] sm:$0xff] %v587
      %714 = vst [vmem:[%s211 + $0x1e8] sm:$0xff] %v651
      %715 = vst [vmem:[%s211 + $0x1f0] sm:$0xff] %v588
      %716 = vst [vmem:[%s211 + $0x1f8] sm:$0xff] %v652
      %s717 = smul.u32 2, %s19
      %p718 = scmp.lt.s32.totalorder %s18, 1
      %s719 = scalar_select %p718, %s18, 1
      %p720 = scmp.lt.s32.totalorder %s717, 1
      %s721 = scalar_select %p720, %s717, 1
      %s722 = smul.addr %s719, 64
      %s723 = sadd.s32 %s721, %s722
      %s724 = smul.addr %s723, 8
      %s725 = scalar_lea.vmem %s3, %s724
      // Predicated region
      $region33: #{aspp_forward.3} parent=31 // pred_check
        %p726 = pneg %p116
      $region34: #{aspp_forward.3} parent=31 // pred_check_branch
        %728 = sbr.rel (%p726) target = $region36
      $region35: #{aspp_forward.3} parent=31 // pred_region
        %s729 = smul.u32 2, %s19
      $region36: #{aspp_forward.3} parent=31 // pred_fallthru
        _
    $region32: #{aspp_forward.3} parent=5 // pred_fallthru
      _
    %p730 = scmp.le.s32.totalorder 2, %s9
    // Predicated region
    $region37: #{aspp_forward.3} parent=5 // pred_check
      %p731 = pneg %p730
    $region38: #{aspp_forward.3} parent=5 // pred_check_branch
      %733 = sbr.rel (%p731) target = $region40
    $region39: #{aspp_forward.3} parent=5 // pred_region
      %s734 = ssub.s32 %s9, 2
      // Predicated region
      $region41: #{aspp_forward.3} parent=39 // pred_check
        %p735 = pneg %p122
      $region42: #{aspp_forward.3} parent=39 // pred_check_branch
        %737 = sbr.rel (%p735) target = $region44
      $region43: #{aspp_forward.3} parent=39 // pred_region
        %s738 = smul.u32 2, %s21
        %p739 = scmp.lt.s32.totalorder %s20, 1
        %s740 = scalar_select %p739, %s20, 1
        %p741 = scmp.lt.s32.totalorder %s738, 1
        %s742 = scalar_select %p741, %s738, 1
        %s743 = smul.addr %s740, 64
        %s744 = sadd.s32 %s742, %s743
        %s745 = smul.addr %s744, 8
        %s746 = scalar_lea.vmem %s3, %s745
      $region44: #{aspp_forward.3} parent=39 // pred_fallthru
        _
    $region40: #{aspp_forward.3} parent=5 // pred_fallthru
      _
  $region6: #{aspp_forward.3} parent=0 // loop_footer
    %s13 = sadd.s32 1, %s9
  $region7: #{aspp_forward.3} parent=0 // loop_footer_branch
    %8 = sbr.rel target = $region3
  $region8: #{aspp_forward.3} parent=0 // loop_exit
    _

// kernel: aspp_forward.2
$region0: #{aspp_forward.2}
  #allocation0 [shape = 'u32[]', space=smem, size = 0x4, offset = 0x4, fixed_abs, tag = 'smem constant byte address 0x4 - core index']
  #allocation1 [shape = 'u32[144,128]{1,0:T(1,128)}', space=vmem, size = 0x12000, scoped, tag = 'internal scratch']
  #allocation2 [shape = 'f32[256,256]{1,0:T(8,128)}', space=vmem, size = 0x40000, scoped, tag = 'scratch operand']
  #allocation3 [shape = 'bf16[256,1152]{1,0:T(16,128)(2,1)}', space=vmem, size = 0x90000, scoped, tag = 'scratch operand']
  %s0 = inlined_call_operand.vmem [shape: bf16[2,20,20,128], index: 0, kind: input, shape index: {}]
  %s1 = inlined_call_operand.vmem [shape: bf16[1,1152,256], index: 1, kind: input, shape index: {}]
  %s2 = inlined_call_operand.vmem [shape: bf16[2,16,16,256], index: 2, kind: output, shape index: {0}]
  %s3 = inlined_call_operand.vmem [shape: f32[2,1,256], index: 3, kind: output, shape index: {1}]
  %s4 = inlined_call_operand.vmem [shape: f32[2,1,256], index: 4, kind: output, shape index: {2}]
  %5 = xla_tuple %s2, %s3, %s4
  %s6 = sld [smem:[#allocation0]]
  $region65: #{aspp_forward.2} parent=0
    _
  %s8 = ssub.s32 1, %s6
  %s9 = scalar_select 0, %s8, %s6
  loop: start=0, step=1, limit=4
  $region2: #{aspp_forward.2} parent=0 // loop_pre_header
    _
  $region3: #{aspp_forward.2} parent=0 // loop_header
    %s11 = sphi 0, %s15
    %p12 = scmp.ge.s32.totalorder %s11, 4
    %s18 = sphi 0, %s37
    %s19 = sphi 0, %s33
    %s20 = sphi 0, %s29
    %s21 = sphi 0, %s18
    %s22 = sphi 0, %s19
    %s23 = sphi 0, %s20
    %s24 = sphi 0, %s21
    %s25 = sphi 0, %s22
    %s26 = sphi 0, %s23
    %s42 = sphi 0, %s44
    %s45 = sphi 0, %s42
    %s46 = sphi 0, %s45
    %s62 = sphi 0, %s46
    %s70 = sphi 0, %s72
    %s73 = sphi 0, %s70
    %s74 = sphi 0, %s73
    %s90 = sphi 0, %s74
    %s98 = sphi 0, %s100
    %s101 = sphi 0, %s98
    %s102 = sphi 0, %s101
    %s118 = sphi 0, %s102
    %s126 = sphi 0, %s128
    %s129 = sphi 0, %s126
    %s130 = sphi 0, %s129
    %s146 = sphi 0, %s130
    %s154 = sphi 0, %s156
    %s157 = sphi 0, %s154
    %s158 = sphi 0, %s157
    %s174 = sphi 0, %s158
  $region4: #{aspp_forward.2} parent=0 // loop_header_branch
    %14 = sbr.rel (%p12) target = $region8
  $region5: #{aspp_forward.2} parent=0 // loop_body
    %s16 = ssub.s32 %s11, 1
    %s17 = ssub.s32 %s11, 2
    %s27 = sadd.s32 1, %s20
    %p28 = scmp.ge.s32.totalorder %s27, 1
    %s29 = scalar_select %p28, 0, %s27
    %s30 = sadd.s32 1, %s19
    %s31 = scalar_select %p28, %s30, %s19
    %p32 = scmp.ge.s32.totalorder %s31, 1
    %s33 = scalar_select %p32, 0, %s31
    %s34 = sadd.s32 1, %s18
    %s35 = scalar_select %p32, %s34, %s18
    %p36 = scmp.ge.s32.totalorder %s35, 2
    %s37 = scalar_select %p36, 0, %s35
    %s38 = ssub.s32 %s18, %s37
    %s39 = ssub.s32 %s20, %s29
    %s40 = sor.u32 %s38, %s39
    %p41 = scmp.eq.s32.totalorder %s40, 0
    %s43 = sadd.s32 %s42, 1
    %s44 = scalar_select %p41, %s42, %s43
    %p47 = pneg %p41
    %p48 = scmp.eq.s32.totalorder %s11, 1
    %p49 = por %p47, %p48
    %p50 = scmp.ne.s32.totalorder %s42, %s45
    %p51 = scmp.eq.s32.totalorder %s11, 0
    %p52 = por %p50, %p51
    %p53 = scmp.ne.s32.totalorder %s42, %s45
    %p54 = scmp.eq.s32.totalorder %s16, 1
    %p55 = por %p53, %p54
    %p56 = scmp.ne.s32.totalorder %s45, %s46
    %p57 = scmp.eq.s32.totalorder %s16, 0
    %p58 = por %p56, %p57
    %p59 = scmp.ne.s32.totalorder %s45, %s46
    %p60 = scmp.eq.s32.totalorder %s17, 1
    %p61 = por %p59, %p60
    %p63 = scmp.ne.s32.totalorder %s46, %s62
    %p64 = scmp.eq.s32.totalorder %s17, 0
    %p65 = por %p63, %p64
    %s66 = ssub.s32 %s20, %s29
    %s67 = ssub.s32 %s19, %s33
    %s68 = sor.u32 %s66, %s67
    %p69 = scmp.eq.s32.totalorder %s68, 0
    %s71 = sadd.s32 %s70, 1
    %s72 = scalar_select %p69, %s70, %s71
    %p75 = pneg %p69
    %p76 = scmp.eq.s32.totalorder %s11, 1
    %p77 = por %p75, %p76
    %p78 = scmp.ne.s32.totalorder %s70, %s73
    %p79 = scmp.eq.s32.totalorder %s11, 0
    %p80 = por %p78, %p79
    %p81 = scmp.ne.s32.totalorder %s70, %s73
    %p82 = scmp.eq.s32.totalorder %s16, 1
    %p83 = por %p81, %p82
    %p84 = scmp.ne.s32.totalorder %s73, %s74
    %p85 = scmp.eq.s32.totalorder %s16, 0
    %p86 = por %p84, %p85
    %p87 = scmp.ne.s32.totalorder %s73, %s74
    %p88 = scmp.eq.s32.totalorder %s17, 1
    %p89 = por %p87, %p88
    %p91 = scmp.ne.s32.totalorder %s74, %s90
    %p92 = scmp.eq.s32.totalorder %s17, 0
    %p93 = por %p91, %p92
    %s94 = ssub.s32 %s18, %s37
    %s95 = ssub.s32 %s19, %s33
    %s96 = sor.u32 %s94, %s95
    %p97 = scmp.eq.s32.totalorder %s96, 0
    %s99 = sadd.s32 %s98, 1
    %s100 = scalar_select %p97, %s98, %s99
    %p103 = pneg %p97
    %p104 = scmp.eq.s32.totalorder %s11, 1
    %p105 = por %p103, %p104
    %p106 = scmp.ne.s32.totalorder %s98, %s101
    %p107 = scmp.eq.s32.totalorder %s11, 0
    %p108 = por %p106, %p107
    %p109 = scmp.ne.s32.totalorder %s98, %s101
    %p110 = scmp.eq.s32.totalorder %s16, 1
    %p111 = por %p109, %p110
    %p112 = scmp.ne.s32.totalorder %s101, %s102
    %p113 = scmp.eq.s32.totalorder %s16, 0
    %p114 = por %p112, %p113
    %p115 = scmp.ne.s32.totalorder %s101, %s102
    %p116 = scmp.eq.s32.totalorder %s17, 1
    %p117 = por %p115, %p116
    %p119 = scmp.ne.s32.totalorder %s102, %s118
    %p120 = scmp.eq.s32.totalorder %s17, 0
    %p121 = por %p119, %p120
    %s122 = ssub.s32 %s18, %s37
    %s123 = ssub.s32 %s19, %s33
    %s124 = sor.u32 %s122, %s123
    %p125 = scmp.eq.s32.totalorder %s124, 0
    %s127 = sadd.s32 %s126, 1
    %s128 = scalar_select %p125, %s126, %s127
    %p131 = pneg %p125
    %p132 = scmp.eq.s32.totalorder %s11, 1
    %p133 = por %p131, %p132
    %p134 = scmp.ne.s32.totalorder %s126, %s129
    %p135 = scmp.eq.s32.totalorder %s11, 0
    %p136 = por %p134, %p135
    %p137 = scmp.ne.s32.totalorder %s126, %s129
    %p138 = scmp.eq.s32.totalorder %s16, 1
    %p139 = por %p137, %p138
    %p140 = scmp.ne.s32.totalorder %s129, %s130
    %p141 = scmp.eq.s32.totalorder %s16, 0
    %p142 = por %p140, %p141
    %p143 = scmp.ne.s32.totalorder %s129, %s130
    %p144 = scmp.eq.s32.totalorder %s17, 1
    %p145 = por %p143, %p144
    %p147 = scmp.ne.s32.totalorder %s130, %s146
    %p148 = scmp.eq.s32.totalorder %s17, 0
    %p149 = por %p147, %p148
    %s150 = ssub.s32 %s18, %s37
    %s151 = ssub.s32 %s19, %s33
    %s152 = sor.u32 %s150, %s151
    %p153 = scmp.eq.s32.totalorder %s152, 0
    %s155 = sadd.s32 %s154, 1
    %s156 = scalar_select %p153, %s154, %s155
    %p159 = pneg %p153
    %p160 = scmp.eq.s32.totalorder %s11, 1
    %p161 = por %p159, %p160
    %p162 = scmp.ne.s32.totalorder %s154, %s157
    %p163 = scmp.eq.s32.totalorder %s11, 0
    %p164 = por %p162, %p163
    %p165 = scmp.ne.s32.totalorder %s154, %s157
    %p166 = scmp.eq.s32.totalorder %s16, 1
    %p167 = por %p165, %p166
    %p168 = scmp.ne.s32.totalorder %s157, %s158
    %p169 = scmp.eq.s32.totalorder %s16, 0
    %p170 = por %p168, %p169
    %p171 = scmp.ne.s32.totalorder %s157, %s158
    %p172 = scmp.eq.s32.totalorder %s17, 1
    %p173 = por %p171, %p172
    %p175 = scmp.ne.s32.totalorder %s158, %s174
    %p176 = scmp.eq.s32.totalorder %s17, 0
    %p177 = por %p175, %p176
    %p178 = scmp.le.s32.totalorder 1, %s11
    %p179 = scmp.lt.s32.totalorder %s11, 3
    %p180 = pnand %p178, %p179
    %p181 = pneg %p180
    // Predicated region
    $region9: #{aspp_forward.2} parent=5 // pred_check
      _
    $region10: #{aspp_forward.2} parent=5 // pred_check_branch
      %183 = sbr.rel (%p180) target = $region12
    $region11: #{aspp_forward.2} parent=5 // pred_region
      %s184 = ssub.s32 %s11, 1
      // Predicated region
      $region13: #{aspp_forward.2} parent=11 // pred_check
        %p185 = pneg %p86
      $region14: #{aspp_forward.2} parent=11 // pred_check_branch
        %187 = sbr.rel (%p185) target = $region16
      $region15: #{aspp_forward.2} parent=11 // pred_region
        %s188 = smul.u32 2, %s22
        %p189 = scmp.lt.s32.totalorder %s23, 0
        %s190 = scalar_select %p189, %s23, 0
        %p191 = scmp.lt.s32.totalorder %s188, 1
        %s192 = scalar_select %p191, %s188, 1
        %s193 = smul.addr %s190, 288
        %s194 = sadd.s32 %s192, %s193
        %s195 = smul.addr %s194, 4
        %s196 = scalar_lea.vmem %s1, %s195
        %s197 = smul.u32 2, %s22
      $region16: #{aspp_forward.2} parent=11 // pred_fallthru
        _
    $region12: #{aspp_forward.2} parent=5 // pred_fallthru
      _
    %p198 = scmp.lt.s32.totalorder %s11, 2
    // Predicated region
    $region17: #{aspp_forward.2} parent=5 // pred_check
      %p199 = pneg %p198
    $region18: #{aspp_forward.2} parent=5 // pred_check_branch
      %201 = sbr.rel (%p199) target = $region20
    $region19: #{aspp_forward.2} parent=5 // pred_region
      // Predicated region
      $region21: #{aspp_forward.2} parent=19 // pred_check
        %p202 = pneg %p52
      $region22: #{aspp_forward.2} parent=19 // pred_check_branch
        %204 = sbr.rel (%p202) target = $region24
      $region23: #{aspp_forward.2} parent=19 // pred_region
        %p205 = scmp.lt.s32.totalorder %s18, 1
        %s206 = scalar_select %p205, %s18, 1
        %p207 = scmp.lt.s32.totalorder %s20, 0
        %s208 = scalar_select %p207, %s20, 0
        %s209 = smul.addr %s206, 60
        %s210 = sadd.s32 %s208, %s209
        %s211 = smul.addr %s210, 4
        %s212 = scalar_lea.vmem %s0, %s211
      $region24: #{aspp_forward.2} parent=19 // pred_fallthru
        _
    $region20: #{aspp_forward.2} parent=5 // pred_fallthru
      _
    %p213 = scmp.le.s32.totalorder 1, %s11
    %p214 = scmp.lt.s32.totalorder %s11, 3
    %p215 = pnand %p213, %p214
    %p216 = pneg %p215
    // Predicated region
    $region25: #{aspp_forward.2} parent=5 // pred_check
      _
    $region26: #{aspp_forward.2} parent=5 // pred_check_branch
      %218 = sbr.rel (%p215) target = $region28
    $region27: #{aspp_forward.2} parent=5 // pred_region
      %s219 = ssub.s32 %s11, 1
      %p220 = scmp.lt.s32.totalorder %s21, 1
      %s221 = scalar_select %p220, %s21, 1
      %p222 = scmp.lt.s32.totalorder %s23, 0
      %s223 = scalar_select %p222, %s23, 0
      %s224 = smul.addr %s221, 60
      %s225 = sadd.s32 %s223, %s224
      %s226 = smul.addr %s225, 4
      %s227 = scalar_lea.vmem %s0, %s226
      %p228 = pneg %p58
      %p229 = pneg %p55
      %s230 = smul.u32 2, %s22
      %p231 = scmp.lt.s32.totalorder %s23, 0
      %s232 = scalar_select %p231, %s23, 0
      %p233 = scmp.lt.s32.totalorder %s230, 1
      %s234 = scalar_select %p233, %s230, 1
      %s235 = smul.addr %s232, 288
      %s236 = sadd.s32 %s234, %s235
      %s237 = smul.addr %s236, 4
      %s238 = scalar_lea.vmem %s1, %s237
      %p239 = pneg %p86
      %p240 = pneg %p83
      %p241 = pneg %p114
      %p242 = pneg %p111
      %s243 = smul.u32 2, %s22
      %p244 = scmp.lt.s32.totalorder %s21, 1
      %s245 = scalar_select %p244, %s21, 1
      %p246 = scmp.lt.s32.totalorder %s243, 1
      %s247 = scalar_select %p246, %s243, 1
      %s248 = smul.addr %s245, 64
      %s249 = sadd.s32 %s247, %s248
      %s250 = smul.addr %s249, 4
      %s251 = scalar_lea.vmem %s2, %s250
      %p252 = pneg %p142
      %p253 = pneg %p139
      %s254 = smul.u32 2, %s22
      %p255 = scmp.lt.s32.totalorder %s21, 1
      %s256 = scalar_select %p255, %s21, 1
      %p257 = scmp.lt.s32.totalorder %s254, 1
      %s258 = scalar_select %p257, %s254, 1
      %s259 = smul.addr %s256, 2
      %s260 = sadd.s32 %s258, %s259
      %s261 = scalar_lea.vmem %s3, %s260
      %p262 = pneg %p170
      %p263 = pneg %p167
      %s264 = smul.u32 2, %s22
      %p265 = scmp.lt.s32.totalorder %s21, 1
      %s266 = scalar_select %p265, %s21, 1
      %p267 = scmp.lt.s32.totalorder %s264, 1
      %s268 = scalar_select %p267, %s264, 1
      %s269 = smul.addr %s266, 2
      %s270 = sadd.s32 %s268, %s269
      %s271 = scalar_lea.vmem %s4, %s270
      %p272 = scmp.lt.s32.totalorder %s21, 1
      %s273 = scalar_select %p272, %s21, 1
      %p274 = scmp.lt.s32.totalorder %s23, 0
      %s275 = scalar_select %p274, %s23, 0
      %s276 = smul.addr %s273, 60
      %s277 = sadd.s32 %s275, %s276
      %s278 = smul.addr %s277, 4
      %s279 = scalar_lea.vmem %s0, %s278
      %s280 = smul.u32 2, %s22
      %p281 = scmp.lt.s32.totalorder %s23, 0
      %s282 = scalar_select %p281, %s23, 0
      %p283 = scmp.lt.s32.totalorder %s280, 1
      %s284 = scalar_select %p283, %s280, 1
      %s285 = smul.addr %s282, 288
      %s286 = sadd.s32 %s284, %s285
      %s287 = smul.addr %s286, 4
      %s288 = scalar_lea.vmem %s1, %s287
      %s289 = smul.u32 2, %s22
      %s290 = smul.u32 2, %s22
      %p291 = scmp.lt.s32.totalorder %s21, 1
      %s292 = scalar_select %p291, %s21, 1
      %p293 = scmp.lt.s32.totalorder %s290, 1
      %s294 = scalar_select %p293, %s290, 1
      %s295 = smul.addr %s292, 64
      %s296 = sadd.s32 %s294, %s295
      %s297 = smul.addr %s296, 4
      %s298 = scalar_lea.vmem %s2, %s297
      %s299 = smul.u32 2, %s22
      %s300 = smul.u32 2, %s22
      %p301 = scmp.lt.s32.totalorder %s21, 1
      %s302 = scalar_select %p301, %s21, 1
      %p303 = scmp.lt.s32.totalorder %s300, 1
      %s304 = scalar_select %p303, %s300, 1
      %s305 = smul.addr %s302, 2
      %s306 = sadd.s32 %s304, %s305
      %s307 = scalar_lea.vmem %s3, %s306
      %s308 = smul.u32 2, %s22
      %s309 = smul.u32 2, %s22
      %p310 = scmp.lt.s32.totalorder %s21, 1
      %s311 = scalar_select %p310, %s21, 1
      %p312 = scmp.lt.s32.totalorder %s309, 1
      %s313 = scalar_select %p312, %s309, 1
      %s314 = smul.addr %s311, 2
      %s315 = sadd.s32 %s313, %s314
      %s316 = scalar_lea.vmem %s4, %s315
      %s317 = smul.u32 2, %s22
      %p319 = scmp.eq.s32.totalorder %s23, 0
      // Predicated region
      $region29: #{aspp_forward.2} parent=27 // pred_check
        %p320 = pneg %p319
      $region30: #{aspp_forward.2} parent=27 // pred_check_branch
        %322 = sbr.rel (%p320) target = $region32
      $region31: #{aspp_forward.2} parent=27 // pred_region
        %323 = vst [vmem:[#allocation2] sm:$0xff] 0.0
        %324 = vst [vmem:[#allocation2 + $0x8] sm:$0xff] 0.0
        %325 = vst [vmem:[#allocation2 + $0x10] sm:$0xff] 0.0
        %326 = vst [vmem:[#allocation2 + $0x18] sm:$0xff] 0.0
        %327 = vst [vmem:[#allocation2 + $0x20] sm:$0xff] 0.0
        %328 = vst [vmem:[#allocation2 + $0x28] sm:$0xff] 0.0
        %329 = vst [vmem:[#allocation2 + $0x30] sm:$0xff] 0.0
        %330 = vst [vmem:[#allocation2 + $0x38] sm:$0xff] 0.0
        %331 = vst [vmem:[#allocation2 + $0x40] sm:$0xff] 0.0
        %332 = vst [vmem:[#allocation2 + $0x48] sm:$0xff] 0.0
        %333 = vst [vmem:[#allocation2 + $0x50] sm:$0xff] 0.0
        %334 = vst [vmem:[#allocation2 + $0x58] sm:$0xff] 0.0
        %335 = vst [vmem:[#allocation2 + $0x60] sm:$0xff] 0.0
        %336 = vst [vmem:[#allocation2 + $0x68] sm:$0xff] 0.0
        %337 = vst [vmem:[#allocation2 + $0x70] sm:$0xff] 0.0
        %338 = vst [vmem:[#allocation2 + $0x78] sm:$0xff] 0.0
        %339 = vst [vmem:[#allocation2 + $0x80] sm:$0xff] 0.0
        %340 = vst [vmem:[#allocation2 + $0x88] sm:$0xff] 0.0
        %341 = vst [vmem:[#allocation2 + $0x90] sm:$0xff] 0.0
        %342 = vst [vmem:[#allocation2 + $0x98] sm:$0xff] 0.0
        %343 = vst [vmem:[#allocation2 + $0xa0] sm:$0xff] 0.0
        %344 = vst [vmem:[#allocation2 + $0xa8] sm:$0xff] 0.0
        %345 = vst [vmem:[#allocation2 + $0xb0] sm:$0xff] 0.0
        %346 = vst [vmem:[#allocation2 + $0xb8] sm:$0xff] 0.0
        %347 = vst [vmem:[#allocation2 + $0xc0] sm:$0xff] 0.0
        %348 = vst [vmem:[#allocation2 + $0xc8] sm:$0xff] 0.0
        %349 = vst [vmem:[#allocation2 + $0xd0] sm:$0xff] 0.0
        %350 = vst [vmem:[#allocation2 + $0xd8] sm:$0xff] 0.0
        %351 = vst [vmem:[#allocation2 + $0xe0] sm:$0xff] 0.0
        %352 = vst [vmem:[#allocation2 + $0xe8] sm:$0xff] 0.0
        %353 = vst [vmem:[#allocation2 + $0xf0] sm:$0xff] 0.0
        %354 = vst [vmem:[#allocation2 + $0xf8] sm:$0xff] 0.0
        %355 = vst [vmem:[#allocation2 + $0x100] sm:$0xff] 0.0
        %356 = vst [vmem:[#allocation2 + $0x108] sm:$0xff] 0.0
        %357 = vst [vmem:[#allocation2 + $0x110] sm:$0xff] 0.0
        %358 = vst [vmem:[#allocation2 + $0x118] sm:$0xff] 0.0
        %359 = vst [vmem:[#allocation2 + $0x120] sm:$0xff] 0.0
        %360 = vst [vmem:[#allocation2 + $0x128] sm:$0xff] 0.0
        %361 = vst [vmem:[#allocation2 + $0x130] sm:$0xff] 0.0
        %362 = vst [vmem:[#allocation2 + $0x138] sm:$0xff] 0.0
        %363 = vst [vmem:[#allocation2 + $0x140] sm:$0xff] 0.0
        %364 = vst [vmem:[#allocation2 + $0x148] sm:$0xff] 0.0
        %365 = vst [vmem:[#allocation2 + $0x150] sm:$0xff] 0.0
        %366 = vst [vmem:[#allocation2 + $0x158] sm:$0xff] 0.0
        %367 = vst [vmem:[#allocation2 + $0x160] sm:$0xff] 0.0
        %368 = vst [vmem:[#allocation2 + $0x168] sm:$0xff] 0.0
        %369 = vst [vmem:[#allocation2 + $0x170] sm:$0xff] 0.0
        %370 = vst [vmem:[#allocation2 + $0x178] sm:$0xff] 0.0
        %371 = vst [vmem:[#allocation2 + $0x180] sm:$0xff] 0.0
        %372 = vst [vmem:[#allocation2 + $0x188] sm:$0xff] 0.0
        %373 = vst [vmem:[#allocation2 + $0x190] sm:$0xff] 0.0
        %374 = vst [vmem:[#allocation2 + $0x198] sm:$0xff] 0.0
        %375 = vst [vmem:[#allocation2 + $0x1a0] sm:$0xff] 0.0
        %376 = vst [vmem:[#allocation2 + $0x1a8] sm:$0xff] 0.0
        %377 = vst [vmem:[#allocation2 + $0x1b0] sm:$0xff] 0.0
        %378 = vst [vmem:[#allocation2 + $0x1b8] sm:$0xff] 0.0
        %379 = vst [vmem:[#allocation2 + $0x1c0] sm:$0xff] 0.0
        %380 = vst [vmem:[#allocation2 + $0x1c8] sm:$0xff] 0.0
        %381 = vst [vmem:[#allocation2 + $0x1d0] sm:$0xff] 0.0
        %382 = vst [vmem:[#allocation2 + $0x1d8] sm:$0xff] 0.0
        %383 = vst [vmem:[#allocation2 + $0x1e0] sm:$0xff] 0.0
        %384 = vst [vmem:[#allocation2 + $0x1e8] sm:$0xff] 0.0
        %385 = vst [vmem:[#allocation2 + $0x1f0] sm:$0xff] 0.0
        %386 = vst [vmem:[#allocation2 + $0x1f8] sm:$0xff] 0.0
      $region32: #{aspp_forward.2} parent=27 // pred_fallthru
        _
      %v387 = vld [vmem:[%s279] sm:$0xf]
      %v388 = vld [vmem:[%s279 + $0x4] sm:$0xf]
      %v389 = vld [vmem:[%s279 + $0xc] sm:$0xf]
      %v390 = vld [vmem:[%s279 + $0x10] sm:$0xf]
      %v391 = vld [vmem:[%s279 + $0x18] sm:$0xf]
      %v392 = vld [vmem:[%s279 + $0x1c] sm:$0xf]
      %v393 = vld [vmem:[%s279 + $0x24] sm:$0xf]
      %v394 = vld [vmem:[%s279 + $0x28] sm:$0xf]
      %v395 = vld [vmem:[%s279 + $0x30] sm:$0xf]
      %v396 = vld [vmem:[%s279 + $0x34] sm:$0xf]
      %v397 = vld [vmem:[%s279 + $0x3c] sm:$0xf]
      %v398 = vld [vmem:[%s279 + $0x40] sm:$0xf]
      %v399 = vld [vmem:[%s279 + $0x48] sm:$0xf]
      %v400 = vld [vmem:[%s279 + $0x4c] sm:$0xf]
      %v401 = vld [vmem:[%s279 + $0x54] sm:$0xf]
      %v402 = vld [vmem:[%s279 + $0x58] sm:$0xf]
      %v403 = vld [vmem:[%s279 + $0x60] sm:$0xf]
      %v404 = vld [vmem:[%s279 + $0x64] sm:$0xf]
      %v405 = vld [vmem:[%s279 + $0x6c] sm:$0xf]
      %v406 = vld [vmem:[%s279 + $0x70] sm:$0xf]
      %v407 = vld [vmem:[%s279 + $0x78] sm:$0xf]
      %v408 = vld [vmem:[%s279 + $0x7c] sm:$0xf]
      %v409 = vld [vmem:[%s279 + $0x84] sm:$0xf]
      %v410 = vld [vmem:[%s279 + $0x88] sm:$0xf]
      %v411 = vld [vmem:[%s279 + $0x90] sm:$0xf]
      %v412 = vld [vmem:[%s279 + $0x94] sm:$0xf]
      %v413 = vld [vmem:[%s279 + $0x9c] sm:$0xf]
      %v414 = vld [vmem:[%s279 + $0xa0] sm:$0xf]
      %v415 = vld [vmem:[%s279 + $0xa8] sm:$0xf]
      %v416 = vld [vmem:[%s279 + $0xac] sm:$0xf]
      %v417 = vld [vmem:[%s279 + $0xb4] sm:$0xf]
      %v418 = vld [vmem:[%s279 + $0xb8] sm:$0xf]
      %v419 = vld [vmem:[%s279 + $0xc0] sm:$0xf]
      %v420 = vld [vmem:[%s279 + $0xc4] sm:$0xf]
      %v421 = vld [vmem:[%s279 + $0xcc] sm:$0xf]
      %v422 = vld [vmem:[%s279 + $0xd0] sm:$0xf]
      %v423 = vld [vmem:[%s279 + $0xd8] sm:$0xf]
      %v424 = vld [vmem:[%s279 + $0xdc] sm:$0xf]
      %v425 = vld [vmem:[%s279 + $0xe4] sm:$0xf]
      %v426 = vld [vmem:[%s279 + $0xe8] sm:$0xf]
      %v459 = vunpack.c.l.b16 %v387
      %v460 = vunpack.c.l.b16 %v388
      %v461 = vunpack.c.l.b16 %v389
      %v462 = vunpack.c.l.b16 %v390
      %v463 = vunpack.c.l.b16 %v391
      %v464 = vunpack.c.l.b16 %v392
      %v465 = vunpack.c.l.b16 %v393
      %v466 = vunpack.c.l.b16 %v394
      %v467 = vunpack.c.l.b16 %v395
      %v468 = vunpack.c.l.b16 %v396
      %v469 = vunpack.c.l.b16 %v397
      %v470 = vunpack.c.l.b16 %v398
      %v471 = vunpack.c.l.b16 %v399
      %v472 = vunpack.c.l.b16 %v400
      %v473 = vunpack.c.l.b16 %v401
      %v474 = vunpack.c.l.b16 %v402
      %v475 = vunpack.c.l.b16 %v403
      %v476 = vunpack.c.l.b16 %v404
      %v477 = vunpack.c.l.b16 %v405
      %v478 = vunpack.c.l.b16 %v406
      %v479 = vunpack.c.l.b16 %v407
      %v480 = vunpack.c.l.b16 %v408
      %v481 = vunpack.c.l.b16 %v409
      %v482 = vunpack.c.l.b16 %v410
      %v483 = vunpack.c.l.b16 %v411
      %v484 = vunpack.c.l.b16 %v412
      %v485 = vunpack.c.l.b16 %v413
      %v486 = vunpack.c.l.b16 %v414
      %v487 = vunpack.c.l.b16 %v415
      %v488 = vunpack.c.l.b16 %v416
      %v489 = vunpack.c.l.b16 %v417
      %v490 = vunpack.c.l.b16 %v418
      %v491 = vpack.c.b16 %v460, %v459
      %v492 = vpack.c.b16 %v462, %v461
      %v493 = vpack.c.b16 %v464, %v463
      %v494 = vpack.c.b16 %v466, %v465
      %v495 = vpack.c.b16 %v468, %v467
      %v496 = vpack.c.b16 %v470, %v469
      %v497 = vpack.c.b16 %v472, %v471
      %v498 = vpack.c.b16 %v474, %v473
      %v499 = vpack.c.b16 %v476, %v475
      %v500 = vpack.c.b16 %v478, %v477
      %v501 = vpack.c.b16 %v480, %v479
      %v502 = vpack.c.b16 %v482, %v481
      %v503 = vpack.c.b16 %v484, %v483
      %v504 = vpack.c.b16 %v486, %v485
      %v505 = vpack.c.b16 %v488, %v487
      %v506 = vpack.c.b16 %v490, %v489
      %523 = vst [vmem:[#allocation3] sm:$0xff] %v491
      %524 = vst [vmem:[#allocation3 + $0x48] sm:$0xff] %v492
      %525 = vst [vmem:[#allocation3 + $0x90] sm:$0xff] %v493
      %526 = vst [vmem:[#allocation3 + $0xd8] sm:$0xff] %v494
      %527 = vst [vmem:[#allocation3 + $0x120] sm:$0xff] %v495
      %528 = vst [vmem:[#allocation3 + $0x168] sm:$0xff] %v496
      %529 = vst [vmem:[#allocation3 + $0x1b0] sm:$0xff] %v497
      %530 = vst [vmem:[#allocation3 + $0x1f8] sm:$0xff] %v498
      %531 = vst [vmem:[#allocation3 + $0x240] sm:$0xff] %v499
      %532 = vst [vmem:[#allocation3 + $0x288] sm:$0xff] %v500
      %533 = vst [vmem:[#allocation3 + $0x2d0] sm:$0xff] %v501
      %534 = vst [vmem:[#allocation3 + $0x318] sm:$0xff] %v502
      %535 = vst [vmem:[#allocation3 + $0x360] sm:$0xff] %v503
      %536 = vst [vmem:[#allocation3 + $0x3a8] sm:$0xff] %v504
      %537 = vst [vmem:[#allocation3 + $0x3f0] sm:$0xff] %v505
      %538 = vst [vmem:[#allocation3 + $0x438] sm:$0xff] %v506
      %v543 = vunpack.c.l.b16 %v419
      %v544 = vunpack.c.l.b16 %v420
      %v545 = vunpack.c.l.b16 %v421
      %v546 = vunpack.c.l.b16 %v422
      %v547 = vpack.c.b16 %v544, %v543
      %v548 = vpack.c.b16 %v546, %v545
      %551 = vst [vmem:[#allocation3 + $0x18] sm:$0xff] %v493
      %552 = vst [vmem:[#allocation3 + $0x60] sm:$0xff] %v494
      %553 = vst [vmem:[#allocation3 + $0xa8] sm:$0xff] %v495
      %554 = vst [vmem:[#allocation3 + $0xf0] sm:$0xff] %v496
      %555 = vst [vmem:[#allocation3 + $0x138] sm:$0xff] %v497
      %556 = vst [vmem:[#allocation3 + $0x180] sm:$0xff] %v498
      %557 = vst [vmem:[#allocation3 + $0x1c8] sm:$0xff] %v499
      %558 = vst [vmem:[#allocation3 + $0x210] sm:$0xff] %v500
      %559 = vst [vmem:[#allocation3 + $0x258] sm:$0xff] %v501
      %560 = vst [vmem:[#allocation3 + $0x2a0] sm:$0xff] %v502
      %561 = vst [vmem:[#allocation3 + $0x2e8] sm:$0xff] %v503
      %562 = vst [vmem:[#allocation3 + $0x330] sm:$0xff] %v504
      %563 = vst [vmem:[#allocation3 + $0x378] sm:$0xff] %v505
      %564 = vst [vmem:[#allocation3 + $0x3c0] sm:$0xff] %v506
      %565 = vst [vmem:[#allocation3 + $0x408] sm:$0xff] %v547
      %566 = vst [vmem:[#allocation3 + $0x450] sm:$0xff] %v548
      %v571 = vunpack.c.l.b16 %v423
      %v572 = vunpack.c.l.b16 %v424
      %v573 = vunpack.c.l.b16 %v425
      %v574 = vunpack.c.l.b16 %v426
      %v575 = vpack.c.b16 %v572, %v571
      %v576 = vpack.c.b16 %v574, %v573
      %579 = vst [vmem:[#allocation3 + $0x30] sm:$0xff] %v495
      %580 = vst [vmem:[#allocation3 + $0x78] sm:$0xff] %v496
      %581 = vst [vmem:[#allocation3 + $0xc0] sm:$0xff] %v497
      %582 = vst [vmem:[#allocation3 + $0x108] sm:$0xff] %v498
      %583 = vst [vmem:[#allocation3 + $0x150] sm:$0xff] %v499
      %584 = vst [vmem:[#allocation3 + $0x198] sm:$0xff] %v500
      %585 = vst [vmem:[#allocation3 + $0x1e0] sm:$0xff] %v501
      %586 = vst [vmem:[#allocation3 + $0x228] sm:$0xff] %v502
      %587 = vst [vmem:[#allocation3 + $0x270] sm:$0xff] %v503
      %588 = vst [vmem:[#allocation3 + $0x2b8] sm:$0xff] %v504
      %589 = vst [vmem:[#allocation3 + $0x300] sm:$0xff] %v505
      %590 = vst [vmem:[#allocation3 + $0x348] sm:$0xff] %v506
      %591 = vst [vmem:[#allocation3 + $0x390] sm:$0xff] %v547
      %592 = vst [vmem:[#allocation3 + $0x3d8] sm:$0xff] %v548
      %593 = vst [vmem:[#allocation3 + $0x420] sm:$0xff] %v575
      %594 = vst [vmem:[#allocation3 + $0x468] sm:$0xff] %v576
      %v595 = vld [vmem:[%s279] sm:$0xe]
      %v596 = vld [vmem:[%s279 + $0x4] sm:$0xf]
      %v597 = vld [vmem:[%s279 + $0x8] sm:$0x1]
      %v598 = vld [vmem:[%s279 + $0xc] sm:$0xe]
      %v599 = vld [vmem:[%s279 + $0x10] sm:$0xf]
      %v600 = vld [vmem:[%s279 + $0x14] sm:$0x1]
      %v601 = vld [vmem:[%s279 + $0x18] sm:$0xe]
      %v602 = vld [vmem:[%s279 + $0x1c] sm:$0xf]
      %v603 = vld [vmem:[%s279 + $0x20] sm:$0x1]
      %v604 = vld [vmem:[%s279 + $0x24] sm:$0xe]
      %v605 = vld [vmem:[%s279 + $0x28] sm:$0xf]
      %v606 = vld [vmem:[%s279 + $0x2c] sm:$0x1]
      %v607 = vld [vmem:[%s279 + $0x30] sm:$0xe]
      %v608 = vld [vmem:[%s279 + $0x34] sm:$0xf]
      %v609 = vld [vmem:[%s279 + $0x38] sm:$0x1]
      %v610 = vld [vmem:[%s279 + $0x3c] sm:$0xe]
      %v611 = vld [vmem:[%s279 + $0x40] sm:$0xf]
      %v612 = vld [vmem:[%s279 + $0x44] sm:$0x1]
      %v613 = vld [vmem:[%s279 + $0x48] sm:$0xe]
      %v614 = vld [vmem:[%s279 + $0x4c] sm:$0xf]
      %v615 = vld [vmem:[%s279 + $0x50] sm:$0x1]
      %v616 = vld [vmem:[%s279 + $0x54] sm:$0xe]
      %v617 = vld [vmem:[%s279 + $0x58] sm:$0xf]
      %v618 = vld [vmem:[%s279 + $0x5c] sm:$0x1]
      %v619 = vld [vmem:[%s279 + $0x60] sm:$0xe]
      %v620 = vld [vmem:[%s279 + $0x64] sm:$0xf]
      %v621 = vld [vmem:[%s279 + $0x68] sm:$0x1]
      %v622 = vld [vmem:[%s279 + $0x6c] sm:$0xe]
      %v623 = vld [vmem:[%s279 + $0x70] sm:$0xf]
      %v624 = vld [vmem:[%s279 + $0x74] sm:$0x1]
      %v625 = vld [vmem:[%s279 + $0x78] sm:$0xe]
      %v626 = vld [vmem:[%s279 + $0x7c] sm:$0xf]
      %v627 = vld [vmem:[%s279 + $0x80] sm:$0x1]
      %v628 = vld [vmem:[%s279 + $0x84] sm:$0xe]
      %v629 = vld [vmem:[%s279 + $0x88] sm:$0xf]
      %v630 = vld [vmem:[%s279 + $0x8c] sm:$0x1]
      %v631 = vld [vmem:[%s279 + $0x90] sm:$0xe]
      %v632 = vld [vmem:[%s279 + $0x94] sm:$0xf]
      %v633 = vld [vmem:[%s279 + $0x98] sm:$0x1]
      %v634 = vld [vmem:[%s279 + $0x9c] sm:$0xe]
      %v635 = vld [vmem:[%s279 + $0xa0] sm:$0xf]
      %v636 = vld [vmem:[%s279 + $0xa4] sm:$0x1]
      %v637 = vld [vmem:[%s279 + $0xa8] sm:$0xe]
      %v638 = vld [vmem:[%s279 + $0xac] sm:$0xf]
      %v639 = vld [vmem:[%s279 + $0xb0] sm:$0x1]
      %v640 = vld [vmem:[%s279 + $0xb4] sm:$0xe]
      %v641 = vld [vmem:[%s279 + $0xb8] sm:$0xf]
      %v642 = vld [vmem:[%s279 + $0xbc] sm:$0x1]
      %v643 = vld [vmem:[%s279 + $0xc0] sm:$0xe]
      %v644 = vld [vmem:[%s279 + $0xc4] sm:$0xf]
      %v645 = vld [vmem:[%s279 + $0xc8] sm:$0x1]
      %v646 = vld [vmem:[%s279 + $0xcc] sm:$0xe]
      %v647 = vld [vmem:[%s279 + $0xd0] sm:$0xf]
      %v648 = vld [vmem:[%s279 + $0xd4] sm:$0x1]
      %v649 = vld [vmem:[%s279 + $0xd8] sm:$0xe]
      %v650 = vld [vmem:[%s279 + $0xdc] sm:$0xf]
      %v651 = vld [vmem:[%s279 + $0xe0] sm:$0x1]
      %v652 = vld [vmem:[%s279 + $0xe4] sm:$0xe]
      %v653 = vld [vmem:[%s279 + $0xe8] sm:$0xf]
      %v654 = vld [vmem:[%s279 + $0xec] sm:$0x1]
      %vm703 = vcmask 1042432
      %vm704 = vcmask 1046532
      %vm705 = vmor %vm703, %vm704
      %v706 = vrot.slane %v595, 5
      %v707 = vrot.slane %v706, 4
      %v708 = vrot.slane %v596, 5
      %v709 = vsel %vm705, %v707, %v708
      %v710 = vrot.slane %v708, 4
      %v711 = vrot.slane %v597, 5
      %v712 = vsel %vm705, %v710, %v711
      %v713 = vrot.slane %v598, 5
      %v714 = vrot.slane %v713, 4
      %v715 = vrot.slane %v599, 5
      %v716 = vsel %vm705, %v714, %v715
      %v717 = vrot.slane %v715, 4
      %v718 = vrot.slane %v600, 5
      %v719 = vsel %vm705, %v717, %v718
      %v720 = vrot.slane %v601, 5
      %v721 = vrot.slane %v720, 4
      %v722 = vrot.slane %v602, 5
      %v723 = vsel %vm705, %v721, %v722
      %v724 = vrot.slane %v722, 4
      %v725 = vrot.slane %v603, 5
      %v726 = vsel %vm705, %v724, %v725
      %v727 = vrot.slane %v604, 5
      %v728 = vrot.slane %v727, 4
      %v729 = vrot.slane %v605, 5
      %v730 = vsel %vm705, %v728, %v729
      %v731 = vrot.slane %v729, 4
      %v732 = vrot.slane %v606, 5
      %v733 = vsel %vm705, %v731, %v732
      %v734 = vrot.slane %v607, 5
      %v735 = vrot.slane %v734, 4
      %v736 = vrot.slane %v608, 5
      %v737 = vsel %vm705, %v735, %v736
      %v738 = vrot.slane %v736, 4
      %v739 = vrot.slane %v609, 5
      %v740 = vsel %vm705, %v738, %v739
      %v741 = vrot.slane %v610, 5
      %v742 = vrot.slane %v741, 4
      %v743 = vrot.slane %v611, 5
      %v744 = vsel %vm705, %v742, %v743
      %v745 = vrot.slane %v743, 4
      %v746 = vrot.slane %v612, 5
      %v747 = vsel %vm705, %v745, %v746
      %v748 = vrot.slane %v613, 5
      %v749 = vrot.slane %v748, 4
      %v750 = vrot.slane %v614, 5
      %v751 = vsel %vm705, %v749, %v750
      %v752 = vrot.slane %v750, 4
      %v753 = vrot.slane %v615, 5
      %v754 = vsel %vm705, %v752, %v753
      %v755 = vrot.slane %v616, 5
      %v756 = vrot.slane %v755, 4
      %v757 = vrot.slane %v617, 5
      %v758 = vsel %vm705, %v756, %v757
      %v759 = vrot.slane %v757, 4
      %v760 = vrot.slane %v618, 5
      %v761 = vsel %vm705, %v759, %v760
      %v762 = vrot.slane %v619, 5
      %v763 = vrot.slane %v762, 4
      %v764 = vrot.slane %v620, 5
      %v765 = vsel %vm705, %v763, %v764
      %v766 = vrot.slane %v764, 4
      %v767 = vrot.slane %v621, 5
      %v768 = vsel %vm705, %v766, %v767
      %v769 = vrot.slane %v622, 5
      %v770 = vrot.slane %v769, 4
      %v771 = vrot.slane %v623, 5
      %v772 = vsel %vm705, %v770, %v771
      %v773 = vrot.slane %v771, 4
      %v774 = vrot.slane %v624, 5
      %v775 = vsel %vm705, %v773, %v774
      %v776 = vrot.slane %v625, 5
      %v777 = vrot.slane %v776, 4
      %v778 = vrot.slane %v626, 5
      %v779 = vsel %vm705, %v777, %v778
      %v780 = vrot.slane %v778, 4
      %v781 = vrot.slane %v627, 5
      %v782 = vsel %vm705, %v780, %v781
      %v783 = vrot.slane %v628, 5
      %v784 = vrot.slane %v783, 4
      %v785 = vrot.slane %v629, 5
      %v786 = vsel %vm705, %v784, %v785
      %v787 = vrot.slane %v785, 4
      %v788 = vrot.slane %v630, 5
      %v789 = vsel %vm705, %v787, %v788
      %v790 = vrot.slane %v631, 5
      %v791 = vrot.slane %v790, 4
      %v792 = vrot.slane %v632, 5
      %v793 = vsel %vm705, %v791, %v792
      %v794 = vrot.slane %v792, 4
      %v795 = vrot.slane %v633, 5
      %v796 = vsel %vm705, %v794, %v795
      %v797 = vrot.slane %v634, 5
      %v798 = vrot.slane %v797, 4
      %v799 = vrot.slane %v635, 5
      %v800 = vsel %vm705, %v798, %v799
      %v801 = vrot.slane %v799, 4
      %v802 = vrot.slane %v636, 5
      %v803 = vsel %vm705, %v801, %v802
      %v804 = vrot.slane %v637, 5
      %v805 = vrot.slane %v804, 4
      %v806 = vrot.slane %v638, 5
      %v807 = vsel %vm705, %v805, %v806
      %v808 = vrot.slane %v806, 4
      %v809 = vrot.slane %v639, 5
      %v810 = vsel %vm705, %v808, %v809
      %v811 = vrot.slane %v640, 5
      %v812 = vrot.slane %v811, 4
      %v813 = vrot.slane %v641, 5
      %v814 = vsel %vm705, %v812, %v813
      %v815 = vrot.slane %v813, 4
      %v816 = vrot.slane %v642, 5
      %v817 = vsel %vm705, %v815, %v816
      %v818 = vunpack.c.l.b16 %v709
      %v819 = vunpack.c.l.b16 %v712
      %v820 = vunpack.c.l.b16 %v716
      %v821 = vunpack.c.l.b16 %v719
      %v822 = vunpack.c.l.b16 %v723
      %v823 = vunpack.c.l.b16 %v726
      %v824 = vunpack.c.l.b16 %v730
      %v825 = vunpack.c.l.b16 %v733
      %v826 = vunpack.c.l.b16 %v737
      %v827 = vunpack.c.l.b16 %v740
      %v828 = vunpack.c.l.b16 %v744
      %v829 = vunpack.c.l.b16 %v747
      %v830 = vunpack.c.l.b16 %v751
      %v831 = vunpack.c.l.b16 %v754
      %v832 = vunpack.c.l.b16 %v758
      %v833 = vunpack.c.l.b16 %v761
      %v834 = vunpack.c.l.b16 %v765
      %v835 = vunpack.c.l.b16 %v768
      %v836 = vunpack.c.l.b16 %v772
      %v837 = vunpack.c.l.b16 %v775
      %v838 = vunpack.c.l.b16 %v779
      %v839 = vunpack.c.l.b16 %v782
      %v840 = vunpack.c.l.b16 %v786
      %v841 = vunpack.c.l.b16 %v789
      %v842 = vunpack.c.l.b16 %v793
      %v843 = vunpack.c.l.b16 %v796
      %v844 = vunpack.c.l.b16 %v800
      %v845 = vunpack.c.l.b16 %v803
      %v846 = vunpack.c.l.b16 %v807
      %v847 = vunpack.c.l.b16 %v810
      %v848 = vunpack.c.l.b16 %v814
      %v849 = vunpack.c.l.b16 %v817
      %v850 = vpack.c.b16 %v819, %v818
      %v851 = vpack.c.b16 %v821, %v820
      %v852 = vpack.c.b16 %v823, %v822
      %v853 = vpack.c.b16 %v825, %v824
      %v854 = vpack.c.b16 %v827, %v826
      %v855 = vpack.c.b16 %v829, %v828
      %v856 = vpack.c.b16 %v831, %v830
      %v857 = vpack.c.b16 %v833, %v832
      %v858 = vpack.c.b16 %v835, %v834
      %v859 = vpack.c.b16 %v837, %v836
      %v860 = vpack.c.b16 %v839, %v838
      %v861 = vpack.c.b16 %v841, %v840
      %v862 = vpack.c.b16 %v843, %v842
      %v863 = vpack.c.b16 %v845, %v844
      %v864 = vpack.c.b16 %v847, %v846
      %v865 = vpack.c.b16 %v849, %v848
      %882 = vst [vmem:[#allocation3 + $0x8] sm:$0xff] %v850
      %883 = vst [vmem:[#allocation3 + $0x50] sm:$0xff] %v851
      %884 = vst [vmem:[#allocation3 + $0x98] sm:$0xff] %v852
      %885 = vst [vmem:[#allocation3 + $0xe0] sm:$0xff] %v853
      %886 = vst [vmem:[#allocation3 + $0x128] sm:$0xff] %v854
      %887 = vst [vmem:[#allocation3 + $0x170] sm:$0xff] %v855
      %888 = vst [vmem:[#allocation3 + $0x1b8] sm:$0xff] %v856
      %889 = vst [vmem:[#allocation3 + $0x200] sm:$0xff] %v857
      %890 = vst [vmem:[#allocation3 + $0x248] sm:$0xff] %v858
      %891 = vst [vmem:[#allocation3 + $0x290] sm:$0xff] %v859
      %892 = vst [vmem:[#allocation3 + $0x2d8] sm:$0xff] %v860
      %893 = vst [vmem:[#allocation3 + $0x320] sm:$0xff] %v861
      %894 = vst [vmem:[#allocation3 + $0x368] sm:$0xff] %v862
      %895 = vst [vmem:[#allocation3 + $0x3b0] sm:$0xff] %v863
      %896 = vst [vmem:[#allocation3 + $0x3f8] sm:$0xff] %v864
      %897 = vst [vmem:[#allocation3 + $0x440] sm:$0xff] %v865
      %v904 = vrot.slane %v643, 5
      %v905 = vrot.slane %v904, 4
      %v906 = vrot.slane %v644, 5
      %v907 = vsel %vm705, %v905, %v906
      %v908 = vrot.slane %v906, 4
      %v909 = vrot.slane %v645, 5
      %v910 = vsel %vm705, %v908, %v909
      %v911 = vrot.slane %v646, 5
      %v912 = vrot.slane %v911, 4
      %v913 = vrot.slane %v647, 5
      %v914 = vsel %vm705, %v912, %v913
      %v915 = vrot.slane %v913, 4
      %v916 = vrot.slane %v648, 5
      %v917 = vsel %vm705, %v915, %v916
      %v918 = vunpack.c.l.b16 %v907
      %v919 = vunpack.c.l.b16 %v910
      %v920 = vunpack.c.l.b16 %v914
      %v921 = vunpack.c.l.b16 %v917
      %v922 = vpack.c.b16 %v919, %v918
      %v923 = vpack.c.b16 %v921, %v920
      %926 = vst [vmem:[#allocation3 + $0x20] sm:$0xff] %v852
      %927 = vst [vmem:[#allocation3 + $0x68] sm:$0xff] %v853
      %928 = vst [vmem:[#allocation3 + $0xb0] sm:$0xff] %v854
      %929 = vst [vmem:[#allocation3 + $0xf8] sm:$0xff] %v855
      %930 = vst [vmem:[#allocation3 + $0x140] sm:$0xff] %v856
      %931 = vst [vmem:[#allocation3 + $0x188] sm:$0xff] %v857
      %932 = vst [vmem:[#allocation3 + $0x1d0] sm:$0xff] %v858
      %933 = vst [vmem:[#allocation3 + $0x218] sm:$0xff] %v859
      %934 = vst [vmem:[#allocation3 + $0x260] sm:$0xff] %v860
      %935 = vst [vmem:[#allocation3 + $0x2a8] sm:$0xff] %v861
      %936 = vst [vmem:[#allocation3 + $0x2f0] sm:$0xff] %v862
      %937 = vst [vmem:[#allocation3 + $0x338] sm:$0xff] %v863
      %938 = vst [vmem:[#allocation3 + $0x380] sm:$0xff] %v864
      %939 = vst [vmem:[#allocation3 + $0x3c8] sm:$0xff] %v865
      %940 = vst [vmem:[#allocation3 + $0x410] sm:$0xff] %v922
      %941 = vst [vmem:[#allocation3 + $0x458] sm:$0xff] %v923
      %v948 = vrot.slane %v649, 5
      %v949 = vrot.slane %v948, 4
      %v950 = vrot.slane %v650, 5
      %v951 = vsel %vm705, %v949, %v950
      %v952 = vrot.slane %v950, 4
      %v953 = vrot.slane %v651, 5
      %v954 = vsel %vm705, %v952, %v953
      %v955 = vrot.slane %v652, 5
      %v956 = vrot.slane %v955, 4
      %v957 = vrot.slane %v653, 5
      %v958 = vsel %vm705, %v956, %v957
      %v959 = vrot.slane %v957, 4
      %v960 = vrot.slane %v654, 5
      %v961 = vsel %vm705, %v959, %v960
      %v962 = vunpack.c.l.b16 %v951
      %v963 = vunpack.c.l.b16 %v954
      %v964 = vunpack.c.l.b16 %v958
      %v965 = vunpack.c.l.b16 %v961
      %v966 = vpack.c.b16 %v963, %v962
      %v967 = vpack.c.b16 %v965, %v964
      %970 = vst [vmem:[#allocation3 + $0x38] sm:$0xff] %v854
      %971 = vst [vmem:[#allocation3 + $0x80] sm:$0xff] %v855
      %972 = vst [vmem:[#allocation3 + $0xc8] sm:$0xff] %v856
      %973 = vst [vmem:[#allocation3 + $0x110] sm:$0xff] %v857
      %974 = vst [vmem:[#allocation3 + $0x158] sm:$0xff] %v858
      %975 = vst [vmem:[#allocation3 + $0x1a0] sm:$0xff] %v859
      %976 = vst [vmem:[#allocation3 + $0x1e8] sm:$0xff] %v860
      %977 = vst [vmem:[#allocation3 + $0x230] sm:$0xff] %v861
      %978 = vst [vmem:[#allocation3 + $0x278] sm:$0xff] %v862
      %979 = vst [vmem:[#allocation3 + $0x2c0] sm:$0xff] %v863
      %980 = vst [vmem:[#allocation3 + $0x308] sm:$0xff] %v864
      %981 = vst [vmem:[#allocation3 + $0x350] sm:$0xff] %v865
      %982 = vst [vmem:[#allocation3 + $0x398] sm:$0xff] %v922
      %983 = vst [vmem:[#allocation3 + $0x3e0] sm:$0xff] %v923
      %984 = vst [vmem:[#allocation3 + $0x428] sm:$0xff] %v966
      %985 = vst [vmem:[#allocation3 + $0x470] sm:$0xff] %v967
      %v986 = vld [vmem:[%s279] sm:$0xc]
      %v987 = vld [vmem:[%s279 + $0x4] sm:$0xf]
      %v988 = vld [vmem:[%s279 + $0x8] sm:$0x3]
      %v989 = vld [vmem:[%s279 + $0xc] sm:$0xc]
      %v990 = vld [vmem:[%s279 + $0x10] sm:$0xf]
      %v991 = vld [vmem:[%s279 + $0x14] sm:$0x3]
      %v992 = vld [vmem:[%s279 + $0x18] sm:$0xc]
      %v993 = vld [vmem:[%s279 + $0x1c] sm:$0xf]
      %v994 = vld [vmem:[%s279 + $0x20] sm:$0x3]
      %v995 = vld [vmem:[%s279 + $0x24] sm:$0xc]
      %v996 = vld [vmem:[%s279 + $0x28] sm:$0xf]
      %v997 = vld [vmem:[%s279 + $0x2c] sm:$0x3]
      %v998 = vld [vmem:[%s279 + $0x30] sm:$0xc]
      %v999 = vld [vmem:[%s279 + $0x34] sm:$0xf]
      %v1000 = vld [vmem:[%s279 + $0x38] sm:$0x3]
      %v1001 = vld [vmem:[%s279 + $0x3c] sm:$0xc]
      %v1002 = vld [vmem:[%s279 + $0x40] sm:$0xf]
      %v1003 = vld [vmem:[%s279 + $0x44] sm:$0x3]
      %v1004 = vld [vmem:[%s279 + $0x48] sm:$0xc]
      %v1005 = vld [vmem:[%s279 + $0x4c] sm:$0xf]
      %v1006 = vld [vmem:[%s279 + $0x50] sm:$0x3]
      %v1007 = vld [vmem:[%s279 + $0x54] sm:$0xc]
      %v1008 = vld [vmem:[%s279 + $0x58] sm:$0xf]
      %v1009 = vld [vmem:[%s279 + $0x5c] sm:$0x3]
      %v1010 = vld [vmem:[%s279 + $0x60] sm:$0xc]
      %v1011 = vld [vmem:[%s279 + $0x64] sm:$0xf]
      %v1012 = vld [vmem:[%s279 + $0x68] sm:$0x3]
      %v1013 = vld [vmem:[%s279 + $0x6c] sm:$0xc]
      %v1014 = vld [vmem:[%s279 + $0x70] sm:$0xf]
      %v1015 = vld [vmem:[%s279 + $0x74] sm:$0x3]
      %v1016 = vld [vmem:[%s279 + $0x78] sm:$0xc]
      %v1017 = vld [vmem:[%s279 + $0x7c] sm:$0xf]
      %v1018 = vld [vmem:[%s279 + $0x80] sm:$0x3]
      %v1019 = vld [vmem:[%s279 + $0x84] sm:$0xc]
      %v1020 = vld [vmem:[%s279 + $0x88] sm:$0xf]
      %v1021 = vld [vmem:[%s279 + $0x8c] sm:$0x3]
      %v1022 = vld [vmem:[%s279 + $0x90] sm:$0xc]
      %v1023 = vld [vmem:[%s279 + $0x94] sm:$0xf]
      %v1024 = vld [vmem:[%s279 + $0x98] sm:$0x3]
      %v1025 = vld [vmem:[%s279 + $0x9c] sm:$0xc]
      %v1026 = vld [vmem:[%s279 + $0xa0] sm:$0xf]
      %v1027 = vld [vmem:[%s279 + $0xa4] sm:$0x3]
      %v1028 = vld [vmem:[%s279 + $0xa8] sm:$0xc]
      %v1029 = vld [vmem:[%s279 + $0xac] sm:$0xf]
      %v1030 = vld [vmem:[%s279 + $0xb0] sm:$0x3]
      %v1031 = vld [vmem:[%s279 + $0xb4] sm:$0xc]
      %v1032 = vld [vmem:[%s279 + $0xb8] sm:$0xf]
      %v1033 = vld [vmem:[%s279 + $0xbc] sm:$0x3]
      %v1034 = vld [vmem:[%s279 + $0xc0] sm:$0xc]
      %v1035 = vld [vmem:[%s279 + $0xc4] sm:$0xf]
      %v1036 = vld [vmem:[%s279 + $0xc8] sm:$0x3]
      %v1037 = vld [vmem:[%s279 + $0xcc] sm:$0xc]
      %v1038 = vld [vmem:[%s279 + $0xd0] sm:$0xf]
      %v1039 = vld [vmem:[%s279 + $0xd4] sm:$0x3]
      %v1040 = vld [vmem:[%s279 + $0xd8] sm:$0xc]
      %v1041 = vld [vmem:[%s279 + $0xdc] sm:$0xf]
      %v1042 = vld [vmem:[%s279 + $0xe0] sm:$0x3]
      %v1043 = vld [vmem:[%s279 + $0xe4] sm:$0xc]
      %v1044 = vld [vmem:[%s279 + $0xe8] sm:$0xf]
      %v1045 = vld [vmem:[%s279 + $0xec] sm:$0x3]
      %vm1094 = vcmask 1041408
      %vm1095 = vcmask 1045508
      %vm1096 = vmor %vm1094, %vm1095
      %v1097 = vrot.slane %v986, 6
      %v1098 = vrot.slane %v1097, 4
      %v1099 = vrot.slane %v987, 6
      %v1100 = vsel %vm1096, %v1098, %v1099
      %v1101 = vrot.slane %v1099, 4
      %v1102 = vrot.slane %v988, 6
      %v1103 = vsel %vm1096, %v1101, %v1102
      %v1104 = vrot.slane %v989, 6
      %v1105 = vrot.slane %v1104, 4
      %v1106 = vrot.slane %v990, 6
      %v1107 = vsel %vm1096, %v1105, %v1106
      %v1108 = vrot.slane %v1106, 4
      %v1109 = vrot.slane %v991, 6
      %v1110 = vsel %vm1096, %v1108, %v1109
      %v1111 = vrot.slane %v992, 6
      %v1112 = vrot.slane %v1111, 4
      %v1113 = vrot.slane %v993, 6
      %v1114 = vsel %vm1096, %v1112, %v1113
      %v1115 = vrot.slane %v1113, 4
      %v1116 = vrot.slane %v994, 6
      %v1117 = vsel %vm1096, %v1115, %v1116
      %v1118 = vrot.slane %v995, 6
      %v1119 = vrot.slane %v1118, 4
      %v1120 = vrot.slane %v996, 6
      %v1121 = vsel %vm1096, %v1119, %v1120
      %v1122 = vrot.slane %v1120, 4
      %v1123 = vrot.slane %v997, 6
      %v1124 = vsel %vm1096, %v1122, %v1123
      %v1125 = vrot.slane %v998, 6
      %v1126 = vrot.slane %v1125, 4
      %v1127 = vrot.slane %v999, 6
      %v1128 = vsel %vm1096, %v1126, %v1127
      %v1129 = vrot.slane %v1127, 4
      %v1130 = vrot.slane %v1000, 6
      %v1131 = vsel %vm1096, %v1129, %v1130
      %v1132 = vrot.slane %v1001, 6
      %v1133 = vrot.slane %v1132, 4
      %v1134 = vrot.slane %v1002, 6
      %v1135 = vsel %vm1096, %v1133, %v1134
      %v1136 = vrot.slane %v1134, 4
      %v1137 = vrot.slane %v1003, 6
      %v1138 = vsel %vm1096, %v1136, %v1137
      %v1139 = vrot.slane %v1004, 6
      %v1140 = vrot.slane %v1139, 4
      %v1141 = vrot.slane %v1005, 6
      %v1142 = vsel %vm1096, %v1140, %v1141
      %v1143 = vrot.slane %v1141, 4
      %v1144 = vrot.slane %v1006, 6
      %v1145 = vsel %vm1096, %v1143, %v1144
      %v1146 = vrot.slane %v1007, 6
      %v1147 = vrot.slane %v1146, 4
      %v1148 = vrot.slane %v1008, 6
      %v1149 = vsel %vm1096, %v1147, %v1148
      %v1150 = vrot.slane %v1148, 4
      %v1151 = vrot.slane %v1009, 6
      %v1152 = vsel %vm1096, %v1150, %v1151
      %v1153 = vrot.slane %v1010, 6
      %v1154 = vrot.slane %v1153, 4
      %v1155 = vrot.slane %v1011, 6
      %v1156 = vsel %vm1096, %v1154, %v1155
      %v1157 = vrot.slane %v1155, 4
      %v1158 = vrot.slane %v1012, 6
      %v1159 = vsel %vm1096, %v1157, %v1158
      %v1160 = vrot.slane %v1013, 6
      %v1161 = vrot.slane %v1160, 4
      %v1162 = vrot.slane %v1014, 6
      %v1163 = vsel %vm1096, %v1161, %v1162
      %v1164 = vrot.slane %v1162, 4
      %v1165 = vrot.slane %v1015, 6
      %v1166 = vsel %vm1096, %v1164, %v1165
      %v1167 = vrot.slane %v1016, 6
      %v1168 = vrot.slane %v1167, 4
      %v1169 = vrot.slane %v1017, 6
      %v1170 = vsel %vm1096, %v1168, %v1169
      %v1171 = vrot.slane %v1169, 4
      %v1172 = vrot.slane %v1018, 6
      %v1173 = vsel %vm1096, %v1171, %v1172
      %v1174 = vrot.slane %v1019, 6
      %v1175 = vrot.slane %v1174, 4
      %v1176 = vrot.slane %v1020, 6
      %v1177 = vsel %vm1096, %v1175, %v1176
      %v1178 = vrot.slane %v1176, 4
      %v1179 = vrot.slane %v1021, 6
      %v1180 = vsel %vm1096, %v1178, %v1179
      %v1181 = vrot.slane %v1022, 6
      %v1182 = vrot.slane %v1181, 4
      %v1183 = vrot.slane %v1023, 6
      %v1184 = vsel %vm1096, %v1182, %v1183
      %v1185 = vrot.slane %v1183, 4
      %v1186 = vrot.slane %v1024, 6
      %v1187 = vsel %vm1096, %v1185, %v1186
      %v1188 = vrot.slane %v1025, 6
      %v1189 = vrot.slane %v1188, 4
      %v1190 = vrot.slane %v1026, 6
      %v1191 = vsel %vm1096, %v1189, %v1190
      %v1192 = vrot.slane %v1190, 4
      %v1193 = vrot.slane %v1027, 6
      %v1194 = vsel %vm1096, %v1192, %v1193
      %v1195 = vrot.slane %v1028, 6
      %v1196 = vrot.slane %v1195, 4
      %v1197 = vrot.slane %v1029, 6
      %v1198 = vsel %vm1096, %v1196, %v1197
      %v1199 = vrot.slane %v1197, 4
      %v1200 = vrot.slane %v1030, 6
      %v1201 = vsel %vm1096, %v1199, %v1200
      %v1202 = vrot.slane %v1031, 6
      %v1203 = vrot.slane %v1202, 4
      %v1204 = vrot.slane %v1032, 6
      %v1205 = vsel %vm1096, %v1203, %v1204
      %v1206 = vrot.slane %v1204, 4
      %v1207 = vrot.slane %v1033, 6
      %v1208 = vsel %vm1096, %v1206, %v1207
      %v1209 = vunpack.c.l.b16 %v1100
      %v1210 = vunpack.c.l.b16 %v1103
      %v1211 = vunpack.c.l.b16 %v1107
      %v1212 = vunpack.c.l.b16 %v1110
      %v1213 = vunpack.c.l.b16 %v1114
      %v1214 = vunpack.c.l.b16 %v1117
      %v1215 = vunpack.c.l.b16 %v1121
      %v1216 = vunpack.c.l.b16 %v1124
      %v1217 = vunpack.c.l.b16 %v1128
      %v1218 = vunpack.c.l.b16 %v1131
      %v1219 = vunpack.c.l.b16 %v1135
      %v1220 = vunpack.c.l.b16 %v1138
      %v1221 = vunpack.c.l.b16 %v1142
      %v1222 = vunpack.c.l.b16 %v1145
      %v1223 = vunpack.c.l.b16 %v1149
      %v1224 = vunpack.c.l.b16 %v1152
      %v1225 = vunpack.c.l.b16 %v1156
      %v1226 = vunpack.c.l.b16 %v1159
      %v1227 = vunpack.c.l.b16 %v1163
      %v1228 = vunpack.c.l.b16 %v1166
      %v1229 = vunpack.c.l.b16 %v1170
      %v1230 = vunpack.c.l.b16 %v1173
      %v1231 = vunpack.c.l.b16 %v1177
      %v1232 = vunpack.c.l.b16 %v1180
      %v1233 = vunpack.c.l.b16 %v1184
      %v1234 = vunpack.c.l.b16 %v1187
      %v1235 = vunpack.c.l.b16 %v1191
      %v1236 = vunpack.c.l.b16 %v1194
      %v1237 = vunpack.c.l.b16 %v1198
      %v1238 = vunpack.c.l.b16 %v1201
      %v1239 = vunpack.c.l.b16 %v1205
      %v1240 = vunpack.c.l.b16 %v1208
      %v1241 = vpack.c.b16 %v1210, %v1209
      %v1242 = vpack.c.b16 %v1212, %v1211
      %v1243 = vpack.c.b16 %v1214, %v1213
      %v1244 = vpack.c.b16 %v1216, %v1215
      %v1245 = vpack.c.b16 %v1218, %v1217
      %v1246 = vpack.c.b16 %v1220, %v1219
      %v1247 = vpack.c.b16 %v1222, %v1221
      %v1248 = vpack.c.b16 %v1224, %v1223
      %v1249 = vpack.c.b16 %v1226, %v1225
      %v1250 = vpack.c.b16 %v1228, %v1227
      %v1251 = vpack.c.b16 %v1230, %v1229
      %v1252 = vpack.c.b16 %v1232, %v1231
      %v1253 = vpack.c.b16 %v1234, %v1233
      %v1254 = vpack.c.b16 %v1236, %v1235
      %v1255 = vpack.c.b16 %v1238, %v1237
      %v1256 = vpack.c.b16 %v1240, %v1239
      %1273 = vst [vmem:[#allocation3 + $0x10] sm:$0xff] %v1241
      %1274 = vst [vmem:[#allocation3 + $0x58] sm:$0xff] %v1242
      %1275 = vst [vmem:[#allocation3 + $0xa0] sm:$0xff] %v1243
      %1276 = vst [vmem:[#allocation3 + $0xe8] sm:$0xff] %v1244
      %1277 = vst [vmem:[#allocation3 + $0x130] sm:$0xff] %v1245
      %1278 = vst [vmem:[#allocation3 + $0x178] sm:$0xff] %v1246
      %1279 = vst [vmem:[#allocation3 + $0x1c0] sm:$0xff] %v1247
      %1280 = vst [vmem:[#allocation3 + $0x208] sm:$0xff] %v1248
      %1281 = vst [vmem:[#allocation3 + $0x250] sm:$0xff] %v1249
      %1282 = vst [vmem:[#allocation3 + $0x298] sm:$0xff] %v1250
      %1283 = vst [vmem:[#allocation3 + $0x2e0] sm:$0xff] %v1251
      %1284 = vst [vmem:[#allocation3 + $0x328] sm:$0xff] %v1252
      %1285 = vst [vmem:[#allocation3 + $0x370] sm:$0xff] %v1253
      %1286 = vst [vmem:[#allocation3 + $0x3b8] sm:$0xff] %v1254
      %1287 = vst [vmem:[#allocation3 + $0x400] sm:$0xff] %v1255
      %1288 = vst [vmem:[#allocation3 + $0x448] sm:$0xff] %v1256
      %v1295 = vrot.slane %v1034, 6
      %v1296 = vrot.slane %v1295, 4
      %v1297 = vrot.slane %v1035, 6
      %v1298 = vsel %vm1096, %v1296, %v1297
      %v1299 = vrot.slane %v1297, 4
      %v1300 = vrot.slane %v1036, 6
      %v1301 = vsel %vm1096, %v1299, %v1300
      %v1302 = vrot.slane %v1037, 6
      %v1303 = vrot.slane %v1302, 4
      %v1304 = vrot.slane %v1038, 6
      %v1305 = vsel %vm1096, %v1303, %v1304
      %v1306 = vrot.slane %v1304, 4
      %v1307 = vrot.slane %v1039, 6
      %v1308 = vsel %vm1096, %v1306, %v1307
      %v1309 = vunpack.c.l.b16 %v1298
      %v1310 = vunpack.c.l.b16 %v1301
      %v1311 = vunpack.c.l.b16 %v1305
      %v1312 = vunpack.c.l.b16 %v1308
      %v1313 = vpack.c.b16 %v1310, %v1309
      %v1314 = vpack.c.b16 %v1312, %v1311
      %1317 = vst [vmem:[#allocation3 + $0x28] sm:$0xff] %v1243
      %1318 = vst [vmem:[#allocation3 + $0x70] sm:$0xff] %v1244
      %1319 = vst [vmem:[#allocation3 + $0xb8] sm:$0xff] %v1245
      %1320 = vst [vmem:[#allocation3 + $0x100] sm:$0xff] %v1246
      %1321 = vst [vmem:[#allocation3 + $0x148] sm:$0xff] %v1247
      %1322 = vst [vmem:[#allocation3 + $0x190] sm:$0xff] %v1248
      %1323 = vst [vmem:[#allocation3 + $0x1d8] sm:$0xff] %v1249
      %1324 = vst [vmem:[#allocation3 + $0x220] sm:$0xff] %v1250
      %1325 = vst [vmem:[#allocation3 + $0x268] sm:$0xff] %v1251
      %1326 = vst [vmem:[#allocation3 + $0x2b0] sm:$0xff] %v1252
      %1327 = vst [vmem:[#allocation3 + $0x2f8] sm:$0xff] %v1253
      %1328 = vst [vmem:[#allocation3 + $0x340] sm:$0xff] %v1254
      %1329 = vst [vmem:[#allocation3 + $0x388] sm:$0xff] %v1255
      %1330 = vst [vmem:[#allocation3 + $0x3d0] sm:$0xff] %v1256
      %1331 = vst [vmem:[#allocation3 + $0x418] sm:$0xff] %v1313
      %1332 = vst [vmem:[#allocation3 + $0x460] sm:$0xff] %v1314
      %v1339 = vrot.slane %v1040, 6
      %v1340 = vrot.slane %v1339, 4
      %v1341 = vrot.slane %v1041, 6
      %v1342 = vsel %vm1096, %v1340, %v1341
      %v1343 = vrot.slane %v1341, 4
      %v1344 = vrot.slane %v1042, 6
      %v1345 = vsel %vm1096, %v1343, %v1344
      %v1346 = vrot.slane %v1043, 6
      %v1347 = vrot.slane %v1346, 4
      %v1348 = vrot.slane %v1044, 6
      %v1349 = vsel %vm1096, %v1347, %v1348
      %v1350 = vrot.slane %v1348, 4
      %v1351 = vrot.slane %v1045, 6
      %v1352 = vsel %vm1096, %v1350, %v1351
      %v1353 = vunpack.c.l.b16 %v1342
      %v1354 = vunpack.c.l.b16 %v1345
      %v1355 = vunpack.c.l.b16 %v1349
      %v1356 = vunpack.c.l.b16 %v1352
      %v1357 = vpack.c.b16 %v1354, %v1353
      %v1358 = vpack.c.b16 %v1356, %v1355
      %1361 = vst [vmem:[#allocation3 + $0x40] sm:$0xff] %v1245
      %1362 = vst [vmem:[#allocation3 + $0x88] sm:$0xff] %v1246
      %1363 = vst [vmem:[#allocation3 + $0xd0] sm:$0xff] %v1247
      %1364 = vst [vmem:[#allocation3 + $0x118] sm:$0xff] %v1248
      %1365 = vst [vmem:[#allocation3 + $0x160] sm:$0xff] %v1249
      %1366 = vst [vmem:[#allocation3 + $0x1a8] sm:$0xff] %v1250
      %1367 = vst [vmem:[#allocation3 + $0x1f0] sm:$0xff] %v1251
      %1368 = vst [vmem:[#allocation3 + $0x238] sm:$0xff] %v1252
      %1369 = vst [vmem:[#allocation3 + $0x280] sm:$0xff] %v1253
      %1370 = vst [vmem:[#allocation3 + $0x2c8] sm:$0xff] %v1254
      %1371 = vst [vmem:[#allocation3 + $0x310] sm:$0xff] %v1255
      %1372 = vst [vmem:[#allocation3 + $0x358] sm:$0xff] %v1256
      %1373 = vst [vmem:[#allocation3 + $0x3a0] sm:$0xff] %v1313
      %1374 = vst [vmem:[#allocation3 + $0x3e8] sm:$0xff] %v1314
      %1375 = vst [vmem:[#allocation3 + $0x430] sm:$0xff] %v1357
      %1376 = vst [vmem:[#allocation3 + $0x478] sm:$0xff] %v1358
      %v1377 = vld [vmem:[#allocation3] sm:$0xff]
      %v1378 = vld [vmem:[#allocation3 + $0x8] sm:$0xff]
      %v1379 = vld [vmem:[#allocation3 + $0x10] sm:$0xff]
      %v1380 = vld [vmem:[#allocation3 + $0x18] sm:$0xff]
      %v1381 = vld [vmem:[#allocation3 + $0x20] sm:$0xff]
      %v1382 = vld [vmem:[#allocation3 + $0x28] sm:$0xff]
      %v1383 = vld [vmem:[#allocation3 + $0x30] sm:$0xff]
      %v1384 = vld [vmem:[#allocation3 + $0x38] sm:$0xff]
      %v1385 = vld [vmem:[#allocation3 + $0x40] sm:$0xff]
      %v1386 = vld [vmem:[#allocation3 + $0x48] sm:$0xff]
      %v1387 = vld [vmem:[#allocation3 + $0x50] sm:$0xff]
      %v1388 = vld [vmem:[#allocation3 + $0x58] sm:$0xff]
      %v1389 = vld [vmem:[#allocation3 + $0x60] sm:$0xff]
      %v1390 = vld [vmem:[#allocation3 + $0x68] sm:$0xff]
      %v1391 = vld [vmem:[#allocation3 + $0x70] sm:$0xff]
      %v1392 = vld [vmem:[#allocation3 + $0x78] sm:$0xff]
      %v1393 = vld [vmem:[#allocation3 + $0x80] sm:$0xff]
      %v1394 = vld [vmem:[#allocation3 + $0x88] sm:$0xff]
      %v1395 = vld [vmem:[#allocation3 + $0x90] sm:$0xff]
      %v1396 = vld [vmem:[#allocation3 + $0x98] sm:$0xff]
      %v1397 = vld [vmem:[#allocation3 + $0xa0] sm:$0xff]
      %v1398 = vld [vmem:[#allocation3 + $0xa8] sm:$0xff]
      %v1399 = vld [vmem:[#allocation3 + $0xb0] sm:$0xff]
      %v1400 = vld [vmem:[#allocation3 + $0xb8] sm:$0xff]
      %v1401 = vld [vmem:[#allocation3 + $0xc0] sm:$0xff]
      %v1402 = vld [vmem:[#allocation3 + $0xc8] sm:$0xff]
      %v1403 = vld [vmem:[#allocation3 + $0xd0] sm:$0xff]
      %v1404 = vld [vmem:[#allocation3 + $0xd8] sm:$0xff]
      %v1405 = vld [vmem:[#allocation3 + $0xe0] sm:$0xff]
      %v1406 = vld [vmem:[#allocation3 + $0xe8] sm:$0xff]
      %v1407 = vld [vmem:[#allocation3 + $0xf0] sm:$0xff]
      %v1408 = vld [vmem:[#allocation3 + $0xf8] sm:$0xff]
      %v1409 = vld [vmem:[#allocation3 + $0x100] sm:$0xff]
      %v1410 = vld [vmem:[#allocation3 + $0x108] sm:$0xff]
      %v1411 = vld [vmem:[#allocation3 + $0x110] sm:$0xff]
      %v1412 = vld [vmem:[#allocation3 + $0x118] sm:$0xff]
      %v1413 = vld [vmem:[#allocation3 + $0x120] sm:$0xff]
      %v1414 = vld [vmem:[#allocation3 + $0x128] sm:$0xff]
      %v1415 = vld [vmem:[#allocation3 + $0x130] sm:$0xff]
      %v1416 = vld [vmem:[#allocation3 + $0x138] sm:$0xff]
      %v1417 = vld [vmem:[#allocation3 + $0x140] sm:$0xff]
      %v1418 = vld [vmem:[#allocation3 + $0x148] sm:$0xff]
      %v1419 = vld [vmem:[#allocation3 + $0x150] sm:$0xff]
      %v1420 = vld [vmem:[#allocation3 + $0x158] sm:$0xff]
      %v1421 = vld [vmem:[#allocation3 + $0x160] sm:$0xff]
      %v1422 = vld [vmem:[#allocation3 + $0x168] sm:$0xff]
      %v1423 = vld [vmem:[#allocation3 + $0x170] sm:$0xff]
      %v1424 = vld [vmem:[#allocation3 + $0x178] sm:$0xff]
      %v1425 = vld [vmem:[#allocation3 + $0x180] sm:$0xff]
      %v1426 = vld [vmem:[#allocation3 + $0x188] sm:$0xff]
      %v1427 = vld [vmem:[#allocation3 + $0x190] sm:$0xff]
      %v1428 = vld [vmem:[#allocation3 + $0x198] sm:$0xff]
      %v1429 = vld [vmem:[#allocation3 + $0x1a0] sm:$0xff]
      %v1430 = vld [vmem:[#allocation3 + $0x1a8] sm:$0xff]
      %v1431 = vld [vmem:[#allocation3 + $0x1b0] sm:$0xff]
      %v1432 = vld [vmem:[#allocation3 + $0x1b8] sm:$0xff]
      %v1433 = vld [vmem:[#allocation3 + $0x1c0] sm:$0xff]
      %v1434 = vld [vmem:[#allocation3 + $0x1c8] sm:$0xff]
      %v1435 = vld [vmem:[#allocation3 + $0x1d0] sm:$0xff]
      %v1436 = vld [vmem:[#allocation3 + $0x1d8] sm:$0xff]
      %v1437 = vld [vmem:[#allocation3 + $0x1e0] sm:$0xff]
      %v1438 = vld [vmem:[#allocation3 + $0x1e8] sm:$0xff]
      %v1439 = vld [vmem:[#allocation3 + $0x1f0] sm:$0xff]
      %v1440 = vld [vmem:[#allocation3 + $0x1f8] sm:$0xff]
      %v1441 = vld [vmem:[#allocation3 + $0x200] sm:$0xff]
      %v1442 = vld [vmem:[#allocation3 + $0x208] sm:$0xff]
      %v1443 = vld [vmem:[#allocation3 + $0x210] sm:$0xff]
      %v1444 = vld [vmem:[#allocation3 + $0x218] sm:$0xff]
      %v1445 = vld [vmem:[#allocation3 + $0x220] sm:$0xff]
      %v1446 = vld [vmem:[#allocation3 + $0x228] sm:$0xff]
      %v1447 = vld [vmem:[#allocation3 + $0x230] sm:$0xff]
      %v1448 = vld [vmem:[#allocation3 + $0x238] sm:$0xff]
      %v1449 = vld [vmem:[#allocation3 + $0x240] sm:$0xff]
      %v1450 = vld [vmem:[#allocation3 + $0x248] sm:$0xff]
      %v1451 = vld [vmem:[#allocation3 + $0x250] sm:$0xff]
      %v1452 = vld [vmem:[#allocation3 + $0x258] sm:$0xff]
      %v1453 = vld [vmem:[#allocation3 + $0x260] sm:$0xff]
      %v1454 = vld [vmem:[#allocation3 + $0x268] sm:$0xff]
      %v1455 = vld [vmem:[#allocation3 + $0x270] sm:$0xff]
      %v1456 = vld [vmem:[#allocation3 + $0x278] sm:$0xff]
      %v1457 = vld [vmem:[#allocation3 + $0x280] sm:$0xff]
      %v1458 = vld [vmem:[#allocation3 + $0x288] sm:$0xff]
      %v1459 = vld [vmem:[#allocation3 + $0x290] sm:$0xff]
      %v1460 = vld [vmem:[#allocation3 + $0x298] sm:$0xff]
      %v1461 = vld [vmem:[#allocation3 + $0x2a0] sm:$0xff]
      %v1462 = vld [vmem:[#allocation3 + $0x2a8] sm:$0xff]
      %v1463 = vld [vmem:[#allocation3 + $0x2b0] sm:$0xff]
      %v1464 = vld [vmem:[#allocation3 + $0x2b8] sm:$0xff]
      %v1465 = vld [vmem:[#allocation3 + $0x2c0] sm:$0xff]
      %v1466 = vld [vmem:[#allocation3 + $0x2c8] sm:$0xff]
      %v1467 = vld [vmem:[#allocation3 + $0x2d0] sm:$0xff]
      %v1468 = vld [vmem:[#allocation3 + $0x2d8] sm:$0xff]
      %v1469 = vld [vmem:[#allocation3 + $0x2e0] sm:$0xff]
      %v1470 = vld [vmem:[#allocation3 + $0x2e8] sm:$0xff]
      %v1471 = vld [vmem:[#allocation3 + $0x2f0] sm:$0xff]
      %v1472 = vld [vmem:[#allocation3 + $0x2f8] sm:$0xff]
      %v1473 = vld [vmem:[#allocation3 + $0x300] sm:$0xff]
      %v1474 = vld [vmem:[#allocation3 + $0x308] sm:$0xff]
      %v1475 = vld [vmem:[#allocation3 + $0x310] sm:$0xff]
      %v1476 = vld [vmem:[#allocation3 + $0x318] sm:$0xff]
      %v1477 = vld [vmem:[#allocation3 + $0x320] sm:$0xff]
      %v1478 = vld [vmem:[#allocation3 + $0x328] sm:$0xff]
      %v1479 = vld [vmem:[#allocation3 + $0x330] sm:$0xff]
      %v1480 = vld [vmem:[#allocation3 + $0x338] sm:$0xff]
      %v1481 = vld [vmem:[#allocation3 + $0x340] sm:$0xff]
      %v1482 = vld [vmem:[#allocation3 + $0x348] sm:$0xff]
      %v1483 = vld [vmem:[#allocation3 + $0x350] sm:$0xff]
      %v1484 = vld [vmem:[#allocation3 + $0x358] sm:$0xff]
      %v1485 = vld [vmem:[#allocation3 + $0x360] sm:$0xff]
      %v1486 = vld [vmem:[#allocation3 + $0x368] sm:$0xff]
      %v1487 = vld [vmem:[#allocation3 + $0x370] sm:$0xff]
      %v1488 = vld [vmem:[#allocation3 + $0x378] sm:$0xff]
      %v1489 = vld [vmem:[#allocation3 + $0x380] sm:$0xff]
      %v1490 = vld [vmem:[#allocation3 + $0x388] sm:$0xff]
      %v1491 = vld [vmem:[#allocation3 + $0x390] sm:$0xff]
      %v1492 = vld [vmem:[#allocation3 + $0x398] sm:$0xff]
      %v1493 = vld [vmem:[#allocation3 + $0x3a0] sm:$0xff]
      %v1494 = vld [vmem:[#allocation3 + $0x3a8] sm:$0xff]
      %v1495 = vld [vmem:[#allocation3 + $0x3b0] sm:$0xff]
      %v1496 = vld [vmem:[#allocation3 + $0x3b8] sm:$0xff]
      %v1497 = vld [vmem:[#allocation3 + $0x3c0] sm:$0xff]
      %v1498 = vld [vmem:[#allocation3 + $0x3c8] sm:$0xff]
      %v1499 = vld [vmem:[#allocation3 + $0x3d0] sm:$0xff]
      %v1500 = vld [vmem:[#allocation3 + $0x3d8] sm:$0xff]
      %v1501 = vld [vmem:[#allocation3 + $0x3e0] sm:$0xff]
      %v1502 = vld [vmem:[#allocation3 + $0x3e8] sm:$0xff]
      %v1503 = vld [vmem:[#allocation3 + $0x3f0] sm:$0xff]
      %v1504 = vld [vmem:[#allocation3 + $0x3f8] sm:$0xff]
      %v1505 = vld [vmem:[#allocation3 + $0x400] sm:$0xff]
      %v1506 = vld [vmem:[#allocation3 + $0x408] sm:$0xff]
      %v1507 = vld [vmem:[#allocation3 + $0x410] sm:$0xff]
      %v1508 = vld [vmem:[#allocation3 + $0x418] sm:$0xff]
      %v1509 = vld [vmem:[#allocation3 + $0x420] sm:$0xff]
      %v1510 = vld [vmem:[#allocation3 + $0x428] sm:$0xff]
      %v1511 = vld [vmem:[#allocation3 + $0x430] sm:$0xff]
      %v1512 = vld [vmem:[#allocation3 + $0x438] sm:$0xff]
      %v1513 = vld [vmem:[#allocation3 + $0x440] sm:$0xff]
      %v1514 = vld [vmem:[#allocation3 + $0x448] sm:$0xff]
      %v1515 = vld [vmem:[#allocation3 + $0x450] sm:$0xff]
      %v1516 = vld [vmem:[#allocation3 + $0x458] sm:$0xff]
      %v1517 = vld [vmem:[#allocation3 + $0x460] sm:$0xff]
      %v1518 = vld [vmem:[#allocation3 + $0x468] sm:$0xff]
      %v1519 = vld [vmem:[#allocation3 + $0x470] sm:$0xff]
      %v1520 = vld [vmem:[#allocation3 + $0x478] sm:$0xff]
      %v1521 = vld [vmem:[#allocation2] sm:$0xff]
      %v1522 = vld [vmem:[#allocation2 + $0x8] sm:$0xff]
      %v1523 = vld [vmem:[#allocation2 + $0x10] sm:$0xff]
      %v1524 = vld [vmem:[#allocation2 + $0x18] sm:$0xff]
      %v1525 = vld [vmem:[#allocation2 + $0x20] sm:$0xff]
      %v1526 = vld [vmem:[#allocation2 + $0x28] sm:$0xff]
      %v1527 = vld [vmem:[#allocation2 + $0x30] sm:$0xff]
      %v1528 = vld [vmem:[#allocation2 + $0x38] sm:$0xff]
      %v1529 = vld [vmem:[#allocation2 + $0x40] sm:$0xff]
      %v1530 = vld [vmem:[#allocation2 + $0x48] sm:$0xff]
      %v1531 = vld [vmem:[#allocation2 + $0x50] sm:$0xff]
      %v1532 = vld [vmem:[#allocation2 + $0x58] sm:$0xff]
      %v1533 = vld [vmem:[#allocation2 + $0x60] sm:$0xff]
      %v1534 = vld [vmem:[#allocation2 + $0x68] sm:$0xff]
      %v1535 = vld [vmem:[#allocation2 + $0x70] sm:$0xff]
      %v1536 = vld [vmem:[#allocation2 + $0x78] sm:$0xff]
      %v1537 = vld [vmem:[#allocation2 + $0x80] sm:$0xff]
      %v1538 = vld [vmem:[#allocation2 + $0x88] sm:$0xff]
      %v1539 = vld [vmem:[#allocation2 + $0x90] sm:$0xff]
      %v1540 = vld [vmem:[#allocation2 + $0x98] sm:$0xff]
      %v1541 = vld [vmem:[#allocation2 + $0xa0] sm:$0xff]
      %v1542 = vld [vmem:[#allocation2 + $0xa8] sm:$0xff]
      %v1543 = vld [vmem:[#allocation2 + $0xb0] sm:$0xff]
      %v1544 = vld [vmem:[#allocation2 + $0xb8] sm:$0xff]
      %v1545 = vld [vmem:[#allocation2 + $0xc0] sm:$0xff]
      %v1546 = vld [vmem:[#allocation2 + $0xc8] sm:$0xff]
      %v1547 = vld [vmem:[#allocation2 + $0xd0] sm:$0xff]
      %v1548 = vld [vmem:[#allocation2 + $0xd8] sm:$0xff]
      %v1549 = vld [vmem:[#allocation2 + $0xe0] sm:$0xff]
      %v1550 = vld [vmem:[#allocation2 + $0xe8] sm:$0xff]
      %v1551 = vld [vmem:[#allocation2 + $0xf0] sm:$0xff]
      %v1552 = vld [vmem:[#allocation2 + $0xf8] sm:$0xff]
      %v1553 = vld [vmem:[#allocation2 + $0x100] sm:$0xff]
      %v1554 = vld [vmem:[#allocation2 + $0x108] sm:$0xff]
      %v1555 = vld [vmem:[#allocation2 + $0x110] sm:$0xff]
      %v1556 = vld [vmem:[#allocation2 + $0x118] sm:$0xff]
      %v1557 = vld [vmem:[#allocation2 + $0x120] sm:$0xff]
      %v1558 = vld [vmem:[#allocation2 + $0x128] sm:$0xff]
      %v1559 = vld [vmem:[#allocation2 + $0x130] sm:$0xff]
      %v1560 = vld [vmem:[#allocation2 + $0x138] sm:$0xff]
      %v1561 = vld [vmem:[#allocation2 + $0x140] sm:$0xff]
      %v1562 = vld [vmem:[#allocation2 + $0x148] sm:$0xff]
      %v1563 = vld [vmem:[#allocation2 + $0x150] sm:$0xff]
      %v1564 = vld [vmem:[#allocation2 + $0x158] sm:$0xff]
      %v1565 = vld [vmem:[#allocation2 + $0x160] sm:$0xff]
      %v1566 = vld [vmem:[#allocation2 + $0x168] sm:$0xff]
      %v1567 = vld [vmem:[#allocation2 + $0x170] sm:$0xff]
      %v1568 = vld [vmem:[#allocation2 + $0x178] sm:$0xff]
      %v1569 = vld [vmem:[#allocation2 + $0x180] sm:$0xff]
      %v1570 = vld [vmem:[#allocation2 + $0x188] sm:$0xff]
      %v1571 = vld [vmem:[#allocation2 + $0x190] sm:$0xff]
      %v1572 = vld [vmem:[#allocation2 + $0x198] sm:$0xff]
      %v1573 = vld [vmem:[#allocation2 + $0x1a0] sm:$0xff]
      %v1574 = vld [vmem:[#allocation2 + $0x1a8] sm:$0xff]
      %v1575 = vld [vmem:[#allocation2 + $0x1b0] sm:$0xff]
      %v1576 = vld [vmem:[#allocation2 + $0x1b8] sm:$0xff]
      %v1577 = vld [vmem:[#allocation2 + $0x1c0] sm:$0xff]
      %v1578 = vld [vmem:[#allocation2 + $0x1c8] sm:$0xff]
      %v1579 = vld [vmem:[#allocation2 + $0x1d0] sm:$0xff]
      %v1580 = vld [vmem:[#allocation2 + $0x1d8] sm:$0xff]
      %v1581 = vld [vmem:[#allocation2 + $0x1e0] sm:$0xff]
      %v1582 = vld [vmem:[#allocation2 + $0x1e8] sm:$0xff]
      %v1583 = vld [vmem:[#allocation2 + $0x1f0] sm:$0xff]
      %v1584 = vld [vmem:[#allocation2 + $0x1f8] sm:$0xff]
      %v1585 = vld [vmem:[%s288] sm:$0xff]
      %v1586 = vld [vmem:[%s288 + $0x8] sm:$0xff]
      %v1587 = vld [vmem:[%s288 + $0x10] sm:$0xff]
      %v1588 = vld [vmem:[%s288 + $0x18] sm:$0xff]
      %v1589 = vld [vmem:[%s288 + $0x20] sm:$0xff]
      %v1590 = vld [vmem:[%s288 + $0x28] sm:$0xff]
      %v1591 = vld [vmem:[%s288 + $0x30] sm:$0xff]
      %v1592 = vld [vmem:[%s288 + $0x38] sm:$0xff]
      %v1593 = vld [vmem:[%s288 + $0x40] sm:$0xff]
      %v1594 = vld [vmem:[%s288 + $0x48] sm:$0xff]
      %v1595 = vld [vmem:[%s288 + $0x50] sm:$0xff]
      %v1596 = vld [vmem:[%s288 + $0x58] sm:$0xff]
      %v1597 = vld [vmem:[%s288 + $0x60] sm:$0xff]
      %v1598 = vld [vmem:[%s288 + $0x68] sm:$0xff]
      %v1599 = vld [vmem:[%s288 + $0x70] sm:$0xff]
      %v1600 = vld [vmem:[%s288 + $0x78] sm:$0xff]
      %v1601 = vld [vmem:[%s288 + $0x80] sm:$0xff]
      %v1602 = vld [vmem:[%s288 + $0x88] sm:$0xff]
      %v1603 = vld [vmem:[%s288 + $0x90] sm:$0xff]
      %v1604 = vld [vmem:[%s288 + $0x98] sm:$0xff]
      %v1605 = vld [vmem:[%s288 + $0xa0] sm:$0xff]
      %v1606 = vld [vmem:[%s288 + $0xa8] sm:$0xff]
      %v1607 = vld [vmem:[%s288 + $0xb0] sm:$0xff]
      %v1608 = vld [vmem:[%s288 + $0xb8] sm:$0xff]
      %v1609 = vld [vmem:[%s288 + $0xc0] sm:$0xff]
      %v1610 = vld [vmem:[%s288 + $0xc8] sm:$0xff]
      %v1611 = vld [vmem:[%s288 + $0xd0] sm:$0xff]
      %v1612 = vld [vmem:[%s288 + $0xd8] sm:$0xff]
      %v1613 = vld [vmem:[%s288 + $0xe0] sm:$0xff]
      %v1614 = vld [vmem:[%s288 + $0xe8] sm:$0xff]
      %v1615 = vld [vmem:[%s288 + $0xf0] sm:$0xff]
      %v1616 = vld [vmem:[%s288 + $0xf8] sm:$0xff]
      %v1617 = vld [vmem:[%s288 + $0x100] sm:$0xff]
      %v1618 = vld [vmem:[%s288 + $0x108] sm:$0xff]
      %v1619 = vld [vmem:[%s288 + $0x110] sm:$0xff]
      %v1620 = vld [vmem:[%s288 + $0x118] sm:$0xff]
      %v1621 = vld [vmem:[%s288 + $0x120] sm:$0xff]
      %v1622 = vld [vmem:[%s288 + $0x128] sm:$0xff]
      %v1623 = vld [vmem:[%s288 + $0x130] sm:$0xff]
      %v1624 = vld [vmem:[%s288 + $0x138] sm:$0xff]
      %v1625 = vld [vmem:[%s288 + $0x140] sm:$0xff]
      %v1626 = vld [vmem:[%s288 + $0x148] sm:$0xff]
      %v1627 = vld [vmem:[%s288 + $0x150] sm:$0xff]
      %v1628 = vld [vmem:[%s288 + $0x158] sm:$0xff]
      %v1629 = vld [vmem:[%s288 + $0x160] sm:$0xff]
      %v1630 = vld [vmem:[%s288 + $0x168] sm:$0xff]
      %v1631 = vld [vmem:[%s288 + $0x170] sm:$0xff]
      %v1632 = vld [vmem:[%s288 + $0x178] sm:$0xff]
      %v1633 = vld [vmem:[%s288 + $0x180] sm:$0xff]
      %v1634 = vld [vmem:[%s288 + $0x188] sm:$0xff]
      %v1635 = vld [vmem:[%s288 + $0x190] sm:$0xff]
      %v1636 = vld [vmem:[%s288 + $0x198] sm:$0xff]
      %v1637 = vld [vmem:[%s288 + $0x1a0] sm:$0xff]
      %v1638 = vld [vmem:[%s288 + $0x1a8] sm:$0xff]
      %v1639 = vld [vmem:[%s288 + $0x1b0] sm:$0xff]
      %v1640 = vld [vmem:[%s288 + $0x1b8] sm:$0xff]
      %v1641 = vld [vmem:[%s288 + $0x1c0] sm:$0xff]
      %v1642 = vld [vmem:[%s288 + $0x1c8] sm:$0xff]
      %v1643 = vld [vmem:[%s288 + $0x1d0] sm:$0xff]
      %v1644 = vld [vmem:[%s288 + $0x1d8] sm:$0xff]
      %v1645 = vld [vmem:[%s288 + $0x1e0] sm:$0xff]
      %v1646 = vld [vmem:[%s288 + $0x1e8] sm:$0xff]
      %v1647 = vld [vmem:[%s288 + $0x1f0] sm:$0xff]
      %v1648 = vld [vmem:[%s288 + $0x1f8] sm:$0xff]
      %v1649 = vld [vmem:[%s288 + $0x200] sm:$0xff]
      %v1650 = vld [vmem:[%s288 + $0x208] sm:$0xff]
      %v1651 = vld [vmem:[%s288 + $0x210] sm:$0xff]
      %v1652 = vld [vmem:[%s288 + $0x218] sm:$0xff]
      %v1653 = vld [vmem:[%s288 + $0x220] sm:$0xff]
      %v1654 = vld [vmem:[%s288 + $0x228] sm:$0xff]
      %v1655 = vld [vmem:[%s288 + $0x230] sm:$0xff]
      %v1656 = vld [vmem:[%s288 + $0x238] sm:$0xff]
      %v1657 = vld [vmem:[%s288 + $0x240] sm:$0xff]
      %v1658 = vld [vmem:[%s288 + $0x248] sm:$0xff]
      %v1659 = vld [vmem:[%s288 + $0x250] sm:$0xff]
      %v1660 = vld [vmem:[%s288 + $0x258] sm:$0xff]
      %v1661 = vld [vmem:[%s288 + $0x260] sm:$0xff]
      %v1662 = vld [vmem:[%s288 + $0x268] sm:$0xff]
      %v1663 = vld [vmem:[%s288 + $0x270] sm:$0xff]
      %v1664 = vld [vmem:[%s288 + $0x278] sm:$0xff]
      %v1665 = vld [vmem:[%s288 + $0x280] sm:$0xff]
      %v1666 = vld [vmem:[%s288 + $0x288] sm:$0xff]
      %v1667 = vld [vmem:[%s288 + $0x290] sm:$0xff]
      %v1668 = vld [vmem:[%s288 + $0x298] sm:$0xff]
      %v1669 = vld [vmem:[%s288 + $0x2a0] sm:$0xff]
      %v1670 = vld [vmem:[%s288 + $0x2a8] sm:$0xff]
      %v1671 = vld [vmem:[%s288 + $0x2b0] sm:$0xff]
      %v1672 = vld [vmem:[%s288 + $0x2b8] sm:$0xff]
      %v1673 = vld [vmem:[%s288 + $0x2c0] sm:$0xff]
      %v1674 = vld [vmem:[%s288 + $0x2c8] sm:$0xff]
      %v1675 = vld [vmem:[%s288 + $0x2d0] sm:$0xff]
      %v1676 = vld [vmem:[%s288 + $0x2d8] sm:$0xff]
      %v1677 = vld [vmem:[%s288 + $0x2e0] sm:$0xff]
      %v1678 = vld [vmem:[%s288 + $0x2e8] sm:$0xff]
      %v1679 = vld [vmem:[%s288 + $0x2f0] sm:$0xff]
      %v1680 = vld [vmem:[%s288 + $0x2f8] sm:$0xff]
      %v1681 = vld [vmem:[%s288 + $0x300] sm:$0xff]
      %v1682 = vld [vmem:[%s288 + $0x308] sm:$0xff]
      %v1683 = vld [vmem:[%s288 + $0x310] sm:$0xff]
      %v1684 = vld [vmem:[%s288 + $0x318] sm:$0xff]
      %v1685 = vld [vmem:[%s288 + $0x320] sm:$0xff]
      %v1686 = vld [vmem:[%s288 + $0x328] sm:$0xff]
      %v1687 = vld [vmem:[%s288 + $0x330] sm:$0xff]
      %v1688 = vld [vmem:[%s288 + $0x338] sm:$0xff]
      %v1689 = vld [vmem:[%s288 + $0x340] sm:$0xff]
      %v1690 = vld [vmem:[%s288 + $0x348] sm:$0xff]
      %v1691 = vld [vmem:[%s288 + $0x350] sm:$0xff]
      %v1692 = vld [vmem:[%s288 + $0x358] sm:$0xff]
      %v1693 = vld [vmem:[%s288 + $0x360] sm:$0xff]
      %v1694 = vld [vmem:[%s288 + $0x368] sm:$0xff]
      %v1695 = vld [vmem:[%s288 + $0x370] sm:$0xff]
      %v1696 = vld [vmem:[%s288 + $0x378] sm:$0xff]
      %v1697 = vld [vmem:[%s288 + $0x380] sm:$0xff]
      %v1698 = vld [vmem:[%s288 + $0x388] sm:$0xff]
      %v1699 = vld [vmem:[%s288 + $0x390] sm:$0xff]
      %v1700 = vld [vmem:[%s288 + $0x398] sm:$0xff]
      %v1701 = vld [vmem:[%s288 + $0x3a0] sm:$0xff]
      %v1702 = vld [vmem:[%s288 + $0x3a8] sm:$0xff]
      %v1703 = vld [vmem:[%s288 + $0x3b0] sm:$0xff]
      %v1704 = vld [vmem:[%s288 + $0x3b8] sm:$0xff]
      %v1705 = vld [vmem:[%s288 + $0x3c0] sm:$0xff]
      %v1706 = vld [vmem:[%s288 + $0x3c8] sm:$0xff]
      %v1707 = vld [vmem:[%s288 + $0x3d0] sm:$0xff]
      %v1708 = vld [vmem:[%s288 + $0x3d8] sm:$0xff]
      %v1709 = vld [vmem:[%s288 + $0x3e0] sm:$0xff]
      %v1710 = vld [vmem:[%s288 + $0x3e8] sm:$0xff]
      %v1711 = vld [vmem:[%s288 + $0x3f0] sm:$0xff]
      %v1712 = vld [vmem:[%s288 + $0x3f8] sm:$0xff]
      %v1713 = vld [vmem:[%s288 + $0x400] sm:$0xff]
      %v1714 = vld [vmem:[%s288 + $0x408] sm:$0xff]
      %v1715 = vld [vmem:[%s288 + $0x410] sm:$0xff]
      %v1716 = vld [vmem:[%s288 + $0x418] sm:$0xff]
      %v1717 = vld [vmem:[%s288 + $0x420] sm:$0xff]
      %v1718 = vld [vmem:[%s288 + $0x428] sm:$0xff]
      %v1719 = vld [vmem:[%s288 + $0x430] sm:$0xff]
      %v1720 = vld [vmem:[%s288 + $0x438] sm:$0xff]
      %v1721 = vld [vmem:[%s288 + $0x440] sm:$0xff]
      %v1722 = vld [vmem:[%s288 + $0x448] sm:$0xff]
      %v1723 = vld [vmem:[%s288 + $0x450] sm:$0xff]
      %v1724 = vld [vmem:[%s288 + $0x458] sm:$0xff]
      %v1725 = vld [vmem:[%s288 + $0x460] sm:$0xff]
      %v1726 = vld [vmem:[%s288 + $0x468] sm:$0xff]
      %v1727 = vld [vmem:[%s288 + $0x470] sm:$0xff]
      %v1728 = vld [vmem:[%s288 + $0x478] sm:$0xff]
      %v1873 = vunpack.c.l.b16 %v1585
      %v1874 = vunpack.c.h.b16 %v1585
      %v1875 = vunpack.c.l.b16 %v1586
      %v1876 = vunpack.c.h.b16 %v1586
      %v1877 = vunpack.c.l.b16 %v1587
      %v1878 = vunpack.c.h.b16 %v1587
      %v1879 = vunpack.c.l.b16 %v1588
      %v1880 = vunpack.c.h.b16 %v1588
      %v1881 = vunpack.c.l.b16 %v1589
      %v1882 = vunpack.c.h.b16 %v1589
      %v1883 = vunpack.c.l.b16 %v1590
      %v1884 = vunpack.c.h.b16 %v1590
      %v1885 = vunpack.c.l.b16 %v1591
      %v1886 = vunpack.c.h.b16 %v1591
      %v1887 = vunpack.c.l.b16 %v1592
      %v1888 = vunpack.c.h.b16 %v1592
      %v1889 = vunpack.c.l.b16 %v1593
      %v1890 = vunpack.c.h.b16 %v1593
      %v1891 = vunpack.c.l.b16 %v1594
      %v1892 = vunpack.c.h.b16 %v1594
      %v1893 = vunpack.c.l.b16 %v1595
      %v1894 = vunpack.c.h.b16 %v1595
      %v1895 = vunpack.c.l.b16 %v1596
      %v1896 = vunpack.c.h.b16 %v1596
      %v1897 = vunpack.c.l.b16 %v1597
      %v1898 = vunpack.c.h.b16 %v1597
      %v1899 = vunpack.c.l.b16 %v1598
      %v1900 = vunpack.c.h.b16 %v1598
      %v1901 = vunpack.c.l.b16 %v1599
      %v1902 = vunpack.c.h.b16 %v1599
      %v1903 = vunpack.c.l.b16 %v1600
      %v1904 = vunpack.c.h.b16 %v1600
      %v1905 = vunpack.c.l.b16 %v1601
      %v1906 = vunpack.c.h.b16 %v1601
      %v1907 = vunpack.c.l.b16 %v1602
      %v1908 = vunpack.c.h.b16 %v1602
      %v1909 = vunpack.c.l.b16 %v1603
      %v1910 = vunpack.c.h.b16 %v1603
      %v1911 = vunpack.c.l.b16 %v1604
      %v1912 = vunpack.c.h.b16 %v1604
      %v1913 = vunpack.c.l.b16 %v1605
      %v1914 = vunpack.c.h.b16 %v1605
      %v1915 = vunpack.c.l.b16 %v1606
      %v1916 = vunpack.c.h.b16 %v1606
      %v1917 = vunpack.c.l.b16 %v1607
      %v1918 = vunpack.c.h.b16 %v1607
      %v1919 = vunpack.c.l.b16 %v1608
      %v1920 = vunpack.c.h.b16 %v1608
      %v1921 = vunpack.c.l.b16 %v1609
      %v1922 = vunpack.c.h.b16 %v1609
      %v1923 = vunpack.c.l.b16 %v1610
      %v1924 = vunpack.c.h.b16 %v1610
      %v1925 = vunpack.c.l.b16 %v1611
      %v1926 = vunpack.c.h.b16 %v1611
      %v1927 = vunpack.c.l.b16 %v1612
      %v1928 = vunpack.c.h.b16 %v1612
      %v1929 = vunpack.c.l.b16 %v1613
      %v1930 = vunpack.c.h.b16 %v1613
      %v1931 = vunpack.c.l.b16 %v1614
      %v1932 = vunpack.c.h.b16 %v1614
      %v1933 = vunpack.c.l.b16 %v1615
      %v1934 = vunpack.c.h.b16 %v1615
      %v1935 = vunpack.c.l.b16 %v1616
      %v1936 = vunpack.c.h.b16 %v1616
      %v1937 = vunpack.c.l.b16 %v1617
      %v1938 = vunpack.c.h.b16 %v1617
      %v1939 = vunpack.c.l.b16 %v1618
      %v1940 = vunpack.c.h.b16 %v1618
      %v1941 = vunpack.c.l.b16 %v1619
      %v1942 = vunpack.c.h.b16 %v1619
      %v1943 = vunpack.c.l.b16 %v1620
      %v1944 = vunpack.c.h.b16 %v1620
      %v1945 = vunpack.c.l.b16 %v1621
      %v1946 = vunpack.c.h.b16 %v1621
      %v1947 = vunpack.c.l.b16 %v1622
      %v1948 = vunpack.c.h.b16 %v1622
      %v1949 = vunpack.c.l.b16 %v1623
      %v1950 = vunpack.c.h.b16 %v1623
      %v1951 = vunpack.c.l.b16 %v1624
      %v1952 = vunpack.c.h.b16 %v1624
      %v1953 = vunpack.c.l.b16 %v1625
      %v1954 = vunpack.c.h.b16 %v1625
      %v1955 = vunpack.c.l.b16 %v1626
      %v1956 = vunpack.c.h.b16 %v1626
      %v1957 = vunpack.c.l.b16 %v1627
      %v1958 = vunpack.c.h.b16 %v1627
      %v1959 = vunpack.c.l.b16 %v1628
      %v1960 = vunpack.c.h.b16 %v1628
      %v1961 = vunpack.c.l.b16 %v1629
      %v1962 = vunpack.c.h.b16 %v1629
      %v1963 = vunpack.c.l.b16 %v1630
      %v1964 = vunpack.c.h.b16 %v1630
      %v1965 = vunpack.c.l.b16 %v1631
      %v1966 = vunpack.c.h.b16 %v1631
      %v1967 = vunpack.c.l.b16 %v1632
      %v1968 = vunpack.c.h.b16 %v1632
      %v1969 = vunpack.c.l.b16 %v1633
      %v1970 = vunpack.c.h.b16 %v1633
      %v1971 = vunpack.c.l.b16 %v1634
      %v1972 = vunpack.c.h.b16 %v1634
      %v1973 = vunpack.c.l.b16 %v1635
      %v1974 = vunpack.c.h.b16 %v1635
      %v1975 = vunpack.c.l.b16 %v1636
      %v1976 = vunpack.c.h.b16 %v1636
      %v1977 = vunpack.c.l.b16 %v1637
      %v1978 = vunpack.c.h.b16 %v1637
      %v1979 = vunpack.c.l.b16 %v1638
      %v1980 = vunpack.c.h.b16 %v1638
      %v1981 = vunpack.c.l.b16 %v1639
      %v1982 = vunpack.c.h.b16 %v1639
      %v1983 = vunpack.c.l.b16 %v1640
      %v1984 = vunpack.c.h.b16 %v1640
      %v1985 = vunpack.c.l.b16 %v1641
      %v1986 = vunpack.c.h.b16 %v1641
      %v1987 = vunpack.c.l.b16 %v1642
      %v1988 = vunpack.c.h.b16 %v1642
      %v1989 = vunpack.c.l.b16 %v1643
      %v1990 = vunpack.c.h.b16 %v1643
      %v1991 = vunpack.c.l.b16 %v1644
      %v1992 = vunpack.c.h.b16 %v1644
      %v1993 = vunpack.c.l.b16 %v1645
      %v1994 = vunpack.c.h.b16 %v1645
      %v1995 = vunpack.c.l.b16 %v1646
      %v1996 = vunpack.c.h.b16 %v1646
      %v1997 = vunpack.c.l.b16 %v1647
      %v1998 = vunpack.c.h.b16 %v1647
      %v1999 = vunpack.c.l.b16 %v1648
      %v2000 = vunpack.c.h.b16 %v1648
      %v2001 = vunpack.c.l.b16 %v1649
      %v2002 = vunpack.c.h.b16 %v1649
      %v2003 = vunpack.c.l.b16 %v1650
      %v2004 = vunpack.c.h.b16 %v1650
      %v2005 = vunpack.c.l.b16 %v1651
      %v2006 = vunpack.c.h.b16 %v1651
      %v2007 = vunpack.c.l.b16 %v1652
      %v2008 = vunpack.c.h.b16 %v1652
      %v2009 = vunpack.c.l.b16 %v1653
      %v2010 = vunpack.c.h.b16 %v1653
      %v2011 = vunpack.c.l.b16 %v1654
      %v2012 = vunpack.c.h.b16 %v1654
      %v2013 = vunpack.c.l.b16 %v1655
      %v2014 = vunpack.c.h.b16 %v1655
      %v2015 = vunpack.c.l.b16 %v1656
      %v2016 = vunpack.c.h.b16 %v1656
      %v2017 = vunpack.c.l.b16 %v1657
      %v2018 = vunpack.c.h.b16 %v1657
      %v2019 = vunpack.c.l.b16 %v1658
      %v2020 = vunpack.c.h.b16 %v1658
      %v2021 = vunpack.c.l.b16 %v1659
      %v2022 = vunpack.c.h.b16 %v1659
      %v2023 = vunpack.c.l.b16 %v1660
      %v2024 = vunpack.c.h.b16 %v1660
      %v2025 = vunpack.c.l.b16 %v1661
      %v2026 = vunpack.c.h.b16 %v1661
      %v2027 = vunpack.c.l.b16 %v1662
      %v2028 = vunpack.c.h.b16 %v1662
      %v2029 = vunpack.c.l.b16 %v1663
      %v2030 = vunpack.c.h.b16 %v1663
      %v2031 = vunpack.c.l.b16 %v1664
      %v2032 = vunpack.c.h.b16 %v1664
      %v2033 = vunpack.c.l.b16 %v1665
      %v2034 = vunpack.c.h.b16 %v1665
      %v2035 = vunpack.c.l.b16 %v1666
      %v2036 = vunpack.c.h.b16 %v1666
      %v2037 = vunpack.c.l.b16 %v1667
      %v2038 = vunpack.c.h.b16 %v1667
      %v2039 = vunpack.c.l.b16 %v1668
      %v2040 = vunpack.c.h.b16 %v1668
      %v2041 = vunpack.c.l.b16 %v1669
      %v2042 = vunpack.c.h.b16 %v1669
      %v2043 = vunpack.c.l.b16 %v1670
      %v2044 = vunpack.c.h.b16 %v1670
      %v2045 = vunpack.c.l.b16 %v1671
      %v2046 = vunpack.c.h.b16 %v1671
      %v2047 = vunpack.c.l.b16 %v1672
      %v2048 = vunpack.c.h.b16 %v1672
      %v2049 = vunpack.c.l.b16 %v1673
      %v2050 = vunpack.c.h.b16 %v1673
      %v2051 = vunpack.c.l.b16 %v1674
      %v2052 = vunpack.c.h.b16 %v1674
      %v2053 = vunpack.c.l.b16 %v1675
      %v2054 = vunpack.c.h.b16 %v1675
      %v2055 = vunpack.c.l.b16 %v1676
      %v2056 = vunpack.c.h.b16 %v1676
      %v2057 = vunpack.c.l.b16 %v1677
      %v2058 = vunpack.c.h.b16 %v1677
      %v2059 = vunpack.c.l.b16 %v1678
      %v2060 = vunpack.c.h.b16 %v1678
      %v2061 = vunpack.c.l.b16 %v1679
      %v2062 = vunpack.c.h.b16 %v1679
      %v2063 = vunpack.c.l.b16 %v1680
      %v2064 = vunpack.c.h.b16 %v1680
      %v2065 = vunpack.c.l.b16 %v1681
      %v2066 = vunpack.c.h.b16 %v1681
      %v2067 = vunpack.c.l.b16 %v1682
      %v2068 = vunpack.c.h.b16 %v1682
      %v2069 = vunpack.c.l.b16 %v1683
      %v2070 = vunpack.c.h.b16 %v1683
      %v2071 = vunpack.c.l.b16 %v1684
      %v2072 = vunpack.c.h.b16 %v1684
      %v2073 = vunpack.c.l.b16 %v1685
      %v2074 = vunpack.c.h.b16 %v1685
      %v2075 = vunpack.c.l.b16 %v1686
      %v2076 = vunpack.c.h.b16 %v1686
      %v2077 = vunpack.c.l.b16 %v1687
      %v2078 = vunpack.c.h.b16 %v1687
      %v2079 = vunpack.c.l.b16 %v1688
      %v2080 = vunpack.c.h.b16 %v1688
      %v2081 = vunpack.c.l.b16 %v1689
      %v2082 = vunpack.c.h.b16 %v1689
      %v2083 = vunpack.c.l.b16 %v1690
      %v2084 = vunpack.c.h.b16 %v1690
      %v2085 = vunpack.c.l.b16 %v1691
      %v2086 = vunpack.c.h.b16 %v1691
      %v2087 = vunpack.c.l.b16 %v1692
      %v2088 = vunpack.c.h.b16 %v1692
      %v2089 = vunpack.c.l.b16 %v1693
      %v2090 = vunpack.c.h.b16 %v1693
      %v2091 = vunpack.c.l.b16 %v1694
      %v2092 = vunpack.c.h.b16 %v1694
      %v2093 = vunpack.c.l.b16 %v1695
      %v2094 = vunpack.c.h.b16 %v1695
      %v2095 = vunpack.c.l.b16 %v1696
      %v2096 = vunpack.c.h.b16 %v1696
      %v2097 = vunpack.c.l.b16 %v1697
      %v2098 = vunpack.c.h.b16 %v1697
      %v2099 = vunpack.c.l.b16 %v1698
      %v2100 = vunpack.c.h.b16 %v1698
      %v2101 = vunpack.c.l.b16 %v1699
      %v2102 = vunpack.c.h.b16 %v1699
      %v2103 = vunpack.c.l.b16 %v1700
      %v2104 = vunpack.c.h.b16 %v1700
      %v2105 = vunpack.c.l.b16 %v1701
      %v2106 = vunpack.c.h.b16 %v1701
      %v2107 = vunpack.c.l.b16 %v1702
      %v2108 = vunpack.c.h.b16 %v1702
      %v2109 = vunpack.c.l.b16 %v1703
      %v2110 = vunpack.c.h.b16 %v1703
      %v2111 = vunpack.c.l.b16 %v1704
      %v2112 = vunpack.c.h.b16 %v1704
      %v2113 = vunpack.c.l.b16 %v1705
      %v2114 = vunpack.c.h.b16 %v1705
      %v2115 = vunpack.c.l.b16 %v1706
      %v2116 = vunpack.c.h.b16 %v1706
      %v2117 = vunpack.c.l.b16 %v1707
      %v2118 = vunpack.c.h.b16 %v1707
      %v2119 = vunpack.c.l.b16 %v1708
      %v2120 = vunpack.c.h.b16 %v1708
      %v2121 = vunpack.c.l.b16 %v1709
      %v2122 = vunpack.c.h.b16 %v1709
      %v2123 = vunpack.c.l.b16 %v1710
      %v2124 = vunpack.c.h.b16 %v1710
      %v2125 = vunpack.c.l.b16 %v1711
      %v2126 = vunpack.c.h.b16 %v1711
      %v2127 = vunpack.c.l.b16 %v1712
      %v2128 = vunpack.c.h.b16 %v1712
      %v2129 = vunpack.c.l.b16 %v1713
      %v2130 = vunpack.c.h.b16 %v1713
      %v2131 = vunpack.c.l.b16 %v1714
      %v2132 = vunpack.c.h.b16 %v1714
      %v2133 = vunpack.c.l.b16 %v1715
      %v2134 = vunpack.c.h.b16 %v1715
      %v2135 = vunpack.c.l.b16 %v1716
      %v2136 = vunpack.c.h.b16 %v1716
      %v2137 = vunpack.c.l.b16 %v1717
      %v2138 = vunpack.c.h.b16 %v1717
      %v2139 = vunpack.c.l.b16 %v1718
      %v2140 = vunpack.c.h.b16 %v1718
      %v2141 = vunpack.c.l.b16 %v1719
      %v2142 = vunpack.c.h.b16 %v1719
      %v2143 = vunpack.c.l.b16 %v1720
      %v2144 = vunpack.c.h.b16 %v1720
      %v2145 = vunpack.c.l.b16 %v1721
      %v2146 = vunpack.c.h.b16 %v1721
      %v2147 = vunpack.c.l.b16 %v1722
      %v2148 = vunpack.c.h.b16 %v1722
      %v2149 = vunpack.c.l.b16 %v1723
      %v2150 = vunpack.c.h.b16 %v1723
      %v2151 = vunpack.c.l.b16 %v1724
      %v2152 = vunpack.c.h.b16 %v1724
      %v2153 = vunpack.c.l.b16 %v1725
      %v2154 = vunpack.c.h.b16 %v1725
      %v2155 = vunpack.c.l.b16 %v1726
      %v2156 = vunpack.c.h.b16 %v1726
      %v2157 = vunpack.c.l.b16 %v1727
      %v2158 = vunpack.c.h.b16 %v1727
      %v2159 = vunpack.c.l.b16 %v1728
      %v2160 = vunpack.c.h.b16 %v1728
      %v2161 = vpack.c.b16 %v1875, %v1873
      %v2162 = vpack.c.b16 %v1876, %v1874
      %v2163 = vpack.c.b16 %v1879, %v1877
      %v2164 = vpack.c.b16 %v1880, %v1878
      %v2165 = vpack.c.b16 %v1883, %v1881
      %v2166 = vpack.c.b16 %v1884, %v1882
      %v2167 = vpack.c.b16 %v1887, %v1885
      %v2168 = vpack.c.b16 %v1888, %v1886
      %v2169 = vpack.c.b16 %v1891, %v1889
      %v2170 = vpack.c.b16 %v1892, %v1890
      %v2171 = vpack.c.b16 %v1895, %v1893
      %v2172 = vpack.c.b16 %v1896, %v1894
      %v2173 = vpack.c.b16 %v1899, %v1897
      %v2174 = vpack.c.b16 %v1900, %v1898
      %v2175 = vpack.c.b16 %v1903, %v1901
      %v2176 = vpack.c.b16 %v1904, %v1902
      %v2177 = vpack.c.b16 %v1907, %v1905
      %v2178 = vpack.c.b16 %v1908, %v1906
      %v2179 = vpack.c.b16 %v1911, %v1909
      %v2180 = vpack.c.b16 %v1912, %v1910
      %v2181 = vpack.c.b16 %v1915, %v1913
      %v2182 = vpack.c.b16 %v1916, %v1914
      %v2183 = vpack.c.b16 %v1919, %v1917
      %v2184 = vpack.c.b16 %v1920, %v1918
      %v2185 = vpack.c.b16 %v1923, %v1921
      %v2186 = vpack.c.b16 %v1924, %v1922
      %v2187 = vpack.c.b16 %v1927, %v1925
      %v2188 = vpack.c.b16 %v1928, %v1926
      %v2189 = vpack.c.b16 %v1931, %v1929
      %v2190 = vpack.c.b16 %v1932, %v1930
      %v2191 = vpack.c.b16 %v1935, %v1933
      %v2192 = vpack.c.b16 %v1936, %v1934
      %v2193 = vpack.c.b16 %v1939, %v1937
      %v2194 = vpack.c.b16 %v1940, %v1938
      %v2195 = vpack.c.b16 %v1943, %v1941
      %v2196 = vpack.c.b16 %v1944, %v1942
      %v2197 = vpack.c.b16 %v1947, %v1945
      %v2198 = vpack.c.b16 %v1948, %v1946
      %v2199 = vpack.c.b16 %v1951, %v1949
      %v2200 = vpack.c.b16 %v1952, %v1950
      %v2201 = vpack.c.b16 %v1955, %v1953
      %v2202 = vpack.c.b16 %v1956, %v1954
      %v2203 = vpack.c.b16 %v1959, %v1957
      %v2204 = vpack.c.b16 %v1960, %v1958
      %v2205 = vpack.c.b16 %v1963, %v1961
      %v2206 = vpack.c.b16 %v1964, %v1962
      %v2207 = vpack.c.b16 %v1967, %v1965
      %v2208 = vpack.c.b16 %v1968, %v1966
      %v2209 = vpack.c.b16 %v1971, %v1969
      %v2210 = vpack.c.b16 %v1972, %v1970
      %v2211 = vpack.c.b16 %v1975, %v1973
      %v2212 = vpack.c.b16 %v1976, %v1974
      %v2213 = vpack.c.b16 %v1979, %v1977
      %v2214 = vpack.c.b16 %v1980, %v1978
      %v2215 = vpack.c.b16 %v1983, %v1981
      %v2216 = vpack.c.b16 %v1984, %v1982
      %v2217 = vpack.c.b16 %v1987, %v1985
      %v2218 = vpack.c.b16 %v1988, %v1986
      %v2219 = vpack.c.b16 %v1991, %v1989
      %v2220 = vpack.c.b16 %v1992, %v1990
      %v2221 = vpack.c.b16 %v1995, %v1993
      %v2222 = vpack.c.b16 %v1996, %v1994
      %v2223 = vpack.c.b16 %v1999, %v1997
      %v2224 = vpack.c.b16 %v2000, %v1998
      %v2225 = vpack.c.b16 %v2003, %v2001
      %v2226 = vpack.c.b16 %v2004, %v2002
      %v2227 = vpack.c.b16 %v2007, %v2005
      %v2228 = vpack.c.b16 %v2008, %v2006
      %v2229 = vpack.c.b16 %v2011, %v2009
      %v2230 = vpack.c.b16 %v2012, %v2010
      %v2231 = vpack.c.b16 %v2015, %v2013
      %v2232 = vpack.c.b16 %v2016, %v2014
      %v2233 = vpack.c.b16 %v2019, %v2017
      %v2234 = vpack.c.b16 %v2020, %v2018
      %v2235 = vpack.c.b16 %v2023, %v2021
      %v2236 = vpack.c.b16 %v2024, %v2022
      %v2237 = vpack.c.b16 %v2027, %v2025
      %v2238 = vpack.c.b16 %v2028, %v2026
      %v2239 = vpack.c.b16 %v2031, %v2029
      %v2240 = vpack.c.b16 %v2032, %v2030
      %v2241 = vpack.c.b16 %v2035, %v2033
      %v2242 = vpack.c.b16 %v2036, %v2034
      %v2243 = vpack.c.b16 %v2039, %v2037
      %v2244 = vpack.c.b16 %v2040, %v2038
      %v2245 = vpack.c.b16 %v2043, %v2041
      %v2246 = vpack.c.b16 %v2044, %v2042
      %v2247 = vpack.c.b16 %v2047, %v2045
      %v2248 = vpack.c.b16 %v2048, %v2046
      %v2249 = vpack.c.b16 %v2051, %v2049
      %v2250 = vpack.c.b16 %v2052, %v2050
      %v2251 = vpack.c.b16 %v2055, %v2053
      %v2252 = vpack.c.b16 %v2056, %v2054
      %v2253 = vpack.c.b16 %v2059, %v2057
      %v2254 = vpack.c.b16 %v2060, %v2058
      %v2255 = vpack.c.b16 %v2063, %v2061
      %v2256 = vpack.c.b16 %v2064, %v2062
      %v2257 = vpack.c.b16 %v2067, %v2065
      %v2258 = vpack.c.b16 %v2068, %v2066
      %v2259 = vpack.c.b16 %v2071, %v2069
      %v2260 = vpack.c.b16 %v2072, %v2070
      %v2261 = vpack.c.b16 %v2075, %v2073
      %v2262 = vpack.c.b16 %v2076, %v2074
      %v2263 = vpack.c.b16 %v2079, %v2077
      %v2264 = vpack.c.b16 %v2080, %v2078
      %v2265 = vpack.c.b16 %v2083, %v2081
      %v2266 = vpack.c.b16 %v2084, %v2082
      %v2267 = vpack.c.b16 %v2087, %v2085
      %v2268 = vpack.c.b16 %v2088, %v2086
      %v2269 = vpack.c.b16 %v2091, %v2089
      %v2270 = vpack.c.b16 %v2092, %v2090
      %v2271 = vpack.c.b16 %v2095, %v2093
      %v2272 = vpack.c.b16 %v2096, %v2094
      %v2273 = vpack.c.b16 %v2099, %v2097
      %v2274 = vpack.c.b16 %v2100, %v2098
      %v2275 = vpack.c.b16 %v2103, %v2101
      %v2276 = vpack.c.b16 %v2104, %v2102
      %v2277 = vpack.c.b16 %v2107, %v2105
      %v2278 = vpack.c.b16 %v2108, %v2106
      %v2279 = vpack.c.b16 %v2111, %v2109
      %v2280 = vpack.c.b16 %v2112, %v2110
      %v2281 = vpack.c.b16 %v2115, %v2113
      %v2282 = vpack.c.b16 %v2116, %v2114
      %v2283 = vpack.c.b16 %v2119, %v2117
      %v2284 = vpack.c.b16 %v2120, %v2118
      %v2285 = vpack.c.b16 %v2123, %v2121
      %v2286 = vpack.c.b16 %v2124, %v2122
      %v2287 = vpack.c.b16 %v2127, %v2125
      %v2288 = vpack.c.b16 %v2128, %v2126
      %v2289 = vpack.c.b16 %v2131, %v2129
      %v2290 = vpack.c.b16 %v2132, %v2130
      %v2291 = vpack.c.b16 %v2135, %v2133
      %v2292 = vpack.c.b16 %v2136, %v2134
      %v2293 = vpack.c.b16 %v2139, %v2137
      %v2294 = vpack.c.b16 %v2140, %v2138
      %v2295 = vpack.c.b16 %v2143, %v2141
      %v2296 = vpack.c.b16 %v2144, %v2142
      %v2297 = vpack.c.b16 %v2147, %v2145
      %v2298 = vpack.c.b16 %v2148, %v2146
      %v2299 = vpack.c.b16 %v2151, %v2149
      %v2300 = vpack.c.b16 %v2152, %v2150
      %v2301 = vpack.c.b16 %v2155, %v2153
      %v2302 = vpack.c.b16 %v2156, %v2154
      %v2303 = vpack.c.b16 %v2159, %v2157
      %v2304 = vpack.c.b16 %v2160, %v2158
      %2449 = vmatprep.subr.bf16.mxu0 %v2162
      %2450 = vmatpush1.bf16.msra.mxu0 %v2161
      %2451 = vmatprep.subr.bf16.mxu0 %v2164
      %2452 = vmatpush1.bf16.msra.mxu0 %v2163
      %2453 = vmatprep.subr.bf16.mxu0 %v2166
      %2454 = vmatpush1.bf16.msra.mxu0 %v2165
      %2455 = vmatprep.subr.bf16.mxu0 %v2168
      %2456 = vmatpush1.bf16.msra.mxu0 %v2167
      %2457 = vmatprep.subr.bf16.mxu0 %v2170
      %2458 = vmatpush1.bf16.msra.mxu0 %v2169
      %2459 = vmatprep.subr.bf16.mxu0 %v2172
      %2460 = vmatpush1.bf16.msra.mxu0 %v2171
      %2461 = vmatprep.subr.bf16.mxu0 %v2174
      %2462 = vmatpush1.bf16.msra.mxu0 %v2173
      %2463 = vmatprep.subr.bf16.mxu0 %v2176
      %2464 = vmatpush1.bf16.msra.mxu0 %v2175
      %2465 = vmatprep.subr.bf16.mxu0 %v2178
      %2466 = vmatpush1.bf16.msra.mxu0 %v2177
      %2467 = vmatprep.subr.bf16.mxu0 %v2180
      %2468 = vmatpush1.bf16.msra.mxu0 %v2179
      %2469 = vmatprep.subr.bf16.mxu0 %v2182
      %2470 = vmatpush1.bf16.msra.mxu0 %v2181
      %2471 = vmatprep.subr.bf16.mxu0 %v2184
      %2472 = vmatpush1.bf16.msra.mxu0 %v2183
      %2473 = vmatprep.subr.bf16.mxu0 %v2186
      %2474 = vmatpush1.bf16.msra.mxu0 %v2185
      %2475 = vmatprep.subr.bf16.mxu0 %v2188
      %2476 = vmatpush1.bf16.msra.mxu0 %v2187
      %2477 = vmatprep.subr.bf16.mxu0 %v2190
      %2478 = vmatpush1.bf16.msra.mxu0 %v2189
      %2479 = vmatprep.subr.bf16.mxu0 %v2192
      %2480 = vmatpush1.bf16.msra.mxu0 %v2191
      %2481 = vmatprep.mubr.bf16.mxu0 %v1378
      %2482 = vmatmul.mubr.bf16.gmra.mrb[0].mxu0 %v1377
      %v2483 = vpop.f32.mrb[0].mxu0
      %v2484 = vadd.f32 0.0, %v2483
      %v2485 = vpop.f32.mrb[0].mxu0
      %v2486 = vadd.f32 0.0, %v2485
      %v2487 = vpop.f32.mrb[0].mxu0
      %v2488 = vadd.f32 0.0, %v2487
      %v2489 = vpop.f32.mrb[0].mxu0
      %v2490 = vadd.f32 0.0, %v2489
      %2491 = vmatprep.mubr.bf16.mxu0 %v1387
      %2492 = vmatmul.mubr.bf16.gmra.mrb[0].mxu0 %v1386
      %v2493 = vpop.f32.mrb[0].mxu0
      %v2494 = vadd.f32 0.0, %v2493
      %v2495 = vpop.f32.mrb[0].mxu0
      %v2496 = vadd.f32 0.0, %v2495
      %v2497 = vpop.f32.mrb[0].mxu0
      %v2498 = vadd.f32 0.0, %v2497
      %v2499 = vpop.f32.mrb[0].mxu0
      %v2500 = vadd.f32 0.0, %v2499
      %2501 = vmatprep.mubr.bf16.mxu0 %v1396
      %2502 = vmatmul.mubr.bf16.gmra.mrb[0].mxu0 %v1395
      %v2503 = vpop.f32.mrb[0].mxu0
      %v2504 = vadd.f32 0.0, %v2503
      %v2505 = vpop.f32.mrb[0].mxu0
      %v2506 = vadd.f32 0.0, %v2505
      %v2507 = vpop.f32.mrb[0].mxu0
      %v2508 = vadd.f32 0.0, %v2507
      %v2509 = vpop.f32.mrb[0].mxu0
      %v2510 = vadd.f32 0.0, %v2509
      %2511 = vmatprep.mubr.bf16.mxu0 %v1405
      %2512 = vmatmul.mubr.bf16.gmra.mrb[0].mxu0 %v1404
      %v2513 = vpop.f32.mrb[0].mxu0
      %v2514 = vadd.f32 0.0, %v2513
      %v2515 = vpop.f32.mrb[0].mxu0
      %v2516 = vadd.f32 0.0, %v2515
      %v2517 = vpop.f32.mrb[0].mxu0
      %v2518 = vadd.f32 0.0, %v2517
      %v2519 = vpop.f32.mrb[0].mxu0
      %v2520 = vadd.f32 0.0, %v2519
      %2521 = vmatprep.mubr.bf16.mxu0 %v1414
      %2522 = vmatmul.mubr.bf16.gmra.mrb[0].mxu0 %v1413
      %v2523 = vpop.f32.mrb[0].mxu0
      %v2524 = vadd.f32 0.0, %v2523
      %v2525 = vpop.f32.mrb[0].mxu0
      %v2526 = vadd.f32 0.0, %v2525
      %v2527 = vpop.f32.mrb[0].mxu0
      %v2528 = vadd.f32 0.0, %v2527
      %v2529 = vpop.f32.mrb[0].mxu0
      %v2530 = vadd.f32 0.0, %v2529
      %2531 = vmatprep.mubr.bf16.mxu0 %v1423
      %2532 = vmatmul.mubr.bf16.gmra.mrb[0].mxu0 %v1422
      %v2533 = vpop.f32.mrb[0].mxu0
      %v2534 = vadd.f32 0.0, %v2533
      %v2535 = vpop.f32.mrb[0].mxu0
      %v2536 = vadd.f32 0.0, %v2535
      %v2537 = vpop.f32.mrb[0].mxu0
      %v2538 = vadd.f32 0.0, %v2537
      %v2539 = vpop.f32.mrb[0].mxu0
      %v2540 = vadd.f32 0.0, %v2539
      %2541 = vmatprep.mubr.bf16.mxu0 %v1432
      %2542 = vmatmul.mubr.bf16.gmra.mrb[0].mxu0 %v1431
      %v2543 = vpop.f32.mrb[0].mxu0
      %v2544 = vadd.f32 0.0, %v2543
      %v2545 = vpop.f32.mrb[0].mxu0
      %v2546 = vadd.f32 0.0, %v2545
      %v2547 = vpop.f32.mrb[0].mxu0
      %v2548 = vadd.f32 0.0, %v2547
      %v2549 = vpop.f32.mrb[0].mxu0
      %v2550 = vadd.f32 0.0, %v2549
      %2551 = vmatprep.mubr.bf16.mxu0 %v1441
      %2552 = vmatmul.mubr.bf16.gmra.mrb[0].mxu0 %v1440
      %v2553 = vpop.f32.mrb[0].mxu0
      %v2554 = vadd.f32 0.0, %v2553
      %v2555 = vpop.f32.mrb[0].mxu0
      %v2556 = vadd.f32 0.0, %v2555
      %v2557 = vpop.f32.mrb[0].mxu0
      %v2558 = vadd.f32 0.0, %v2557
      %v2559 = vpop.f32.mrb[0].mxu0
      %v2560 = vadd.f32 0.0, %v2559
      %2561 = vmatprep.mubr.bf16.mxu0 %v1450
      %2562 = vmatmul.mubr.bf16.gmra.mrb[0].mxu0 %v1449
      %v2563 = vpop.f32.mrb[0].mxu0
      %v2564 = vadd.f32 0.0, %v2563
      %v2565 = vpop.f32.mrb[0].mxu0
      %v2566 = vadd.f32 0.0, %v2565
      %v2567 = vpop.f32.mrb[0].mxu0
      %v2568 = vadd.f32 0.0, %v2567
      %v2569 = vpop.f32.mrb[0].mxu0
      %v2570 = vadd.f32 0.0, %v2569
      %2571 = vmatprep.mubr.bf16.mxu0 %v1459
      %2572 = vmatmul.mubr.bf16.gmra.mrb[0].mxu0 %v1458
      %v2573 = vpop.f32.mrb[0].mxu0
      %v2574 = vadd.f32 0.0, %v2573
      %v2575 = vpop.f32.mrb[0].mxu0
      %v2576 = vadd.f32 0.0, %v2575
      %v2577 = vpop.f32.mrb[0].mxu0
      %v2578 = vadd.f32 0.0, %v2577
      %v2579 = vpop.f32.mrb[0].mxu0
      %v2580 = vadd.f32 0.0, %v2579
      %2581 = vmatprep.mubr.bf16.mxu0 %v1468
      %2582 = vmatmul.mubr.bf16.gmra.mrb[0].mxu0 %v1467
      %v2583 = vpop.f32.mrb[0].mxu0
      %v2584 = vadd.f32 0.0, %v2583
      %v2585 = vpop.f32.mrb[0].mxu0
      %v2586 = vadd.f32 0.0, %v2585
      %v2587 = vpop.f32.mrb[0].mxu0
      %v2588 = vadd.f32 0.0, %v2587
      %v2589 = vpop.f32.mrb[0].mxu0
      %v2590 = vadd.f32 0.0, %v2589
      %2591 = vmatprep.mubr.bf16.mxu0 %v1477
      %2592 = vmatmul.mubr.bf16.gmra.mrb[0].mxu0 %v1476
      %v2593 = vpop.f32.mrb[0].mxu0
      %v2594 = vadd.f32 0.0, %v2593
      %v2595 = vpop.f32.mrb[0].mxu0
      %v2596 = vadd.f32 0.0, %v2595
      %v2597 = vpop.f32.mrb[0].mxu0
      %v2598 = vadd.f32 0.0, %v2597
      %v2599 = vpop.f32.mrb[0].mxu0
      %v2600 = vadd.f32 0.0, %v2599
      %2601 = vmatprep.mubr.bf16.mxu0 %v1486
      %2602 = vmatmul.mubr.bf16.gmra.mrb[0].mxu0 %v1485
      %v2603 = vpop.f32.mrb[0].mxu0
      %v2604 = vadd.f32 0.0, %v2603
      %v2605 = vpop.f32.mrb[0].mxu0
      %v2606 = vadd.f32 0.0, %v2605
      %v2607 = vpop.f32.mrb[0].mxu0
      %v2608 = vadd.f32 0.0, %v2607
      %v2609 = vpop.f32.mrb[0].mxu0
      %v2610 = vadd.f32 0.0, %v2609
      %2611 = vmatprep.mubr.bf16.mxu0 %v1495
      %2612 = vmatmul.mubr.bf16.gmra.mrb[0].mxu0 %v1494
      %v2613 = vpop.f32.mrb[0].mxu0
      %v2614 = vadd.f32 0.0, %v2613
      %v2615 = vpop.f32.mrb[0].mxu0
      %v2616 = vadd.f32 0.0, %v2615
      %v2617 = vpop.f32.mrb[0].mxu0
      %v2618 = vadd.f32 0.0, %v2617
      %v2619 = vpop.f32.mrb[0].mxu0
      %v2620 = vadd.f32 0.0, %v2619
      %2621 = vmatprep.mubr.bf16.mxu0 %v1504
      %2622 = vmatmul.mubr.bf16.gmra.mrb[0].mxu0 %v1503
      %v2623 = vpop.f32.mrb[0].mxu0
      %v2624 = vadd.f32 0.0, %v2623
      %v2625 = vpop.f32.mrb[0].mxu0
      %v2626 = vadd.f32 0.0, %v2625
      %v2627 = vpop.f32.mrb[0].mxu0
      %v2628 = vadd.f32 0.0, %v2627
      %v2629 = vpop.f32.mrb[0].mxu0
      %v2630 = vadd.f32 0.0, %v2629
      %2631 = vmatprep.mubr.bf16.mxu0 %v1513
      %2632 = vmatmul.mubr.bf16.gmra.mrb[0].mxu0 %v1512
      %v2633 = vpop.f32.mrb[0].mxu0
      %v2634 = vadd.f32 0.0, %v2633
      %v2635 = vpop.f32.mrb[0].mxu0
      %v2636 = vadd.f32 0.0, %v2635
      %v2637 = vpop.f32.mrb[0].mxu0
      %v2638 = vadd.f32 0.0, %v2637
      %v2639 = vpop.f32.mrb[0].mxu0
      %v2640 = vadd.f32 0.0, %v2639
      %2641 = vdwg.mxu0
      %2642 = vmatprep.subr.bf16.mxu0 %v2194
      %2643 = vmatpush1.bf16.msra.mxu0 %v2193
      %2644 = vmatprep.subr.bf16.mxu0 %v2196
      %2645 = vmatpush1.bf16.msra.mxu0 %v2195
      %2646 = vmatprep.subr.bf16.mxu0 %v2198
      %2647 = vmatpush1.bf16.msra.mxu0 %v2197
      %2648 = vmatprep.subr.bf16.mxu0 %v2200
      %2649 = vmatpush1.bf16.msra.mxu0 %v2199
      %2650 = vmatprep.subr.bf16.mxu0 %v2202
      %2651 = vmatpush1.bf16.msra.mxu0 %v2201
      %2652 = vmatprep.subr.bf16.mxu0 %v2204
      %2653 = vmatpush1.bf16.msra.mxu0 %v2203
      %2654 = vmatprep.subr.bf16.mxu0 %v2206
      %2655 = vmatpush1.bf16.msra.mxu0 %v2205
      %2656 = vmatprep.subr.bf16.mxu0 %v2208
      %2657 = vmatpush1.bf16.msra.mxu0 %v2207
      %2658 = vmatprep.subr.bf16.mxu0 %v2210
      %2659 = vmatpush1.bf16.msra.mxu0 %v2209
      %2660 = vmatprep.subr.bf16.mxu0 %v2212
      %2661 = vmatpush1.bf16.msra.mxu0 %v2211
      %2662 = vmatprep.subr.bf16.mxu0 %v2214
      %2663 = vmatpush1.bf16.msra.mxu0 %v2213
      %2664 = vmatprep.subr.bf16.mxu0 %v2216
      %2665 = vmatpush1.bf16.msra.mxu0 %v2215
      %2666 = vmatprep.subr.bf16.mxu0 %v2218
      %2667 = vmatpush1.bf16.msra.mxu0 %v2217
      %2668 = vmatprep.subr.bf16.mxu0 %v2220
      %2669 = vmatpush1.bf16.msra.mxu0 %v2219
      %2670 = vmatprep.subr.bf16.mxu0 %v2222
      %2671 = vmatpush1.bf16.msra.mxu0 %v2221
      %2672 = vmatprep.subr.bf16.mxu0 %v2224
      %2673 = vmatpush1.bf16.msra.mxu0 %v2223
      %2674 = vmatprep.mubr.bf16.mxu0 %v1380
      %2675 = vmatmul.mubr.bf16.gmra.mrb[0].mxu0 %v1379
      %v2676 = vpop.f32.mrb[0].mxu0
      %v2677 = vadd.f32 %v2484, %v2676
      %v2678 = vpop.f32.mrb[0].mxu0
      %v2679 = vadd.f32 %v2486, %v2678
      %v2680 = vpop.f32.mrb[0].mxu0
      %v2681 = vadd.f32 %v2488, %v2680
      %v2682 = vpop.f32.mrb[0].mxu0
      %v2683 = vadd.f32 %v2490, %v2682
      %2684 = vmatprep.mubr.bf16.mxu0 %v1389
      %2685 = vmatmul.mubr.bf16.gmra.mrb[0].mxu0 %v1388
      %v2686 = vpop.f32.mrb[0].mxu0
      %v2687 = vadd.f32 %v2494, %v2686
      %v2688 = vpop.f32.mrb[0].mxu0
      %v2689 = vadd.f32 %v2496, %v2688
      %v2690 = vpop.f32.mrb[0].mxu0
      %v2691 = vadd.f32 %v2498, %v2690
      %v2692 = vpop.f32.mrb[0].mxu0
      %v2693 = vadd.f32 %v2500, %v2692
      %2694 = vmatprep.mubr.bf16.mxu0 %v1398
      %2695 = vmatmul.mubr.bf16.gmra.mrb[0].mxu0 %v1397
      %v2696 = vpop.f32.mrb[0].mxu0
      %v2697 = vadd.f32 %v2504, %v2696
      %v2698 = vpop.f32.mrb[0].mxu0
      %v2699 = vadd.f32 %v2506, %v2698
      %v2700 = vpop.f32.mrb[0].mxu0
      %v2701 = vadd.f32 %v2508, %v2700
      %v2702 = vpop.f32.mrb[0].mxu0
      %v2703 = vadd.f32 %v2510, %v2702
      %2704 = vmatprep.mubr.bf16.mxu0 %v1407
      %2705 = vmatmul.mubr.bf16.gmra.mrb[0].mxu0 %v1406
      %v2706 = vpop.f32.mrb[0].mxu0
      %v2707 = vadd.f32 %v2514, %v2706
      %v2708 = vpop.f32.mrb[0].mxu0
      %v2709 = vadd.f32 %v2516, %v2708
      %v2710 = vpop.f32.mrb[0].mxu0
      %v2711 = vadd.f32 %v2518, %v2710
      %v2712 = vpop.f32.mrb[0].mxu0
      %v2713 = vadd.f32 %v2520, %v2712
      %2714 = vmatprep.mubr.bf16.mxu0 %v1416
      %2715 = vmatmul.mubr.bf16.gmra.mrb[0].mxu0 %v1415
      %v2716 = vpop.f32.mrb[0].mxu0
      %v2717 = vadd.f32 %v2524, %v2716
      %v2718 = vpop.f32.mrb[0].mxu0
      %v2719 = vadd.f32 %v2526, %v2718
      %v2720 = vpop.f32.mrb[0].mxu0
      %v2721 = vadd.f32 %v2528, %v2720
      %v2722 = vpop.f32.mrb[0].mxu0
      %v2723 = vadd.f32 %v2530, %v2722
      %2724 = vmatprep.mubr.bf16.mxu0 %v1425
      %2725 = vmatmul.mubr.bf16.gmra.mrb[0].mxu0 %v1424
      %v2726 = vpop.f32.mrb[0].mxu0
      %v2727 = vadd.f32 %v2534, %v2726
      %v2728 = vpop.f32.mrb[0].mxu0
      %v2729 = vadd.f32 %v2536, %v2728
      %v2730 = vpop.f32.mrb[0].mxu0
      %v2731 = vadd.f32 %v2538, %v2730
      %v2732 = vpop.f32.mrb[0].mxu0
      %v2733 = vadd.f32 %v2540, %v2732
      %2734 = vmatprep.mubr.bf16.mxu0 %v1434
      %2735 = vmatmul.mubr.bf16.gmra.mrb[0].mxu0 %v1433
      %v2736 = vpop.f32.mrb[0].mxu0
      %v2737 = vadd.f32 %v2544, %v2736
      %v2738 = vpop.f32.mrb[0].mxu0
      %v2739 = vadd.f32 %v2546, %v2738
      %v2740 = vpop.f32.mrb[0].mxu0
      %v2741 = vadd.f32 %v2548, %v2740
      %v2742 = vpop.f32.mrb[0].mxu0
      %v2743 = vadd.f32 %v2550, %v2742
      %2744 = vmatprep.mubr.bf16.mxu0 %v1443
      %2745 = vmatmul.mubr.bf16.gmra.mrb[0].mxu0 %v1442
      %v2746 = vpop.f32.mrb[0].mxu0
      %v2747 = vadd.f32 %v2554, %v2746
      %v2748 = vpop.f32.mrb[0].mxu0
      %v2749 = vadd.f32 %v2556, %v2748
      %v2750 = vpop.f32.mrb[0].mxu0
      %v2751 = vadd.f32 %v2558, %v2750
      %v2752 = vpop.f32.mrb[0].mxu0
      %v2753 = vadd.f32 %v2560, %v2752
      %2754 = vmatprep.mubr.bf16.mxu0 %v1452
      %2755 = vmatmul.mubr.bf16.gmra.mrb[0].mxu0 %v1451
      %v2756 = vpop.f32.mrb[0].mxu0
      %v2757 = vadd.f32 %v2564, %v2756
      %v2758 = vpop.f32.mrb[0].mxu0
      %v2759 = vadd.f32 %v2566, %v2758
      %v2760 = vpop.f32.mrb[0].mxu0
      %v2761 = vadd.f32 %v2568, %v2760
      %v2762 = vpop.f32.mrb[0].mxu0
      %v2763 = vadd.f32 %v2570, %v2762
      %2764 = vmatprep.mubr.bf16.mxu0 %v1461
      %2765 = vmatmul.mubr.bf16.gmra.mrb[0].mxu0 %v1460
      %v2766 = vpop.f32.mrb[0].mxu0
      %v2767 = vadd.f32 %v2574, %v2766
      %v2768 = vpop.f32.mrb[0].mxu0
      %v2769 = vadd.f32 %v2576, %v2768
      %v2770 = vpop.f32.mrb[0].mxu0
      %v2771 = vadd.f32 %v2578, %v2770
      %v2772 = vpop.f32.mrb[0].mxu0
      %v2773 = vadd.f32 %v2580, %v2772
      %2774 = vmatprep.mubr.bf16.mxu0 %v1470
      %2775 = vmatmul.mubr.bf16.gmra.mrb[0].mxu0 %v1469
      %v2776 = vpop.f32.mrb[0].mxu0
      %v2777 = vadd.f32 %v2584, %v2776
      %v2778 = vpop.f32.mrb[0].mxu0
      %v2779 = vadd.f32 %v2586, %v2778
      %v2780 = vpop.f32.mrb[0].mxu0
      %v2781 = vadd.f32 %v2588, %v2780
      %v2782 = vpop.f32.mrb[0].mxu0
      %v2783 = vadd.f32 %v2590, %v2782
      %2784 = vmatprep.mubr.bf16.mxu0 %v1479
      %2785 = vmatmul.mubr.bf16.gmra.mrb[0].mxu0 %v1478
      %v2786 = vpop.f32.mrb[0].mxu0
      %v2787 = vadd.f32 %v2594, %v2786
      %v2788 = vpop.f32.mrb[0].mxu0
      %v2789 = vadd.f32 %v2596, %v2788
      %v2790 = vpop.f32.mrb[0].mxu0
      %v2791 = vadd.f32 %v2598, %v2790
      %v2792 = vpop.f32.mrb[0].mxu0
      %v2793 = vadd.f32 %v2600, %v2792
      %2794 = vmatprep.mubr.bf16.mxu0 %v1488
      %2795 = vmatmul.mubr.bf16.gmra.mrb[0].mxu0 %v1487
      %v2796 = vpop.f32.mrb[0].mxu0
      %v2797 = vadd.f32 %v2604, %v2796
      %v2798 = vpop.f32.mrb[0].mxu0
      %v2799 = vadd.f32 %v2606, %v2798
      %v2800 = vpop.f32.mrb[0].mxu0
      %v2801 = vadd.f32 %v2608, %v2800
      %v2802 = vpop.f32.mrb[0].mxu0
      %v2803 = vadd.f32 %v2610, %v2802
      %2804 = vmatprep.mubr.bf16.mxu0 %v1497
      %2805 = vmatmul.mubr.bf16.gmra.mrb[0].mxu0 %v1496
      %v2806 = vpop.f32.mrb[0].mxu0
      %v2807 = vadd.f32 %v2614, %v2806
      %v2808 = vpop.f32.mrb[0].mxu0
      %v2809 = vadd.f32 %v2616, %v2808
      %v2810 = vpop.f32.mrb[0].mxu0
      %v2811 = vadd.f32 %v2618, %v2810
      %v2812 = vpop.f32.mrb[0].mxu0
      %v2813 = vadd.f32 %v2620, %v2812
      %2814 = vmatprep.mubr.bf16.mxu0 %v1506
      %2815 = vmatmul.mubr.bf16.gmra.mrb[0].mxu0 %v1505
      %v2816 = vpop.f32.mrb[0].mxu0
      %v2817 = vadd.f32 %v2624, %v2816
      %v2818 = vpop.f32.mrb[0].mxu0
      %v2819 = vadd.f32 %v2626, %v2818
      %v2820 = vpop.f32.mrb[0].mxu0
      %v2821 = vadd.f32 %v2628, %v2820
      %v2822 = vpop.f32.mrb[0].mxu0
      %v2823 = vadd.f32 %v2630, %v2822
      %2824 = vmatprep.mubr.bf16.mxu0 %v1515
      %2825 = vmatmul.mubr.bf16.gmra.mrb[0].mxu0 %v1514
      %v2826 = vpop.f32.mrb[0].mxu0
      %v2827 = vadd.f32 %v2634, %v2826
      %v2828 = vpop.f32.mrb[0].mxu0
      %v2829 = vadd.f32 %v2636, %v2828
      %v2830 = vpop.f32.mrb[0].mxu0
      %v2831 = vadd.f32 %v2638, %v2830
      %v2832 = vpop.f32.mrb[0].mxu0
      %v2833 = vadd.f32 %v2640, %v2832
      %2834 = vdwg.mxu0
      %2835 = vmatprep.subr.bf16.mxu0 %v2226
      %2836 = vmatpush1.bf16.msra.mxu0 %v2225
      %2837 = vmatprep.subr.bf16.mxu0 %v2228
      %2838 = vmatpush1.bf16.msra.mxu0 %v2227
      %2839 = vmatprep.subr.bf16.mxu0 %v2230
      %2840 = vmatpush1.bf16.msra.mxu0 %v2229
      %2841 = vmatprep.subr.bf16.mxu0 %v2232
      %2842 = vmatpush1.bf16.msra.mxu0 %v2231
      %2843 = vmatprep.subr.bf16.mxu0 %v2234
      %2844 = vmatpush1.bf16.msra.mxu0 %v2233
      %2845 = vmatprep.subr.bf16.mxu0 %v2236
      %2846 = vmatpush1.bf16.msra.mxu0 %v2235
      %2847 = vmatprep.subr.bf16.mxu0 %v2238
      %2848 = vmatpush1.bf16.msra.mxu0 %v2237
      %2849 = vmatprep.subr.bf16.mxu0 %v2240
      %2850 = vmatpush1.bf16.msra.mxu0 %v2239
      %2851 = vmatprep.subr.bf16.mxu0 %v2242
      %2852 = vmatpush1.bf16.msra.mxu0 %v2241
      %2853 = vmatprep.subr.bf16.mxu0 %v2244
      %2854 = vmatpush1.bf16.msra.mxu0 %v2243
      %2855 = vmatprep.subr.bf16.mxu0 %v2246
      %2856 = vmatpush1.bf16.msra.mxu0 %v2245
      %2857 = vmatprep.subr.bf16.mxu0 %v2248
      %2858 = vmatpush1.bf16.msra.mxu0 %v2247
      %2859 = vmatprep.subr.bf16.mxu0 %v2250
      %2860 = vmatpush1.bf16.msra.mxu0 %v2249
      %2861 = vmatprep.subr.bf16.mxu0 %v2252
      %2862 = vmatpush1.bf16.msra.mxu0 %v2251
      %2863 = vmatprep.subr.bf16.mxu0 %v2254
      %2864 = vmatpush1.bf16.msra.mxu0 %v2253
      %2865 = vmatprep.subr.bf16.mxu0 %v2256
      %2866 = vmatpush1.bf16.msra.mxu0 %v2255
      %2867 = vmatprep.mubr.bf16.mxu0 %v1382
      %2868 = vmatmul.mubr.bf16.gmra.mrb[0].mxu0 %v1381
      %v2869 = vpop.f32.mrb[0].mxu0
      %v2870 = vadd.f32 %v2677, %v2869
      %v2871 = vpop.f32.mrb[0].mxu0
      %v2872 = vadd.f32 %v2679, %v2871
      %v2873 = vpop.f32.mrb[0].mxu0
      %v2874 = vadd.f32 %v2681, %v2873
      %v2875 = vpop.f32.mrb[0].mxu0
      %v2876 = vadd.f32 %v2683, %v2875
      %2877 = vmatprep.mubr.bf16.mxu0 %v1391
      %2878 = vmatmul.mubr.bf16.gmra.mrb[0].mxu0 %v1390
      %v2879 = vpop.f32.mrb[0].mxu0
      %v2880 = vadd.f32 %v2687, %v2879
      %v2881 = vpop.f32.mrb[0].mxu0
      %v2882 = vadd.f32 %v2689, %v2881
      %v2883 = vpop.f32.mrb[0].mxu0
      %v2884 = vadd.f32 %v2691, %v2883
      %v2885 = vpop.f32.mrb[0].mxu0
      %v2886 = vadd.f32 %v2693, %v2885
      %2887 = vmatprep.mubr.bf16.mxu0 %v1400
      %2888 = vmatmul.mubr.bf16.gmra.mrb[0].mxu0 %v1399
      %v2889 = vpop.f32.mrb[0].mxu0
      %v2890 = vadd.f32 %v2697, %v2889
      %v2891 = vpop.f32.mrb[0].mxu0
      %v2892 = vadd.f32 %v2699, %v2891
      %v2893 = vpop.f32.mrb[0].mxu0
      %v2894 = vadd.f32 %v2701, %v2893
      %v2895 = vpop.f32.mrb[0].mxu0
      %v2896 = vadd.f32 %v2703, %v2895
      %2897 = vmatprep.mubr.bf16.mxu0 %v1409
      %2898 = vmatmul.mubr.bf16.gmra.mrb[0].mxu0 %v1408
      %v2899 = vpop.f32.mrb[0].mxu0
      %v2900 = vadd.f32 %v2707, %v2899
      %v2901 = vpop.f32.mrb[0].mxu0
      %v2902 = vadd.f32 %v2709, %v2901
      %v2903 = vpop.f32.mrb[0].mxu0
      %v2904 = vadd.f32 %v2711, %v2903
      %v2905 = vpop.f32.mrb[0].mxu0
      %v2906 = vadd.f32 %v2713, %v2905
      %2907 = vmatprep.mubr.bf16.mxu0 %v1418
      %2908 = vmatmul.mubr.bf16.gmra.mrb[0].mxu0 %v1417
      %v2909 = vpop.f32.mrb[0].mxu0
      %v2910 = vadd.f32 %v2717, %v2909
      %v2911 = vpop.f32.mrb[0].mxu0
      %v2912 = vadd.f32 %v2719, %v2911
      %v2913 = vpop.f32.mrb[0].mxu0
      %v2914 = vadd.f32 %v2721, %v2913
      %v2915 = vpop.f32.mrb[0].mxu0
      %v2916 = vadd.f32 %v2723, %v2915
      %2917 = vmatprep.mubr.bf16.mxu0 %v1427
      %2918 = vmatmul.mubr.bf16.gmra.mrb[0].mxu0 %v1426
      %v2919 = vpop.f32.mrb[0].mxu0
      %v2920 = vadd.f32 %v2727, %v2919
      %v2921 = vpop.f32.mrb[0].mxu0
      %v2922 = vadd.f32 %v2729, %v2921
      %v2923 = vpop.f32.mrb[0].mxu0
      %v2924 = vadd.f32 %v2731, %v2923
      %v2925 = vpop.f32.mrb[0].mxu0
      %v2926 = vadd.f32 %v2733, %v2925
      %2927 = vmatprep.mubr.bf16.mxu0 %v1436
      %2928 = vmatmul.mubr.bf16.gmra.mrb[0].mxu0 %v1435
      %v2929 = vpop.f32.mrb[0].mxu0
      %v2930 = vadd.f32 %v2737, %v2929
      %v2931 = vpop.f32.mrb[0].mxu0
      %v2932 = vadd.f32 %v2739, %v2931
      %v2933 = vpop.f32.mrb[0].mxu0
      %v2934 = vadd.f32 %v2741, %v2933
      %v2935 = vpop.f32.mrb[0].mxu0
      %v2936 = vadd.f32 %v2743, %v2935
      %2937 = vmatprep.mubr.bf16.mxu0 %v1445
      %2938 = vmatmul.mubr.bf16.gmra.mrb[0].mxu0 %v1444
      %v2939 = vpop.f32.mrb[0].mxu0
      %v2940 = vadd.f32 %v2747, %v2939
      %v2941 = vpop.f32.mrb[0].mxu0
      %v2942 = vadd.f32 %v2749, %v2941
      %v2943 = vpop.f32.mrb[0].mxu0
      %v2944 = vadd.f32 %v2751, %v2943
      %v2945 = vpop.f32.mrb[0].mxu0
      %v2946 = vadd.f32 %v2753, %v2945
      %2947 = vmatprep.mubr.bf16.mxu0 %v1454
      %2948 = vmatmul.mubr.bf16.gmra.mrb[0].mxu0 %v1453
      %v2949 = vpop.f32.mrb[0].mxu0
      %v2950 = vadd.f32 %v2757, %v2949
      %v2951 = vpop.f32.mrb[0].mxu0
      %v2952 = vadd.f32 %v2759, %v2951
      %v2953 = vpop.f32.mrb[0].mxu0
      %v2954 = vadd.f32 %v2761, %v2953
      %v2955 = vpop.f32.mrb[0].mxu0
      %v2956 = vadd.f32 %v2763, %v2955
      %2957 = vmatprep.mubr.bf16.mxu0 %v1463
      %2958 = vmatmul.mubr.bf16.gmra.mrb[0].mxu0 %v1462
      %v2959 = vpop.f32.mrb[0].mxu0
      %v2960 = vadd.f32 %v2767, %v2959
      %v2961 = vpop.f32.mrb[0].mxu0
      %v2962 = vadd.f32 %v2769, %v2961
      %v2963 = vpop.f32.mrb[0].mxu0
      %v2964 = vadd.f32 %v2771, %v2963
      %v2965 = vpop.f32.mrb[0].mxu0
      %v2966 = vadd.f32 %v2773, %v2965
      %2967 = vmatprep.mubr.bf16.mxu0 %v1472
      %2968 = vmatmul.mubr.bf16.gmra.mrb[0].mxu0 %v1471
      %v2969 = vpop.f32.mrb[0].mxu0
      %v2970 = vadd.f32 %v2777, %v2969
      %v2971 = vpop.f32.mrb[0].mxu0
      %v2972 = vadd.f32 %v2779, %v2971
      %v2973 = vpop.f32.mrb[0].mxu0
      %v2974 = vadd.f32 %v2781, %v2973
      %v2975 = vpop.f32.mrb[0].mxu0
      %v2976 = vadd.f32 %v2783, %v2975
      %2977 = vmatprep.mubr.bf16.mxu0 %v1481
      %2978 = vmatmul.mubr.bf16.gmra.mrb[0].mxu0 %v1480
      %v2979 = vpop.f32.mrb[0].mxu0
      %v2980 = vadd.f32 %v2787, %v2979
      %v2981 = vpop.f32.mrb[0].mxu0
      %v2982 = vadd.f32 %v2789, %v2981
      %v2983 = vpop.f32.mrb[0].mxu0
      %v2984 = vadd.f32 %v2791, %v2983
      %v2985 = vpop.f32.mrb[0].mxu0
      %v2986 = vadd.f32 %v2793, %v2985
      %2987 = vmatprep.mubr.bf16.mxu0 %v1490
      %2988 = vmatmul.mubr.bf16.gmra.mrb[0].mxu0 %v1489
      %v2989 = vpop.f32.mrb[0].mxu0
      %v2990 = vadd.f32 %v2797, %v2989
      %v2991 = vpop.f32.mrb[0].mxu0
      %v2992 = vadd.f32 %v2799, %v2991
      %v2993 = vpop.f32.mrb[0].mxu0
      %v2994 = vadd.f32 %v2801, %v2993
      %v2995 = vpop.f32.mrb[0].mxu0
      %v2996 = vadd.f32 %v2803, %v2995
      %2997 = vmatprep.mubr.bf16.mxu0 %v1499
      %2998 = vmatmul.mubr.bf16.gmra.mrb[0].mxu0 %v1498
      %v2999 = vpop.f32.mrb[0].mxu0
      %v3000 = vadd.f32 %v2807, %v2999
      %v3001 = vpop.f32.mrb[0].mxu0
      %v3002 = vadd.f32 %v2809, %v3001
      %v3003 = vpop.f32.mrb[0].mxu0
      %v3004 = vadd.f32 %v2811, %v3003
      %v3005 = vpop.f32.mrb[0].mxu0
      %v3006 = vadd.f32 %v2813, %v3005
      %3007 = vmatprep.mubr.bf16.mxu0 %v1508
      %3008 = vmatmul.mubr.bf16.gmra.mrb[0].mxu0 %v1507
      %v3009 = vpop.f32.mrb[0].mxu0
      %v3010 = vadd.f32 %v2817, %v3009
      %v3011 = vpop.f32.mrb[0].mxu0
      %v3012 = vadd.f32 %v2819, %v3011
      %v3013 = vpop.f32.mrb[0].mxu0
      %v3014 = vadd.f32 %v2821, %v3013
      %v3015 = vpop.f32.mrb[0].mxu0
      %v3016 = vadd.f32 %v2823, %v3015
      %3017 = vmatprep.mubr.bf16.mxu0 %v1517
      %3018 = vmatmul.mubr.bf16.gmra.mrb[0].mxu0 %v1516
      %v3019 = vpop.f32.mrb[0].mxu0
      %v3020 = vadd.f32 %v2827, %v3019
      %v3021 = vpop.f32.mrb[0].mxu0
      %v3022 = vadd.f32 %v2829, %v3021
      %v3023 = vpop.f32.mrb[0].mxu0
      %v3024 = vadd.f32 %v2831, %v3023
      %v3025 = vpop.f32.mrb[0].mxu0
      %v3026 = vadd.f32 %v2833, %v3025
      %3027 = vdwg.mxu0
      %3028 = vmatprep.subr.bf16.mxu0 %v2258
      %3029 = vmatpush1.bf16.msra.mxu0 %v2257
      %3030 = vmatprep.subr.bf16.mxu0 %v2260
      %3031 = vmatpush1.bf16.msra.mxu0 %v2259
      %3032 = vmatprep.subr.bf16.mxu0 %v2262
      %3033 = vmatpush1.bf16.msra.mxu0 %v2261
      %3034 = vmatprep.subr.bf16.mxu0 %v2264
      %3035 = vmatpush1.bf16.msra.mxu0 %v2263
      %3036 = vmatprep.subr.bf16.mxu0 %v2266
      %3037 = vmatpush1.bf16.msra.mxu0 %v2265
      %3038 = vmatprep.subr.bf16.mxu0 %v2268
      %3039 = vmatpush1.bf16.msra.mxu0 %v2267
      %3040 = vmatprep.subr.bf16.mxu0 %v2270
      %3041 = vmatpush1.bf16.msra.mxu0 %v2269
      %3042 = vmatprep.subr.bf16.mxu0 %v2272
      %3043 = vmatpush1.bf16.msra.mxu0 %v2271
      %3044 = vmatprep.subr.bf16.mxu0 %v2274
      %3045 = vmatpush1.bf16.msra.mxu0 %v2273
      %3046 = vmatprep.subr.bf16.mxu0 %v2276
      %3047 = vmatpush1.bf16.msra.mxu0 %v2275
      %3048 = vmatprep.subr.bf16.mxu0 %v2278
      %3049 = vmatpush1.bf16.msra.mxu0 %v2277
      %3050 = vmatprep.subr.bf16.mxu0 %v2280
      %3051 = vmatpush1.bf16.msra.mxu0 %v2279
      %3052 = vmatprep.subr.bf16.mxu0 %v2282
      %3053 = vmatpush1.bf16.msra.mxu0 %v2281
      %3054 = vmatprep.subr.bf16.mxu0 %v2284
      %3055 = vmatpush1.bf16.msra.mxu0 %v2283
      %3056 = vmatprep.subr.bf16.mxu0 %v2286
      %3057 = vmatpush1.bf16.msra.mxu0 %v2285
      %3058 = vmatprep.subr.bf16.mxu0 %v2288
      %3059 = vmatpush1.bf16.msra.mxu0 %v2287
      %3060 = vmatprep.mubr.bf16.mxu0 %v1384
      %3061 = vmatmul.mubr.bf16.gmra.mrb[0].mxu0 %v1383
      %v3062 = vpop.f32.mrb[0].mxu0
      %v3063 = vadd.f32 %v2870, %v3062
      %v3064 = vpop.f32.mrb[0].mxu0
      %v3065 = vadd.f32 %v2872, %v3064
      %v3066 = vpop.f32.mrb[0].mxu0
      %v3067 = vadd.f32 %v2874, %v3066
      %v3068 = vpop.f32.mrb[0].mxu0
      %v3069 = vadd.f32 %v2876, %v3068
      %3070 = vmatprep.mubr.bf16.mxu0 %v1393
      %3071 = vmatmul.mubr.bf16.gmra.mrb[0].mxu0 %v1392
      %v3072 = vpop.f32.mrb[0].mxu0
      %v3073 = vadd.f32 %v2880, %v3072
      %v3074 = vpop.f32.mrb[0].mxu0
      %v3075 = vadd.f32 %v2882, %v3074
      %v3076 = vpop.f32.mrb[0].mxu0
      %v3077 = vadd.f32 %v2884, %v3076
      %v3078 = vpop.f32.mrb[0].mxu0
      %v3079 = vadd.f32 %v2886, %v3078
      %3080 = vmatprep.mubr.bf16.mxu0 %v1402
      %3081 = vmatmul.mubr.bf16.gmra.mrb[0].mxu0 %v1401
      %v3082 = vpop.f32.mrb[0].mxu0
      %v3083 = vadd.f32 %v2890, %v3082
      %v3084 = vpop.f32.mrb[0].mxu0
      %v3085 = vadd.f32 %v2892, %v3084
      %v3086 = vpop.f32.mrb[0].mxu0
      %v3087 = vadd.f32 %v2894, %v3086
      %v3088 = vpop.f32.mrb[0].mxu0
      %v3089 = vadd.f32 %v2896, %v3088
      %3090 = vmatprep.mubr.bf16.mxu0 %v1411
      %3091 = vmatmul.mubr.bf16.gmra.mrb[0].mxu0 %v1410
      %v3092 = vpop.f32.mrb[0].mxu0
      %v3093 = vadd.f32 %v2900, %v3092
      %v3094 = vpop.f32.mrb[0].mxu0
      %v3095 = vadd.f32 %v2902, %v3094
      %v3096 = vpop.f32.mrb[0].mxu0
      %v3097 = vadd.f32 %v2904, %v3096
      %v3098 = vpop.f32.mrb[0].mxu0
      %v3099 = vadd.f32 %v2906, %v3098
      %3100 = vmatprep.mubr.bf16.mxu0 %v1420
      %3101 = vmatmul.mubr.bf16.gmra.mrb[0].mxu0 %v1419
      %v3102 = vpop.f32.mrb[0].mxu0
      %v3103 = vadd.f32 %v2910, %v3102
      %v3104 = vpop.f32.mrb[0].mxu0
      %v3105 = vadd.f32 %v2912, %v3104
      %v3106 = vpop.f32.mrb[0].mxu0
      %v3107 = vadd.f32 %v2914, %v3106
      %v3108 = vpop.f32.mrb[0].mxu0
      %v3109 = vadd.f32 %v2916, %v3108
      %3110 = vmatprep.mubr.bf16.mxu0 %v1429
      %3111 = vmatmul.mubr.bf16.gmra.mrb[0].mxu0 %v1428
      %v3112 = vpop.f32.mrb[0].mxu0
      %v3113 = vadd.f32 %v2920, %v3112
      %v3114 = vpop.f32.mrb[0].mxu0
      %v3115 = vadd.f32 %v2922, %v3114
      %v3116 = vpop.f32.mrb[0].mxu0
      %v3117 = vadd.f32 %v2924, %v3116
      %v3118 = vpop.f32.mrb[0].mxu0
      %v3119 = vadd.f32 %v2926, %v3118
      %3120 = vmatprep.mubr.bf16.mxu0 %v1438
      %3121 = vmatmul.mubr.bf16.gmra.mrb[0].mxu0 %v1437
      %v3122 = vpop.f32.mrb[0].mxu0
      %v3123 = vadd.f32 %v2930, %v3122
      %v3124 = vpop.f32.mrb[0].mxu0
      %v3125 = vadd.f32 %v2932, %v3124
      %v3126 = vpop.f32.mrb[0].mxu0
      %v3127 = vadd.f32 %v2934, %v3126
      %v3128 = vpop.f32.mrb[0].mxu0
      %v3129 = vadd.f32 %v2936, %v3128
      %3130 = vmatprep.mubr.bf16.mxu0 %v1447
      %3131 = vmatmul.mubr.bf16.gmra.mrb[0].mxu0 %v1446
      %v3132 = vpop.f32.mrb[0].mxu0
      %v3133 = vadd.f32 %v2940, %v3132
      %v3134 = vpop.f32.mrb[0].mxu0
      %v3135 = vadd.f32 %v2942, %v3134
      %v3136 = vpop.f32.mrb[0].mxu0
      %v3137 = vadd.f32 %v2944, %v3136
      %v3138 = vpop.f32.mrb[0].mxu0
      %v3139 = vadd.f32 %v2946, %v3138
      %3140 = vmatprep.mubr.bf16.mxu0 %v1456
      %3141 = vmatmul.mubr.bf16.gmra.mrb[0].mxu0 %v1455
      %v3142 = vpop.f32.mrb[0].mxu0
      %v3143 = vadd.f32 %v2950, %v3142
      %v3144 = vpop.f32.mrb[0].mxu0
      %v3145 = vadd.f32 %v2952, %v3144
      %v3146 = vpop.f32.mrb[0].mxu0
      %v3147 = vadd.f32 %v2954, %v3146
      %v3148 = vpop.f32.mrb[0].mxu0
      %v3149 = vadd.f32 %v2956, %v3148
      %3150 = vmatprep.mubr.bf16.mxu0 %v1465
      %3151 = vmatmul.mubr.bf16.gmra.mrb[0].mxu0 %v1464
      %v3152 = vpop.f32.mrb[0].mxu0
      %v3153 = vadd.f32 %v2960, %v3152
      %v3154 = vpop.f32.mrb[0].mxu0
      %v3155 = vadd.f32 %v2962, %v3154
      %v3156 = vpop.f32.mrb[0].mxu0
      %v3157 = vadd.f32 %v2964, %v3156
      %v3158 = vpop.f32.mrb[0].mxu0
      %v3159 = vadd.f32 %v2966, %v3158
      %3160 = vmatprep.mubr.bf16.mxu0 %v1474
      %3161 = vmatmul.mubr.bf16.gmra.mrb[0].mxu0 %v1473
      %v3162 = vpop.f32.mrb[0].mxu0
      %v3163 = vadd.f32 %v2970, %v3162
      %v3164 = vpop.f32.mrb[0].mxu0
      %v3165 = vadd.f32 %v2972, %v3164
      %v3166 = vpop.f32.mrb[0].mxu0
      %v3167 = vadd.f32 %v2974, %v3166
      %v3168 = vpop.f32.mrb[0].mxu0
      %v3169 = vadd.f32 %v2976, %v3168
      %3170 = vmatprep.mubr.bf16.mxu0 %v1483
      %3171 = vmatmul.mubr.bf16.gmra.mrb[0].mxu0 %v1482
      %v3172 = vpop.f32.mrb[0].mxu0
      %v3173 = vadd.f32 %v2980, %v3172
      %v3174 = vpop.f32.mrb[0].mxu0
      %v3175 = vadd.f32 %v2982, %v3174
      %v3176 = vpop.f32.mrb[0].mxu0
      %v3177 = vadd.f32 %v2984, %v3176
      %v3178 = vpop.f32.mrb[0].mxu0
      %v3179 = vadd.f32 %v2986, %v3178
      %3180 = vmatprep.mubr.bf16.mxu0 %v1492
      %3181 = vmatmul.mubr.bf16.gmra.mrb[0].mxu0 %v1491
      %v3182 = vpop.f32.mrb[0].mxu0
      %v3183 = vadd.f32 %v2990, %v3182
      %v3184 = vpop.f32.mrb[0].mxu0
      %v3185 = vadd.f32 %v2992, %v3184
      %v3186 = vpop.f32.mrb[0].mxu0
      %v3187 = vadd.f32 %v2994, %v3186
      %v3188 = vpop.f32.mrb[0].mxu0
      %v3189 = vadd.f32 %v2996, %v3188
      %3190 = vmatprep.mubr.bf16.mxu0 %v1501
      %3191 = vmatmul.mubr.bf16.gmra.mrb[0].mxu0 %v1500
      %v3192 = vpop.f32.mrb[0].mxu0
      %v3193 = vadd.f32 %v3000, %v3192
      %v3194 = vpop.f32.mrb[0].mxu0
      %v3195 = vadd.f32 %v3002, %v3194
      %v3196 = vpop.f32.mrb[0].mxu0
      %v3197 = vadd.f32 %v3004, %v3196
      %v3198 = vpop.f32.mrb[0].mxu0
      %v3199 = vadd.f32 %v3006, %v3198
      %3200 = vmatprep.mubr.bf16.mxu0 %v1510
      %3201 = vmatmul.mubr.bf16.gmra.mrb[0].mxu0 %v1509
      %v3202 = vpop.f32.mrb[0].mxu0
      %v3203 = vadd.f32 %v3010, %v3202
      %v3204 = vpop.f32.mrb[0].mxu0
      %v3205 = vadd.f32 %v3012, %v3204
      %v3206 = vpop.f32.mrb[0].mxu0
      %v3207 = vadd.f32 %v3014, %v3206
      %v3208 = vpop.f32.mrb[0].mxu0
      %v3209 = vadd.f32 %v3016, %v3208
      %3210 = vmatprep.mubr.bf16.mxu0 %v1519
      %3211 = vmatmul.mubr.bf16.gmra.mrb[0].mxu0 %v1518
      %v3212 = vpop.f32.mrb[0].mxu0
      %v3213 = vadd.f32 %v3020, %v3212
      %v3214 = vpop.f32.mrb[0].mxu0
      %v3215 = vadd.f32 %v3022, %v3214
      %v3216 = vpop.f32.mrb[0].mxu0
      %v3217 = vadd.f32 %v3024, %v3216
      %v3218 = vpop.f32.mrb[0].mxu0
      %v3219 = vadd.f32 %v3026, %v3218
      %3220 = vdwg.mxu0
      %3221 = vmatprep.subr.bf16.mxu0 %v2290
      %3222 = vmatpush1.bf16.msra.mxu0 %v2289
      %3223 = vmatprep.subr.bf16.mxu0 %v2292
      %3224 = vmatpush1.bf16.msra.mxu0 %v2291
      %3225 = vmatprep.subr.bf16.mxu0 %v2294
      %3226 = vmatpush1.bf16.msra.mxu0 %v2293
      %3227 = vmatprep.subr.bf16.mxu0 %v2296
      %3228 = vmatpush1.bf16.msra.mxu0 %v2295
      %3229 = vmatprep.subr.bf16.mxu0 %v2298
      %3230 = vmatpush1.bf16.msra.mxu0 %v2297
      %3231 = vmatprep.subr.bf16.mxu0 %v2300
      %3232 = vmatpush1.bf16.msra.mxu0 %v2299
      %3233 = vmatprep.subr.bf16.mxu0 %v2302
      %3234 = vmatpush1.bf16.msra.mxu0 %v2301
      %3235 = vmatprep.subr.bf16.mxu0 %v2304
      %3236 = vmatpush1.bf16.msra.mxu0 %v2303
      %3237 = vmatprep.subr.bf16.mxu0 0
      %3238 = vmatpush1.bf16.msra.mxu0 0
      %3239 = vmatprep.subr.bf16.mxu0 0
      %3240 = vmatpush1.bf16.msra.mxu0 0
      %3241 = vmatprep.subr.bf16.mxu0 0
      %3242 = vmatpush1.bf16.msra.mxu0 0
      %3243 = vmatprep.subr.bf16.mxu0 0
      %3244 = vmatpush1.bf16.msra.mxu0 0
      %3245 = vmatprep.subr.bf16.mxu0 0
      %3246 = vmatpush1.bf16.msra.mxu0 0
      %3247 = vmatprep.subr.bf16.mxu0 0
      %3248 = vmatpush1.bf16.msra.mxu0 0
      %3249 = vmatprep.subr.bf16.mxu0 0
      %3250 = vmatpush1.bf16.msra.mxu0 0
      %3251 = vmatprep.subr.bf16.mxu0 0
      %3252 = vmatpush1.bf16.msra.mxu0 0
      %3253 = vmatprep.mubr.bf16.mxu0 0
      %3254 = vmatmul.mubr.bf16.gmra.mrb[0].mxu0 %v1385
      %v3255 = vpop.f32.mrb[0].mxu0
      %v3256 = vadd.f32 %v3063, %v3255
      %v3257 = vpop.f32.mrb[0].mxu0
      %v3258 = vadd.f32 %v3065, %v3257
      %v3259 = vpop.f32.mrb[0].mxu0
      %v3260 = vadd.f32 %v3067, %v3259
      %v3261 = vpop.f32.mrb[0].mxu0
      %v3262 = vadd.f32 %v3069, %v3261
      %3263 = vmatprep.mubr.bf16.mxu0 0
      %3264 = vmatmul.mubr.bf16.gmra.mrb[0].mxu0 %v1394
      %v3265 = vpop.f32.mrb[0].mxu0
      %v3266 = vadd.f32 %v3073, %v3265
      %v3267 = vpop.f32.mrb[0].mxu0
      %v3268 = vadd.f32 %v3075, %v3267
      %v3269 = vpop.f32.mrb[0].mxu0
      %v3270 = vadd.f32 %v3077, %v3269
      %v3271 = vpop.f32.mrb[0].mxu0
      %v3272 = vadd.f32 %v3079, %v3271
      %3273 = vmatprep.mubr.bf16.mxu0 0
      %3274 = vmatmul.mubr.bf16.gmra.mrb[0].mxu0 %v1403
      %v3275 = vpop.f32.mrb[0].mxu0
      %v3276 = vadd.f32 %v3083, %v3275
      %v3277 = vpop.f32.mrb[0].mxu0
      %v3278 = vadd.f32 %v3085, %v3277
      %v3279 = vpop.f32.mrb[0].mxu0
      %v3280 = vadd.f32 %v3087, %v3279
      %v3281 = vpop.f32.mrb[0].mxu0
      %v3282 = vadd.f32 %v3089, %v3281
      %3283 = vmatprep.mubr.bf16.mxu0 0
      %3284 = vmatmul.mubr.bf16.gmra.mrb[0].mxu0 %v1412
      %v3285 = vpop.f32.mrb[0].mxu0
      %v3286 = vadd.f32 %v3093, %v3285
      %v3287 = vpop.f32.mrb[0].mxu0
      %v3288 = vadd.f32 %v3095, %v3287
      %v3289 = vpop.f32.mrb[0].mxu0
      %v3290 = vadd.f32 %v3097, %v3289
      %v3291 = vpop.f32.mrb[0].mxu0
      %v3292 = vadd.f32 %v3099, %v3291
      %3293 = vmatprep.mubr.bf16.mxu0 0
      %3294 = vmatmul.mubr.bf16.gmra.mrb[0].mxu0 %v1421
      %v3295 = vpop.f32.mrb[0].mxu0
      %v3296 = vadd.f32 %v3103, %v3295
      %v3297 = vpop.f32.mrb[0].mxu0
      %v3298 = vadd.f32 %v3105, %v3297
      %v3299 = vpop.f32.mrb[0].mxu0
      %v3300 = vadd.f32 %v3107, %v3299
      %v3301 = vpop.f32.mrb[0].mxu0
      %v3302 = vadd.f32 %v3109, %v3301
      %3303 = vmatprep.mubr.bf16.mxu0 0
      %3304 = vmatmul.mubr.bf16.gmra.mrb[0].mxu0 %v1430
      %v3305 = vpop.f32.mrb[0].mxu0
      %v3306 = vadd.f32 %v3113, %v3305
      %v3307 = vpop.f32.mrb[0].mxu0
      %v3308 = vadd.f32 %v3115, %v3307
      %v3309 = vpop.f32.mrb[0].mxu0
      %v3310 = vadd.f32 %v3117, %v3309
      %v3311 = vpop.f32.mrb[0].mxu0
      %v3312 = vadd.f32 %v3119, %v3311
      %3313 = vmatprep.mubr.bf16.mxu0 0
      %3314 = vmatmul.mubr.bf16.gmra.mrb[0].mxu0 %v1439
      %v3315 = vpop.f32.mrb[0].mxu0
      %v3316 = vadd.f32 %v3123, %v3315
      %v3317 = vpop.f32.mrb[0].mxu0
      %v3318 = vadd.f32 %v3125, %v3317
      %v3319 = vpop.f32.mrb[0].mxu0
      %v3320 = vadd.f32 %v3127, %v3319
      %v3321 = vpop.f32.mrb[0].mxu0
      %v3322 = vadd.f32 %v3129, %v3321
      %3323 = vmatprep.mubr.bf16.mxu0 0
      %3324 = vmatmul.mubr.bf16.gmra.mrb[0].mxu0 %v1448
      %v3325 = vpop.f32.mrb[0].mxu0
      %v3326 = vadd.f32 %v3133, %v3325
      %v3327 = vpop.f32.mrb[0].mxu0
      %v3328 = vadd.f32 %v3135, %v3327
      %v3329 = vpop.f32.mrb[0].mxu0
      %v3330 = vadd.f32 %v3137, %v3329
      %v3331 = vpop.f32.mrb[0].mxu0
      %v3332 = vadd.f32 %v3139, %v3331
      %3333 = vmatprep.mubr.bf16.mxu0 0
      %3334 = vmatmul.mubr.bf16.gmra.mrb[0].mxu0 %v1457
      %v3335 = vpop.f32.mrb[0].mxu0
      %v3336 = vadd.f32 %v3143, %v3335
      %v3337 = vpop.f32.mrb[0].mxu0
      %v3338 = vadd.f32 %v3145, %v3337
      %v3339 = vpop.f32.mrb[0].mxu0
      %v3340 = vadd.f32 %v3147, %v3339
      %v3341 = vpop.f32.mrb[0].mxu0
      %v3342 = vadd.f32 %v3149, %v3341
      %3343 = vmatprep.mubr.bf16.mxu0 0
      %3344 = vmatmul.mubr.bf16.gmra.mrb[0].mxu0 %v1466
      %v3345 = vpop.f32.mrb[0].mxu0
      %v3346 = vadd.f32 %v3153, %v3345
      %v3347 = vpop.f32.mrb[0].mxu0
      %v3348 = vadd.f32 %v3155, %v3347
      %v3349 = vpop.f32.mrb[0].mxu0
      %v3350 = vadd.f32 %v3157, %v3349
      %v3351 = vpop.f32.mrb[0].mxu0
      %v3352 = vadd.f32 %v3159, %v3351
      %3353 = vmatprep.mubr.bf16.mxu0 0
      %3354 = vmatmul.mubr.bf16.gmra.mrb[0].mxu0 %v1475
      %v3355 = vpop.f32.mrb[0].mxu0
      %v3356 = vadd.f32 %v3163, %v3355
      %v3357 = vpop.f32.mrb[0].mxu0
      %v3358 = vadd.f32 %v3165, %v3357
      %v3359 = vpop.f32.mrb[0].mxu0
      %v3360 = vadd.f32 %v3167, %v3359
      %v3361 = vpop.f32.mrb[0].mxu0
      %v3362 = vadd.f32 %v3169, %v3361
      %3363 = vmatprep.mubr.bf16.mxu0 0
      %3364 = vmatmul.mubr.bf16.gmra.mrb[0].mxu0 %v1484
      %v3365 = vpop.f32.mrb[0].mxu0
      %v3366 = vadd.f32 %v3173, %v3365
      %v3367 = vpop.f32.mrb[0].mxu0
      %v3368 = vadd.f32 %v3175, %v3367
      %v3369 = vpop.f32.mrb[0].mxu0
      %v3370 = vadd.f32 %v3177, %v3369
      %v3371 = vpop.f32.mrb[0].mxu0
      %v3372 = vadd.f32 %v3179, %v3371
      %3373 = vmatprep.mubr.bf16.mxu0 0
      %3374 = vmatmul.mubr.bf16.gmra.mrb[0].mxu0 %v1493
      %v3375 = vpop.f32.mrb[0].mxu0
      %v3376 = vadd.f32 %v3183, %v3375
      %v3377 = vpop.f32.mrb[0].mxu0
      %v3378 = vadd.f32 %v3185, %v3377
      %v3379 = vpop.f32.mrb[0].mxu0
      %v3380 = vadd.f32 %v3187, %v3379
      %v3381 = vpop.f32.mrb[0].mxu0
      %v3382 = vadd.f32 %v3189, %v3381
      %3383 = vmatprep.mubr.bf16.mxu0 0
      %3384 = vmatmul.mubr.bf16.gmra.mrb[0].mxu0 %v1502
      %v3385 = vpop.f32.mrb[0].mxu0
      %v3386 = vadd.f32 %v3193, %v3385
      %v3387 = vpop.f32.mrb[0].mxu0
      %v3388 = vadd.f32 %v3195, %v3387
      %v3389 = vpop.f32.mrb[0].mxu0
      %v3390 = vadd.f32 %v3197, %v3389
      %v3391 = vpop.f32.mrb[0].mxu0
      %v3392 = vadd.f32 %v3199, %v3391
      %3393 = vmatprep.mubr.bf16.mxu0 0
      %3394 = vmatmul.mubr.bf16.gmra.mrb[0].mxu0 %v1511
      %v3395 = vpop.f32.mrb[0].mxu0
      %v3396 = vadd.f32 %v3203, %v3395
      %v3397 = vpop.f32.mrb[0].mxu0
      %v3398 = vadd.f32 %v3205, %v3397
      %v3399 = vpop.f32.mrb[0].mxu0
      %v3400 = vadd.f32 %v3207, %v3399
      %v3401 = vpop.f32.mrb[0].mxu0
      %v3402 = vadd.f32 %v3209, %v3401
      %3403 = vmatprep.mubr.bf16.mxu0 0
      %3404 = vmatmul.mubr.bf16.gmra.mrb[0].mxu0 %v1520
      %v3405 = vpop.f32.mrb[0].mxu0
      %v3406 = vadd.f32 %v3213, %v3405
      %v3407 = vpop.f32.mrb[0].mxu0
      %v3408 = vadd.f32 %v3215, %v3407
      %v3409 = vpop.f32.mrb[0].mxu0
      %v3410 = vadd.f32 %v3217, %v3409
      %v3411 = vpop.f32.mrb[0].mxu0
      %v3412 = vadd.f32 %v3219, %v3411
      %3413 = vdwg.mxu0
      %v3414 = vadd.f32 %v1521, %v3256
      %v3415 = vadd.f32 %v1522, %v3258
      %v3416 = vadd.f32 %v1523, %v3260
      %v3417 = vadd.f32 %v1524, %v3262
      %v3418 = vadd.f32 %v1525, %v3266
      %v3419 = vadd.f32 %v1526, %v3268
      %v3420 = vadd.f32 %v1527, %v3270
      %v3421 = vadd.f32 %v1528, %v3272
      %v3422 = vadd.f32 %v1529, %v3276
      %v3423 = vadd.f32 %v1530, %v3278
      %v3424 = vadd.f32 %v1531, %v3280
      %v3425 = vadd.f32 %v1532, %v3282
      %v3426 = vadd.f32 %v1533, %v3286
      %v3427 = vadd.f32 %v1534, %v3288
      %v3428 = vadd.f32 %v1535, %v3290
      %v3429 = vadd.f32 %v1536, %v3292
      %v3430 = vadd.f32 %v1537, %v3296
      %v3431 = vadd.f32 %v1538, %v3298
      %v3432 = vadd.f32 %v1539, %v3300
      %v3433 = vadd.f32 %v1540, %v3302
      %v3434 = vadd.f32 %v1541, %v3306
      %v3435 = vadd.f32 %v1542, %v3308
      %v3436 = vadd.f32 %v1543, %v3310
      %v3437 = vadd.f32 %v1544, %v3312
      %v3438 = vadd.f32 %v1545, %v3316
      %v3439 = vadd.f32 %v1546, %v3318
      %v3440 = vadd.f32 %v1547, %v3320
      %v3441 = vadd.f32 %v1548, %v3322
      %v3442 = vadd.f32 %v1549, %v3326
      %v3443 = vadd.f32 %v1550, %v3328
      %v3444 = vadd.f32 %v1551, %v3330
      %v3445 = vadd.f32 %v1552, %v3332
      %v3446 = vadd.f32 %v1553, %v3336
      %v3447 = vadd.f32 %v1554, %v3338
      %v3448 = vadd.f32 %v1555, %v3340
      %v3449 = vadd.f32 %v1556, %v3342
      %v3450 = vadd.f32 %v1557, %v3346
      %v3451 = vadd.f32 %v1558, %v3348
      %v3452 = vadd.f32 %v1559, %v3350
      %v3453 = vadd.f32 %v1560, %v3352
      %v3454 = vadd.f32 %v1561, %v3356
      %v3455 = vadd.f32 %v1562, %v3358
      %v3456 = vadd.f32 %v1563, %v3360
      %v3457 = vadd.f32 %v1564, %v3362
      %v3458 = vadd.f32 %v1565, %v3366
      %v3459 = vadd.f32 %v1566, %v3368
      %v3460 = vadd.f32 %v1567, %v3370
      %v3461 = vadd.f32 %v1568, %v3372
      %v3462 = vadd.f32 %v1569, %v3376
      %v3463 = vadd.f32 %v1570, %v3378
      %v3464 = vadd.f32 %v1571, %v3380
      %v3465 = vadd.f32 %v1572, %v3382
      %v3466 = vadd.f32 %v1573, %v3386
      %v3467 = vadd.f32 %v1574, %v3388
      %v3468 = vadd.f32 %v1575, %v3390
      %v3469 = vadd.f32 %v1576, %v3392
      %v3470 = vadd.f32 %v1577, %v3396
      %v3471 = vadd.f32 %v1578, %v3398
      %v3472 = vadd.f32 %v1579, %v3400
      %v3473 = vadd.f32 %v1580, %v3402
      %v3474 = vadd.f32 %v1581, %v3406
      %v3475 = vadd.f32 %v1582, %v3408
      %v3476 = vadd.f32 %v1583, %v3410
      %v3477 = vadd.f32 %v1584, %v3412
      %3478 = vst [vmem:[#allocation2] sm:$0xff] %v3414
      %3479 = vst [vmem:[#allocation2 + $0x8] sm:$0xff] %v3415
      %3480 = vst [vmem:[#allocation2 + $0x10] sm:$0xff] %v3416
      %3481 = vst [vmem:[#allocation2 + $0x18] sm:$0xff] %v3417
      %3482 = vst [vmem:[#allocation2 + $0x20] sm:$0xff] %v3418
      %3483 = vst [vmem:[#allocation2 + $0x28] sm:$0xff] %v3419
      %3484 = vst [vmem:[#allocation2 + $0x30] sm:$0xff] %v3420
      %3485 = vst [vmem:[#allocation2 + $0x38] sm:$0xff] %v3421
      %3486 = vst [vmem:[#allocation2 + $0x40] sm:$0xff] %v3422
      %3487 = vst [vmem:[#allocation2 + $0x48] sm:$0xff] %v3423
      %3488 = vst [vmem:[#allocation2 + $0x50] sm:$0xff] %v3424
      %3489 = vst [vmem:[#allocation2 + $0x58] sm:$0xff] %v3425
      %3490 = vst [vmem:[#allocation2 + $0x60] sm:$0xff] %v3426
      %3491 = vst [vmem:[#allocation2 + $0x68] sm:$0xff] %v3427
      %3492 = vst [vmem:[#allocation2 + $0x70] sm:$0xff] %v3428
      %3493 = vst [vmem:[#allocation2 + $0x78] sm:$0xff] %v3429
      %3494 = vst [vmem:[#allocation2 + $0x80] sm:$0xff] %v3430
      %3495 = vst [vmem:[#allocation2 + $0x88] sm:$0xff] %v3431
      %3496 = vst [vmem:[#allocation2 + $0x90] sm:$0xff] %v3432
      %3497 = vst [vmem:[#allocation2 + $0x98] sm:$0xff] %v3433
      %3498 = vst [vmem:[#allocation2 + $0xa0] sm:$0xff] %v3434
      %3499 = vst [vmem:[#allocation2 + $0xa8] sm:$0xff] %v3435
      %3500 = vst [vmem:[#allocation2 + $0xb0] sm:$0xff] %v3436
      %3501 = vst [vmem:[#allocation2 + $0xb8] sm:$0xff] %v3437
      %3502 = vst [vmem:[#allocation2 + $0xc0] sm:$0xff] %v3438
      %3503 = vst [vmem:[#allocation2 + $0xc8] sm:$0xff] %v3439
      %3504 = vst [vmem:[#allocation2 + $0xd0] sm:$0xff] %v3440
      %3505 = vst [vmem:[#allocation2 + $0xd8] sm:$0xff] %v3441
      %3506 = vst [vmem:[#allocation2 + $0xe0] sm:$0xff] %v3442
      %3507 = vst [vmem:[#allocation2 + $0xe8] sm:$0xff] %v3443
      %3508 = vst [vmem:[#allocation2 + $0xf0] sm:$0xff] %v3444
      %3509 = vst [vmem:[#allocation2 + $0xf8] sm:$0xff] %v3445
      %3510 = vst [vmem:[#allocation2 + $0x100] sm:$0xff] %v3446
      %3511 = vst [vmem:[#allocation2 + $0x108] sm:$0xff] %v3447
      %3512 = vst [vmem:[#allocation2 + $0x110] sm:$0xff] %v3448
      %3513 = vst [vmem:[#allocation2 + $0x118] sm:$0xff] %v3449
      %3514 = vst [vmem:[#allocation2 + $0x120] sm:$0xff] %v3450
      %3515 = vst [vmem:[#allocation2 + $0x128] sm:$0xff] %v3451
      %3516 = vst [vmem:[#allocation2 + $0x130] sm:$0xff] %v3452
      %3517 = vst [vmem:[#allocation2 + $0x138] sm:$0xff] %v3453
      %3518 = vst [vmem:[#allocation2 + $0x140] sm:$0xff] %v3454
      %3519 = vst [vmem:[#allocation2 + $0x148] sm:$0xff] %v3455
      %3520 = vst [vmem:[#allocation2 + $0x150] sm:$0xff] %v3456
      %3521 = vst [vmem:[#allocation2 + $0x158] sm:$0xff] %v3457
      %3522 = vst [vmem:[#allocation2 + $0x160] sm:$0xff] %v3458
      %3523 = vst [vmem:[#allocation2 + $0x168] sm:$0xff] %v3459
      %3524 = vst [vmem:[#allocation2 + $0x170] sm:$0xff] %v3460
      %3525 = vst [vmem:[#allocation2 + $0x178] sm:$0xff] %v3461
      %3526 = vst [vmem:[#allocation2 + $0x180] sm:$0xff] %v3462
      %3527 = vst [vmem:[#allocation2 + $0x188] sm:$0xff] %v3463
      %3528 = vst [vmem:[#allocation2 + $0x190] sm:$0xff] %v3464
      %3529 = vst [vmem:[#allocation2 + $0x198] sm:$0xff] %v3465
      %3530 = vst [vmem:[#allocation2 + $0x1a0] sm:$0xff] %v3466
      %3531 = vst [vmem:[#allocation2 + $0x1a8] sm:$0xff] %v3467
      %3532 = vst [vmem:[#allocation2 + $0x1b0] sm:$0xff] %v3468
      %3533 = vst [vmem:[#allocation2 + $0x1b8] sm:$0xff] %v3469
      %3534 = vst [vmem:[#allocation2 + $0x1c0] sm:$0xff] %v3470
      %3535 = vst [vmem:[#allocation2 + $0x1c8] sm:$0xff] %v3471
      %3536 = vst [vmem:[#allocation2 + $0x1d0] sm:$0xff] %v3472
      %3537 = vst [vmem:[#allocation2 + $0x1d8] sm:$0xff] %v3473
      %3538 = vst [vmem:[#allocation2 + $0x1e0] sm:$0xff] %v3474
      %3539 = vst [vmem:[#allocation2 + $0x1e8] sm:$0xff] %v3475
      %3540 = vst [vmem:[#allocation2 + $0x1f0] sm:$0xff] %v3476
      %3541 = vst [vmem:[#allocation2 + $0x1f8] sm:$0xff] %v3477
      // Predicated region
      $region33: #{aspp_forward.2} parent=27 // pred_check
        %p3542 = pneg %p319
      $region34: #{aspp_forward.2} parent=27 // pred_check_branch
        %3544 = sbr.rel (%p3542) target = $region36
      $region35: #{aspp_forward.2} parent=27 // pred_region
        %v3545 = vld [vmem:[#allocation2] sm:$0xff]
        %v3546 = vld [vmem:[#allocation2 + $0x8] sm:$0xff]
        %v3547 = vld [vmem:[#allocation2 + $0x10] sm:$0xff]
        %v3548 = vld [vmem:[#allocation2 + $0x18] sm:$0xff]
        %v3549 = vld [vmem:[#allocation2 + $0x20] sm:$0xff]
        %v3550 = vld [vmem:[#allocation2 + $0x28] sm:$0xff]
        %v3551 = vld [vmem:[#allocation2 + $0x30] sm:$0xff]
        %v3552 = vld [vmem:[#allocation2 + $0x38] sm:$0xff]
        %v3553 = vld [vmem:[#allocation2 + $0x40] sm:$0xff]
        %v3554 = vld [vmem:[#allocation2 + $0x48] sm:$0xff]
        %v3555 = vld [vmem:[#allocation2 + $0x50] sm:$0xff]
        %v3556 = vld [vmem:[#allocation2 + $0x58] sm:$0xff]
        %v3557 = vld [vmem:[#allocation2 + $0x60] sm:$0xff]
        %v3558 = vld [vmem:[#allocation2 + $0x68] sm:$0xff]
        %v3559 = vld [vmem:[#allocation2 + $0x70] sm:$0xff]
        %v3560 = vld [vmem:[#allocation2 + $0x78] sm:$0xff]
        %v3561 = vld [vmem:[#allocation2 + $0x80] sm:$0xff]
        %v3562 = vld [vmem:[#allocation2 + $0x88] sm:$0xff]
        %v3563 = vld [vmem:[#allocation2 + $0x90] sm:$0xff]
        %v3564 = vld [vmem:[#allocation2 + $0x98] sm:$0xff]
        %v3565 = vld [vmem:[#allocation2 + $0xa0] sm:$0xff]
        %v3566 = vld [vmem:[#allocation2 + $0xa8] sm:$0xff]
        %v3567 = vld [vmem:[#allocation2 + $0xb0] sm:$0xff]
        %v3568 = vld [vmem:[#allocation2 + $0xb8] sm:$0xff]
        %v3569 = vld [vmem:[#allocation2 + $0xc0] sm:$0xff]
        %v3570 = vld [vmem:[#allocation2 + $0xc8] sm:$0xff]
        %v3571 = vld [vmem:[#allocation2 + $0xd0] sm:$0xff]
        %v3572 = vld [vmem:[#allocation2 + $0xd8] sm:$0xff]
        %v3573 = vld [vmem:[#allocation2 + $0xe0] sm:$0xff]
        %v3574 = vld [vmem:[#allocation2 + $0xe8] sm:$0xff]
        %v3575 = vld [vmem:[#allocation2 + $0xf0] sm:$0xff]
        %v3576 = vld [vmem:[#allocation2 + $0xf8] sm:$0xff]
        %v3577 = vld [vmem:[#allocation2 + $0x100] sm:$0xff]
        %v3578 = vld [vmem:[#allocation2 + $0x108] sm:$0xff]
        %v3579 = vld [vmem:[#allocation2 + $0x110] sm:$0xff]
        %v3580 = vld [vmem:[#allocation2 + $0x118] sm:$0xff]
        %v3581 = vld [vmem:[#allocation2 + $0x120] sm:$0xff]
        %v3582 = vld [vmem:[#allocation2 + $0x128] sm:$0xff]
        %v3583 = vld [vmem:[#allocation2 + $0x130] sm:$0xff]
        %v3584 = vld [vmem:[#allocation2 + $0x138] sm:$0xff]
        %v3585 = vld [vmem:[#allocation2 + $0x140] sm:$0xff]
        %v3586 = vld [vmem:[#allocation2 + $0x148] sm:$0xff]
        %v3587 = vld [vmem:[#allocation2 + $0x150] sm:$0xff]
        %v3588 = vld [vmem:[#allocation2 + $0x158] sm:$0xff]
        %v3589 = vld [vmem:[#allocation2 + $0x160] sm:$0xff]
        %v3590 = vld [vmem:[#allocation2 + $0x168] sm:$0xff]
        %v3591 = vld [vmem:[#allocation2 + $0x170] sm:$0xff]
        %v3592 = vld [vmem:[#allocation2 + $0x178] sm:$0xff]
        %v3593 = vld [vmem:[#allocation2 + $0x180] sm:$0xff]
        %v3594 = vld [vmem:[#allocation2 + $0x188] sm:$0xff]
        %v3595 = vld [vmem:[#allocation2 + $0x190] sm:$0xff]
        %v3596 = vld [vmem:[#allocation2 + $0x198] sm:$0xff]
        %v3597 = vld [vmem:[#allocation2 + $0x1a0] sm:$0xff]
        %v3598 = vld [vmem:[#allocation2 + $0x1a8] sm:$0xff]
        %v3599 = vld [vmem:[#allocation2 + $0x1b0] sm:$0xff]
        %v3600 = vld [vmem:[#allocation2 + $0x1b8] sm:$0xff]
        %v3601 = vld [vmem:[#allocation2 + $0x1c0] sm:$0xff]
        %v3602 = vld [vmem:[#allocation2 + $0x1c8] sm:$0xff]
        %v3603 = vld [vmem:[#allocation2 + $0x1d0] sm:$0xff]
        %v3604 = vld [vmem:[#allocation2 + $0x1d8] sm:$0xff]
        %v3605 = vld [vmem:[#allocation2 + $0x1e0] sm:$0xff]
        %v3606 = vld [vmem:[#allocation2 + $0x1e8] sm:$0xff]
        %v3607 = vld [vmem:[#allocation2 + $0x1f0] sm:$0xff]
        %v3608 = vld [vmem:[#allocation2 + $0x1f8] sm:$0xff]
        %v3609 = vpack.c.bf16 %v3547, %v3545
        %v3610 = vpack.c.bf16 %v3548, %v3546
        %v3611 = vpack.c.bf16 %v3551, %v3549
        %v3612 = vpack.c.bf16 %v3552, %v3550
        %v3613 = vpack.c.bf16 %v3555, %v3553
        %v3614 = vpack.c.bf16 %v3556, %v3554
        %v3615 = vpack.c.bf16 %v3559, %v3557
        %v3616 = vpack.c.bf16 %v3560, %v3558
        %v3617 = vpack.c.bf16 %v3563, %v3561
        %v3618 = vpack.c.bf16 %v3564, %v3562
        %v3619 = vpack.c.bf16 %v3567, %v3565
        %v3620 = vpack.c.bf16 %v3568, %v3566
        %v3621 = vpack.c.bf16 %v3571, %v3569
        %v3622 = vpack.c.bf16 %v3572, %v3570
        %v3623 = vpack.c.bf16 %v3575, %v3573
        %v3624 = vpack.c.bf16 %v3576, %v3574
        %v3625 = vpack.c.bf16 %v3579, %v3577
        %v3626 = vpack.c.bf16 %v3580, %v3578
        %v3627 = vpack.c.bf16 %v3583, %v3581
        %v3628 = vpack.c.bf16 %v3584, %v3582
        %v3629 = vpack.c.bf16 %v3587, %v3585
        %v3630 = vpack.c.bf16 %v3588, %v3586
        %v3631 = vpack.c.bf16 %v3591, %v3589
        %v3632 = vpack.c.bf16 %v3592, %v3590
        %v3633 = vpack.c.bf16 %v3595, %v3593
        %v3634 = vpack.c.bf16 %v3596, %v3594
        %v3635 = vpack.c.bf16 %v3599, %v3597
        %v3636 = vpack.c.bf16 %v3600, %v3598
        %v3637 = vpack.c.bf16 %v3603, %v3601
        %v3638 = vpack.c.bf16 %v3604, %v3602
        %v3639 = vpack.c.bf16 %v3607, %v3605
        %v3640 = vpack.c.bf16 %v3608, %v3606
        %v3673 = vunpack.c.l.b16 %v3609
        %v3674 = vunpack.c.l.b16 %v3610
        %v3675 = vunpack.c.h.b16 %v3609
        %v3676 = vunpack.c.h.b16 %v3610
        %v3677 = vunpack.c.l.b16 %v3611
        %v3678 = vunpack.c.l.b16 %v3612
        %v3679 = vunpack.c.h.b16 %v3611
        %v3680 = vunpack.c.h.b16 %v3612
        %v3681 = vunpack.c.l.b16 %v3613
        %v3682 = vunpack.c.l.b16 %v3614
        %v3683 = vunpack.c.h.b16 %v3613
        %v3684 = vunpack.c.h.b16 %v3614
        %v3685 = vunpack.c.l.b16 %v3615
        %v3686 = vunpack.c.l.b16 %v3616
        %v3687 = vunpack.c.h.b16 %v3615
        %v3688 = vunpack.c.h.b16 %v3616
        %v3689 = vunpack.c.l.b16 %v3617
        %v3690 = vunpack.c.l.b16 %v3618
        %v3691 = vunpack.c.h.b16 %v3617
        %v3692 = vunpack.c.h.b16 %v3618
        %v3693 = vunpack.c.l.b16 %v3619
        %v3694 = vunpack.c.l.b16 %v3620
        %v3695 = vunpack.c.h.b16 %v3619
        %v3696 = vunpack.c.h.b16 %v3620
        %v3697 = vunpack.c.l.b16 %v3621
        %v3698 = vunpack.c.l.b16 %v3622
        %v3699 = vunpack.c.h.b16 %v3621
        %v3700 = vunpack.c.h.b16 %v3622
        %v3701 = vunpack.c.l.b16 %v3623
        %v3702 = vunpack.c.l.b16 %v3624
        %v3703 = vunpack.c.h.b16 %v3623
        %v3704 = vunpack.c.h.b16 %v3624
        %v3705 = vunpack.c.l.b16 %v3625
        %v3706 = vunpack.c.l.b16 %v3626
        %v3707 = vunpack.c.h.b16 %v3625
        %v3708 = vunpack.c.h.b16 %v3626
        %v3709 = vunpack.c.l.b16 %v3627
        %v3710 = vunpack.c.l.b16 %v3628
        %v3711 = vunpack.c.h.b16 %v3627
        %v3712 = vunpack.c.h.b16 %v3628
        %v3713 = vunpack.c.l.b16 %v3629
        %v3714 = vunpack.c.l.b16 %v3630
        %v3715 = vunpack.c.h.b16 %v3629
        %v3716 = vunpack.c.h.b16 %v3630
        %v3717 = vunpack.c.l.b16 %v3631
        %v3718 = vunpack.c.l.b16 %v3632
        %v3719 = vunpack.c.h.b16 %v3631
        %v3720 = vunpack.c.h.b16 %v3632
        %v3721 = vunpack.c.l.b16 %v3633
        %v3722 = vunpack.c.l.b16 %v3634
        %v3723 = vunpack.c.h.b16 %v3633
        %v3724 = vunpack.c.h.b16 %v3634
        %v3725 = vunpack.c.l.b16 %v3635
        %v3726 = vunpack.c.l.b16 %v3636
        %v3727 = vunpack.c.h.b16 %v3635
        %v3728 = vunpack.c.h.b16 %v3636
        %v3729 = vunpack.c.l.b16 %v3637
        %v3730 = vunpack.c.l.b16 %v3638
        %v3731 = vunpack.c.h.b16 %v3637
        %v3732 = vunpack.c.h.b16 %v3638
        %v3733 = vunpack.c.l.b16 %v3639
        %v3734 = vunpack.c.l.b16 %v3640
        %v3735 = vunpack.c.h.b16 %v3639
        %v3736 = vunpack.c.h.b16 %v3640
        %v3737 = vpack.c.b16 %v3674, %v3673
        %v3738 = vpack.c.b16 %v3676, %v3675
        %v3739 = vpack.c.b16 %v3678, %v3677
        %v3740 = vpack.c.b16 %v3680, %v3679
        %v3741 = vpack.c.b16 %v3682, %v3681
        %v3742 = vpack.c.b16 %v3684, %v3683
        %v3743 = vpack.c.b16 %v3686, %v3685
        %v3744 = vpack.c.b16 %v3688, %v3687
        %v3745 = vpack.c.b16 %v3690, %v3689
        %v3746 = vpack.c.b16 %v3692, %v3691
        %v3747 = vpack.c.b16 %v3694, %v3693
        %v3748 = vpack.c.b16 %v3696, %v3695
        %v3749 = vpack.c.b16 %v3698, %v3697
        %v3750 = vpack.c.b16 %v3700, %v3699
        %v3751 = vpack.c.b16 %v3702, %v3701
        %v3752 = vpack.c.b16 %v3704, %v3703
        %v3753 = vpack.c.b16 %v3706, %v3705
        %v3754 = vpack.c.b16 %v3708, %v3707
        %v3755 = vpack.c.b16 %v3710, %v3709
        %v3756 = vpack.c.b16 %v3712, %v3711
        %v3757 = vpack.c.b16 %v3714, %v3713
        %v3758 = vpack.c.b16 %v3716, %v3715
        %v3759 = vpack.c.b16 %v3718, %v3717
        %v3760 = vpack.c.b16 %v3720, %v3719
        %v3761 = vpack.c.b16 %v3722, %v3721
        %v3762 = vpack.c.b16 %v3724, %v3723
        %v3763 = vpack.c.b16 %v3726, %v3725
        %v3764 = vpack.c.b16 %v3728, %v3727
        %v3765 = vpack.c.b16 %v3730, %v3729
        %v3766 = vpack.c.b16 %v3732, %v3731
        %v3767 = vpack.c.b16 %v3734, %v3733
        %v3768 = vpack.c.b16 %v3736, %v3735
        %3801 = vst [vmem:[%s298] sm:$0xff] %v3737
        %3802 = vst [vmem:[%s298 + $0x8] sm:$0xff] %v3738
        %3803 = vst [vmem:[%s298 + $0x10] sm:$0xff] %v3739
        %3804 = vst [vmem:[%s298 + $0x18] sm:$0xff] %v3740
        %3805 = vst [vmem:[%s298 + $0x20] sm:$0xff] %v3741
        %3806 = vst [vmem:[%s298 + $0x28] sm:$0xff] %v3742
        %3807 = vst [vmem:[%s298 + $0x30] sm:$0xff] %v3743
        %3808 = vst [vmem:[%s298 + $0x38] sm:$0xff] %v3744
        %3809 = vst [vmem:[%s298 + $0x40] sm:$0xff] %v3745
        %3810 = vst [vmem:[%s298 + $0x48] sm:$0xff] %v3746
        %3811 = vst [vmem:[%s298 + $0x50] sm:$0xff] %v3747
        %3812 = vst [vmem:[%s298 + $0x58] sm:$0xff] %v3748
        %3813 = vst [vmem:[%s298 + $0x60] sm:$0xff] %v3749
        %3814 = vst [vmem:[%s298 + $0x68] sm:$0xff] %v3750
        %3815 = vst [vmem:[%s298 + $0x70] sm:$0xff] %v3751
        %3816 = vst [vmem:[%s298 + $0x78] sm:$0xff] %v3752
        %3817 = vst [vmem:[%s298 + $0x80] sm:$0xff] %v3753
        %3818 = vst [vmem:[%s298 + $0x88] sm:$0xff] %v3754
        %3819 = vst [vmem:[%s298 + $0x90] sm:$0xff] %v3755
        %3820 = vst [vmem:[%s298 + $0x98] sm:$0xff] %v3756
        %3821 = vst [vmem:[%s298 + $0xa0] sm:$0xff] %v3757
        %3822 = vst [vmem:[%s298 + $0xa8] sm:$0xff] %v3758
        %3823 = vst [vmem:[%s298 + $0xb0] sm:$0xff] %v3759
        %3824 = vst [vmem:[%s298 + $0xb8] sm:$0xff] %v3760
        %3825 = vst [vmem:[%s298 + $0xc0] sm:$0xff] %v3761
        %3826 = vst [vmem:[%s298 + $0xc8] sm:$0xff] %v3762
        %3827 = vst [vmem:[%s298 + $0xd0] sm:$0xff] %v3763
        %3828 = vst [vmem:[%s298 + $0xd8] sm:$0xff] %v3764
        %3829 = vst [vmem:[%s298 + $0xe0] sm:$0xff] %v3765
        %3830 = vst [vmem:[%s298 + $0xe8] sm:$0xff] %v3766
        %3831 = vst [vmem:[%s298 + $0xf0] sm:$0xff] %v3767
        %3832 = vst [vmem:[%s298 + $0xf8] sm:$0xff] %v3768
        %v3833 = vadd.f32 %v3545, %v3547
        %v3834 = vadd.f32 %v3833, %v3549
        %v3835 = vadd.f32 %v3834, %v3551
        %v3836 = vadd.f32 %v3835, %v3553
        %v3837 = vadd.f32 %v3836, %v3555
        %v3838 = vadd.f32 %v3837, %v3557
        %v3839 = vadd.f32 %v3838, %v3559
        %v3840 = vadd.f32 %v3839, %v3561
        %v3841 = vadd.f32 %v3840, %v3563
        %v3842 = vadd.f32 %v3841, %v3565
        %v3843 = vadd.f32 %v3842, %v3567
        %v3844 = vadd.f32 %v3843, %v3569
        %v3845 = vadd.f32 %v3844, %v3571
        %v3846 = vadd.f32 %v3845, %v3573
        %v3847 = vadd.f32 %v3846, %v3575
        %v3848 = vadd.f32 %v3847, %v3577
        %v3849 = vadd.f32 %v3848, %v3579
        %v3850 = vadd.f32 %v3849, %v3581
        %v3851 = vadd.f32 %v3850, %v3583
        %v3852 = vadd.f32 %v3851, %v3585
        %v3853 = vadd.f32 %v3852, %v3587
        %v3854 = vadd.f32 %v3853, %v3589
        %v3855 = vadd.f32 %v3854, %v3591
        %v3856 = vadd.f32 %v3855, %v3593
        %v3857 = vadd.f32 %v3856, %v3595
        %v3858 = vadd.f32 %v3857, %v3597
        %v3859 = vadd.f32 %v3858, %v3599
        %v3860 = vadd.f32 %v3859, %v3601
        %v3861 = vadd.f32 %v3860, %v3603
        %v3862 = vadd.f32 %v3861, %v3605
        %v3863 = vadd.f32 %v3862, %v3607
        %v3864 = vrot.slane %v3863, 4
        %v3865 = vadd.f32 %v3863, %v3864
        %v3866 = vrot.slane %v3865, 2
        %v3867 = vadd.f32 %v3865, %v3866
        %v3868 = vrot.slane %v3867, 1
        %v3869 = vadd.f32 %v3867, %v3868
        %v3870 = vadd.f32 %v3546, %v3548
        %v3871 = vadd.f32 %v3870, %v3550
        %v3872 = vadd.f32 %v3871, %v3552
        %v3873 = vadd.f32 %v3872, %v3554
        %v3874 = vadd.f32 %v3873, %v3556
        %v3875 = vadd.f32 %v3874, %v3558
        %v3876 = vadd.f32 %v3875, %v3560
        %v3877 = vadd.f32 %v3876, %v3562
        %v3878 = vadd.f32 %v3877, %v3564
        %v3879 = vadd.f32 %v3878, %v3566
        %v3880 = vadd.f32 %v3879, %v3568
        %v3881 = vadd.f32 %v3880, %v3570
        %v3882 = vadd.f32 %v3881, %v3572
        %v3883 = vadd.f32 %v3882, %v3574
        %v3884 = vadd.f32 %v3883, %v3576
        %v3885 = vadd.f32 %v3884, %v3578
        %v3886 = vadd.f32 %v3885, %v3580
        %v3887 = vadd.f32 %v3886, %v3582
        %v3888 = vadd.f32 %v3887, %v3584
        %v3889 = vadd.f32 %v3888, %v3586
        %v3890 = vadd.f32 %v3889, %v3588
        %v3891 = vadd.f32 %v3890, %v3590
        %v3892 = vadd.f32 %v3891, %v3592
        %v3893 = vadd.f32 %v3892, %v3594
        %v3894 = vadd.f32 %v3893, %v3596
        %v3895 = vadd.f32 %v3894, %v3598
        %v3896 = vadd.f32 %v3895, %v3600
        %v3897 = vadd.f32 %v3896, %v3602
        %v3898 = vadd.f32 %v3897, %v3604
        %v3899 = vadd.f32 %v3898, %v3606
        %v3900 = vadd.f32 %v3899, %v3608
        %v3901 = vrot.slane %v3900, 4
        %v3902 = vadd.f32 %v3900, %v3901
        %v3903 = vrot.slane %v3902, 2
        %v3904 = vadd.f32 %v3902, %v3903
        %v3905 = vrot.slane %v3904, 1
        %v3906 = vadd.f32 %v3904, %v3905
        %v3909 = vcombine.low %v3869, %v3906
        %v3911 = vunpack.c.l.s4 1966171168
        %v3912 = vunpack.c.0.s8 %v3911
        %v3913 = vlaneseq
        %v3914 = vshrl.u32 %v3913, 7
        %v3915 = vsub.s32 %v3912, %v3914
        %v3916 = vrot.slane %v3909, %v3915
        %v3918 = vunpack.c.l.s4 1966171168
        %v3919 = vunpack.c.0.s8 %v3918
        %v3920 = vlaneseq
        %v3921 = vshrl.u32 %v3920, 7
        %v3922 = vsub.s32 %v3919, %v3921
        %v3923 = vrot.slane %v3916, %v3922
        %v3925 = vlaneseq
        %vm3926 = vcmp.ge.s32.totalorder %v3925, 0
        %vm3927 = vcmp.lt.s32.totalorder %v3925, 256
        %vm3928 = vmand %vm3926, %vm3927
        %3929 = vst.msk [vmem:[%s307] sm:$0x3] %vm3928, %v3923
        %v3930 = vmul.f32 %v3545, %v3545
        %v3931 = vmul.f32 %v3546, %v3546
        %v3932 = vmul.f32 %v3547, %v3547
        %v3933 = vmul.f32 %v3548, %v3548
        %v3934 = vmul.f32 %v3549, %v3549
        %v3935 = vmul.f32 %v3550, %v3550
        %v3936 = vmul.f32 %v3551, %v3551
        %v3937 = vmul.f32 %v3552, %v3552
        %v3938 = vmul.f32 %v3553, %v3553
        %v3939 = vmul.f32 %v3554, %v3554
        %v3940 = vmul.f32 %v3555, %v3555
        %v3941 = vmul.f32 %v3556, %v3556
        %v3942 = vmul.f32 %v3557, %v3557
        %v3943 = vmul.f32 %v3558, %v3558
        %v3944 = vmul.f32 %v3559, %v3559
        %v3945 = vmul.f32 %v3560, %v3560
        %v3946 = vmul.f32 %v3561, %v3561
        %v3947 = vmul.f32 %v3562, %v3562
        %v3948 = vmul.f32 %v3563, %v3563
        %v3949 = vmul.f32 %v3564, %v3564
        %v3950 = vmul.f32 %v3565, %v3565
        %v3951 = vmul.f32 %v3566, %v3566
        %v3952 = vmul.f32 %v3567, %v3567
        %v3953 = vmul.f32 %v3568, %v3568
        %v3954 = vmul.f32 %v3569, %v3569
        %v3955 = vmul.f32 %v3570, %v3570
        %v3956 = vmul.f32 %v3571, %v3571
        %v3957 = vmul.f32 %v3572, %v3572
        %v3958 = vmul.f32 %v3573, %v3573
        %v3959 = vmul.f32 %v3574, %v3574
        %v3960 = vmul.f32 %v3575, %v3575
        %v3961 = vmul.f32 %v3576, %v3576
        %v3962 = vmul.f32 %v3577, %v3577
        %v3963 = vmul.f32 %v3578, %v3578
        %v3964 = vmul.f32 %v3579, %v3579
        %v3965 = vmul.f32 %v3580, %v3580
        %v3966 = vmul.f32 %v3581, %v3581
        %v3967 = vmul.f32 %v3582, %v3582
        %v3968 = vmul.f32 %v3583, %v3583
        %v3969 = vmul.f32 %v3584, %v3584
        %v3970 = vmul.f32 %v3585, %v3585
        %v3971 = vmul.f32 %v3586, %v3586
        %v3972 = vmul.f32 %v3587, %v3587
        %v3973 = vmul.f32 %v3588, %v3588
        %v3974 = vmul.f32 %v3589, %v3589
        %v3975 = vmul.f32 %v3590, %v3590
        %v3976 = vmul.f32 %v3591, %v3591
        %v3977 = vmul.f32 %v3592, %v3592
        %v3978 = vmul.f32 %v3593, %v3593
        %v3979 = vmul.f32 %v3594, %v3594
        %v3980 = vmul.f32 %v3595, %v3595
        %v3981 = vmul.f32 %v3596, %v3596
        %v3982 = vmul.f32 %v3597, %v3597
        %v3983 = vmul.f32 %v3598, %v3598
        %v3984 = vmul.f32 %v3599, %v3599
        %v3985 = vmul.f32 %v3600, %v3600
        %v3986 = vmul.f32 %v3601, %v3601
        %v3987 = vmul.f32 %v3602, %v3602
        %v3988 = vmul.f32 %v3603, %v3603
        %v3989 = vmul.f32 %v3604, %v3604
        %v3990 = vmul.f32 %v3605, %v3605
        %v3991 = vmul.f32 %v3606, %v3606
        %v3992 = vmul.f32 %v3607, %v3607
        %v3993 = vmul.f32 %v3608, %v3608
        %v3994 = vadd.f32 %v3930, %v3932
        %v3995 = vadd.f32 %v3994, %v3934
        %v3996 = vadd.f32 %v3995, %v3936
        %v3997 = vadd.f32 %v3996, %v3938
        %v3998 = vadd.f32 %v3997, %v3940
        %v3999 = vadd.f32 %v3998, %v3942
        %v4000 = vadd.f32 %v3999, %v3944
        %v4001 = vadd.f32 %v4000, %v3946
        %v4002 = vadd.f32 %v4001, %v3948
        %v4003 = vadd.f32 %v4002, %v3950
        %v4004 = vadd.f32 %v4003, %v3952
        %v4005 = vadd.f32 %v4004, %v3954
        %v4006 = vadd.f32 %v4005, %v3956
        %v4007 = vadd.f32 %v4006, %v3958
        %v4008 = vadd.f32 %v4007, %v3960
        %v4009 = vadd.f32 %v4008, %v3962
        %v4010 = vadd.f32 %v4009, %v3964
        %v4011 = vadd.f32 %v4010, %v3966
        %v4012 = vadd.f32 %v4011, %v3968
        %v4013 = vadd.f32 %v4012, %v3970
        %v4014 = vadd.f32 %v4013, %v3972
        %v4015 = vadd.f32 %v4014, %v3974
        %v4016 = vadd.f32 %v4015, %v3976
        %v4017 = vadd.f32 %v4016, %v3978
        %v4018 = vadd.f32 %v4017, %v3980
        %v4019 = vadd.f32 %v4018, %v3982
        %v4020 = vadd.f32 %v4019, %v3984
        %v4021 = vadd.f32 %v4020, %v3986
        %v4022 = vadd.f32 %v4021, %v3988
        %v4023 = vadd.f32 %v4022, %v3990
        %v4024 = vadd.f32 %v4023, %v3992
        %v4025 = vrot.slane %v4024, 4
        %v4026 = vadd.f32 %v4024, %v4025
        %v4027 = vrot.slane %v4026, 2
        %v4028 = vadd.f32 %v4026, %v4027
        %v4029 = vrot.slane %v4028, 1
        %v4030 = vadd.f32 %v4028, %v4029
        %v4031 = vadd.f32 %v3931, %v3933
        %v4032 = vadd.f32 %v4031, %v3935
        %v4033 = vadd.f32 %v4032, %v3937
        %v4034 = vadd.f32 %v4033, %v3939
        %v4035 = vadd.f32 %v4034, %v3941
        %v4036 = vadd.f32 %v4035, %v3943
        %v4037 = vadd.f32 %v4036, %v3945
        %v4038 = vadd.f32 %v4037, %v3947
        %v4039 = vadd.f32 %v4038, %v3949
        %v4040 = vadd.f32 %v4039, %v3951
        %v4041 = vadd.f32 %v4040, %v3953
        %v4042 = vadd.f32 %v4041, %v3955
        %v4043 = vadd.f32 %v4042, %v3957
        %v4044 = vadd.f32 %v4043, %v3959
        %v4045 = vadd.f32 %v4044, %v3961
        %v4046 = vadd.f32 %v4045, %v3963
        %v4047 = vadd.f32 %v4046, %v3965
        %v4048 = vadd.f32 %v4047, %v3967
        %v4049 = vadd.f32 %v4048, %v3969
        %v4050 = vadd.f32 %v4049, %v3971
        %v4051 = vadd.f32 %v4050, %v3973
        %v4052 = vadd.f32 %v4051, %v3975
        %v4053 = vadd.f32 %v4052, %v3977
        %v4054 = vadd.f32 %v4053, %v3979
        %v4055 = vadd.f32 %v4054, %v3981
        %v4056 = vadd.f32 %v4055, %v3983
        %v4057 = vadd.f32 %v4056, %v3985
        %v4058 = vadd.f32 %v4057, %v3987
        %v4059 = vadd.f32 %v4058, %v3989
        %v4060 = vadd.f32 %v4059, %v3991
        %v4061 = vadd.f32 %v4060, %v3993
        %v4062 = vrot.slane %v4061, 4
        %v4063 = vadd.f32 %v4061, %v4062
        %v4064 = vrot.slane %v4063, 2
        %v4065 = vadd.f32 %v4063, %v4064
        %v4066 = vrot.slane %v4065, 1
        %v4067 = vadd.f32 %v4065, %v4066
        %v4070 = vcombine.low %v4030, %v4067
        %v4072 = vunpack.c.l.s4 1966171168
        %v4073 = vunpack.c.0.s8 %v4072
        %v4074 = vlaneseq
        %v4075 = vshrl.u32 %v4074, 7
        %v4076 = vsub.s32 %v4073, %v4075
        %v4077 = vrot.slane %v4070, %v4076
        %v4079 = vunpack.c.l.s4 1966171168
        %v4080 = vunpack.c.0.s8 %v4079
        %v4081 = vlaneseq
        %v4082 = vshrl.u32 %v4081, 7
        %v4083 = vsub.s32 %v4080, %v4082
        %v4084 = vrot.slane %v4077, %v4083
        %4086 = vst.msk [vmem:[%s316] sm:$0x3] %vm3928, %v4084
      $region36: #{aspp_forward.2} parent=27 // pred_fallthru
        _
      %s4087 = smul.u32 2, %s22
      %p4088 = scmp.lt.s32.totalorder %s21, 1
      %s4089 = scalar_select %p4088, %s21, 1
      %p4090 = scmp.lt.s32.totalorder %s4087, 1
      %s4091 = scalar_select %p4090, %s4087, 1
      %s4092 = smul.addr %s4089, 64
      %s4093 = sadd.s32 %s4091, %s4092
      %s4094 = smul.addr %s4093, 4
      %s4095 = scalar_lea.vmem %s2, %s4094
      %s4096 = smul.u32 2, %s22
      %p4097 = scmp.lt.s32.totalorder %s21, 1
      %s4098 = scalar_select %p4097, %s21, 1
      %p4099 = scmp.lt.s32.totalorder %s4096, 1
      %s4100 = scalar_select %p4099, %s4096, 1
      %s4101 = smul.addr %s4098, 2
      %s4102 = sadd.s32 %s4100, %s4101
      %s4103 = scalar_lea.vmem %s3, %s4102
      %s4104 = smul.u32 2, %s22
      %p4105 = scmp.lt.s32.totalorder %s21, 1
      %s4106 = scalar_select %p4105, %s21, 1
      %p4107 = scmp.lt.s32.totalorder %s4104, 1
      %s4108 = scalar_select %p4107, %s4104, 1
      %s4109 = smul.addr %s4106, 2
      %s4110 = sadd.s32 %s4108, %s4109
      %s4111 = scalar_lea.vmem %s4, %s4110
      // Predicated region
      $region37: #{aspp_forward.2} parent=27 // pred_check
        %p4112 = pneg %p111
      $region38: #{aspp_forward.2} parent=27 // pred_check_branch
        %4114 = sbr.rel (%p4112) target = $region40
      $region39: #{aspp_forward.2} parent=27 // pred_region
        %s4115 = smul.u32 2, %s22
      $region40: #{aspp_forward.2} parent=27 // pred_fallthru
        _
      // Predicated region
      $region41: #{aspp_forward.2} parent=27 // pred_check
        %p4116 = pneg %p139
      $region42: #{aspp_forward.2} parent=27 // pred_check_branch
        %4118 = sbr.rel (%p4116) target = $region44
      $region43: #{aspp_forward.2} parent=27 // pred_region
        %s4119 = smul.u32 2, %s22
      $region44: #{aspp_forward.2} parent=27 // pred_fallthru
        _
      // Predicated region
      $region45: #{aspp_forward.2} parent=27 // pred_check
        %p4120 = pneg %p167
      $region46: #{aspp_forward.2} parent=27 // pred_check_branch
        %4122 = sbr.rel (%p4120) target = $region48
      $region47: #{aspp_forward.2} parent=27 // pred_region
        %s4123 = smul.u32 2, %s22
      $region48: #{aspp_forward.2} parent=27 // pred_fallthru
        _
    $region28: #{aspp_forward.2} parent=5 // pred_fallthru
      _
    %p4124 = scmp.le.s32.totalorder 2, %s11
    // Predicated region
    $region49: #{aspp_forward.2} parent=5 // pred_check
      %p4125 = pneg %p4124
    $region50: #{aspp_forward.2} parent=5 // pred_check_branch
      %4127 = sbr.rel (%p4125) target = $region52
    $region51: #{aspp_forward.2} parent=5 // pred_region
      %s4128 = ssub.s32 %s11, 2
      // Predicated region
      $region53: #{aspp_forward.2} parent=51 // pred_check
        %p4129 = pneg %p117
      $region54: #{aspp_forward.2} parent=51 // pred_check_branch
        %4131 = sbr.rel (%p4129) target = $region56
      $region55: #{aspp_forward.2} parent=51 // pred_region
        %s4132 = smul.u32 2, %s25
        %p4133 = scmp.lt.s32.totalorder %s24, 1
        %s4134 = scalar_select %p4133, %s24, 1
        %p4135 = scmp.lt.s32.totalorder %s4132, 1
        %s4136 = scalar_select %p4135, %s4132, 1
        %s4137 = smul.addr %s4134, 64
        %s4138 = sadd.s32 %s4136, %s4137
        %s4139 = smul.addr %s4138, 4
        %s4140 = scalar_lea.vmem %s2, %s4139
      $region56: #{aspp_forward.2} parent=51 // pred_fallthru
        _
      // Predicated region
      $region57: #{aspp_forward.2} parent=51 // pred_check
        %p4141 = pneg %p145
      $region58: #{aspp_forward.2} parent=51 // pred_check_branch
        %4143 = sbr.rel (%p4141) target = $region60
      $region59: #{aspp_forward.2} parent=51 // pred_region
        %s4144 = smul.u32 2, %s25
        %p4145 = scmp.lt.s32.totalorder %s24, 1
        %s4146 = scalar_select %p4145, %s24, 1
        %p4147 = scmp.lt.s32.totalorder %s4144, 1
        %s4148 = scalar_select %p4147, %s4144, 1
        %s4149 = smul.addr %s4146, 2
        %s4150 = sadd.s32 %s4148, %s4149
        %s4151 = scalar_lea.vmem %s3, %s4150
      $region60: #{aspp_forward.2} parent=51 // pred_fallthru
        _
      // Predicated region
      $region61: #{aspp_forward.2} parent=51 // pred_check
        %p4152 = pneg %p173
      $region62: #{aspp_forward.2} parent=51 // pred_check_branch
        %4154 = sbr.rel (%p4152) target = $region64
      $region63: #{aspp_forward.2} parent=51 // pred_region
        %s4155 = smul.u32 2, %s25
        %p4156 = scmp.lt.s32.totalorder %s24, 1
        %s4157 = scalar_select %p4156, %s24, 1
        %p4158 = scmp.lt.s32.totalorder %s4155, 1
        %s4159 = scalar_select %p4158, %s4155, 1
        %s4160 = smul.addr %s4157, 2
        %s4161 = sadd.s32 %s4159, %s4160
        %s4162 = scalar_lea.vmem %s4, %s4161
      $region64: #{aspp_forward.2} parent=51 // pred_fallthru
        _
    $region52: #{aspp_forward.2} parent=5 // pred_fallthru
      _
  $region6: #{aspp_forward.2} parent=0 // loop_footer
    %s15 = sadd.s32 1, %s11
  $region7: #{aspp_forward.2} parent=0 // loop_footer_branch
    %10 = sbr.rel target = $region3
  $region8: #{aspp_forward.2} parent=0 // loop_exit
    _

</llo_original>
